<compile_context>
chip_gen: v7x
topology: tpu7x:2x2x1
jax: 0.10.0
libtpu: 0.0.40
codegen_flags: <defaults>
</compile_context>

<pallas_src>
import math
import functools

import jax
import jax.numpy as jnp
from jax.experimental import pallas as pl
from jax.experimental.pallas import tpu as pltpu

# ---------------- config (small, consistent with BERT semantics) ------------
BATCH = 2
SEQ = 8
HIDDEN = 32
NUM_HEADS = 4
HEAD_DIM = HIDDEN // NUM_HEADS
INTERMEDIATE = 64
NUM_LAYERS = 3
ALIGN_LAYER = 2          # forward stops after this many layers
LN_EPS = 1e-12


def _layernorm(x, gamma, beta, eps=LN_EPS):
    # Fused statistics: var = E[x^2] - mu^2 (both reductions read x directly).
    mu = jnp.mean(x, axis=-1, keepdims=True)
    ms = jnp.mean(x * x, axis=-1, keepdims=True)
    var = ms - mu * mu
    return (x - mu) * jax.lax.rsqrt(var + eps) * gamma + beta


def _gelu(x):
    # exact (erf-based) gelu, as in awesome_align's ACT2FN['gelu']
    return 0.5 * x * (1.0 + jax.lax.erf(x * (1.0 / math.sqrt(2.0))))


def bert_encoder_kernel(x_ref, mask_ref, qkvw_ref, qkvb_ref, aow_ref,
                        iw_ref, ow_ref, slab_ref, out_ref, *,
                        num_layers, num_heads, seq, hidden, inter):
    x = x_ref[0]                 # (S, H) f32 — one batch element per grid step
    mask = mask_ref[...]         # (1, 1, S) additive mask; broadcasts over heads/queries
    nqkv = 3 * num_heads
    bf16 = jnp.bfloat16

    for l in range(num_layers):  # static unroll over the executed layers
        # -- unpack the per-layer small-parameter slab (8, 128) --
        slab = slab_ref[l]
        ib   = slab[0:1, 0:inter]
        aob  = slab[1:2, 0:hidden]
        ob   = slab[2:3, 0:hidden]
        ln1g = slab[3:4, 0:hidden]
        ln1b = slab[4:5, 0:hidden]
        ln2g = slab[5:6, 0:hidden]
        ln2b = slab[6:7, 0:hidden]

        # ---- BertSelfAttention: head-batched QKV projection (no lane slicing) ----
        xb = jnp.broadcast_to(x.astype(bf16), (nqkv, seq, hidden))
        qkv = jnp.einsum('nsh,nhd->nsd', xb, qkvw_ref[l],
                         preferred_element_type=jnp.float32) + qkvb_ref[l]
        q = qkv[0:num_heads]                     # (NH, S, HD) — major-axis slices
        k = qkv[num_heads:2 * num_heads]
        v = qkv[2 * num_heads:]
        # 1/sqrt(head_dim) is folded into the Q weights/bias at stack time.
        s = jnp.einsum('nqd,nkd->nqk', q.astype(bf16), k.astype(bf16),
                       preferred_element_type=jnp.float32) + mask
        s = s - jnp.max(s, axis=-1, keepdims=True)         # stable softmax
        p = jnp.exp(s)
        p = p / jnp.sum(p, axis=-1, keepdims=True)          # exact division
        ctx = jnp.einsum('nqk,nkd->nqd', p.astype(bf16), v.astype(bf16),
                         preferred_element_type=jnp.float32)   # (NH, S, HD)

        # ---- BertSelfOutput: per-head dense + head-sum (replaces lane concat) ----
        attn_h = jnp.einsum('nqd,ndh->nqh', ctx.astype(bf16), aow_ref[l],
                            preferred_element_type=jnp.float32)  # (NH, S, H)
        attn = jnp.sum(attn_h, axis=0) + aob
        res1 = _layernorm(attn + x, ln1g, ln1b)

        # ---- BertIntermediate: dense + gelu ----
        hmid = _gelu(jnp.dot(res1.astype(bf16), iw_ref[l],
                             preferred_element_type=jnp.float32) + ib)

        # ---- BertOutput: dense + residual + LayerNorm ----
        outp = jnp.dot(hmid.astype(bf16), ow_ref[l],
                       preferred_element_type=jnp.float32) + ob
        x = _layernorm(outp + res1, ln2g, ln2b)

    out_ref[...] = x.reshape(1, seq, hidden).astype(out_ref.dtype)


def _const_spec(shape):
    # Whole array as a single block, same block for every batch step
    # (stays resident in VMEM — no per-step weight DMA).
    zeros = (0,) * len(shape)
    return pl.BlockSpec(shape, lambda b, _z=zeros: _z)


@jax.jit
def bert_encoder_call(hidden, mask, stacked):
    B, S, H = hidden.shape
    qkvw, qkvb, aow, iw, ow, slab = stacked
    L = qkvw.shape[0]
    I = iw.shape[-1]

    kernel = functools.partial(
        bert_encoder_kernel, num_layers=L, num_heads=NUM_HEADS,
        seq=S, hidden=H, inter=I)

    in_specs = [pl.BlockSpec((1, S, H), lambda b: (b, 0, 0)),
                pl.BlockSpec((1, 1, S), lambda b: (b, 0, 0))]
    in_specs += [_const_spec(p.shape) for p in (qkvw, qkvb, aow, iw, ow, slab)]

    rows = B * S
    flops_per_layer = (2 * rows * H * 3 * H
                       + 4 * B * NUM_HEADS * S * S * HEAD_DIM
                       + 2 * rows * H * H
                       + 4 * rows * H * I)
    bytes_w = sum(int(p.size) * p.dtype.itemsize
                  for p in (qkvw, qkvb, aow, iw, ow, slab))
    cost = pl.CostEstimate(
        flops=L * flops_per_layer,
        transcendentals=L * (B * NUM_HEADS * S * S + rows * I + 2 * rows),
        bytes_accessed=bytes_w + 2 * hidden.size * 4 + mask.size * 4)

    return pl.pallas_call(
        kernel,
        out_shape=jax.ShapeDtypeStruct((B, S, H), jnp.float32),
        grid_spec=pltpu.PrefetchScalarGridSpec(
            num_scalar_prefetch=0,
            grid=(B,),                                   # batch-parallel grid
            in_specs=in_specs,
            out_specs=pl.BlockSpec((1, S, H), lambda b: (b, 0, 0)),
        ),
        compiler_params=pltpu.CompilerParams(
            dimension_semantics=("parallel",),           # lights up both TCs on v7x
            vmem_limit_bytes=32 * 1024 * 1024,           # explicit (v5e default is 16 MiB)
        ),
        cost_estimate=cost,
    )(hidden, mask, qkvw, qkvb, aow, iw, ow, slab)


def stack_layer_params(params, n_exec, weight_dtype=jnp.bfloat16):
    """One-time weight prep (hoisted out of the per-call path):
    head-major QKV / attention-output layouts, bf16 matmul weights,
    1/sqrt(head_dim) folded into Q, and all small params packed into one slab."""
    inv = 1.0 / math.sqrt(HEAD_DIM)
    hd, nh = HEAD_DIM, NUM_HEADS
    qkvw_l, qkvb_l, aow_l, iw_l, ow_l, slab_l = ([] for _ in range(6))

    def heads_w(w):   # (H, H) -> (NH, H, HD) head-major output columns
        return jnp.stack([w[:, h * hd:(h + 1) * hd] for h in range(nh)], axis=0)

    def heads_b(b):   # (1, H) -> (NH, 1, HD)
        return jnp.stack([b[:, h * hd:(h + 1) * hd] for h in range(nh)], axis=0)

    def row(v):       # pad a small vector into one 128-lane slab row
        v = v.reshape(1, -1).astype(jnp.float32)
        return jnp.pad(v, ((0, 0), (0, 128 - v.shape[1])))

    for lp in params[:n_exec]:
        (qw, qb, kw, kb, vw, vb, aw, ab, g1, b1, w_i, b_i, w_o, b_o, g2, b2) = lp
        H = qw.shape[0]
        qkvw_l.append(jnp.concatenate(
            [heads_w(qw * inv), heads_w(kw), heads_w(vw)], axis=0).astype(weight_dtype))
        qkvb_l.append(jnp.concatenate(
            [heads_b(qb * inv), heads_b(kb), heads_b(vb)], axis=0).astype(jnp.float32))
        aow_l.append(aw.reshape(nh, hd, H).astype(weight_dtype))   # head-major rows
        iw_l.append(w_i.astype(weight_dtype))
        ow_l.append(w_o.astype(weight_dtype))
        slab_l.append(jnp.concatenate(
            [row(b_i), row(ab), row(b_o), row(g1), row(b1), row(g2), row(b2),
             jnp.zeros((1, 128), jnp.float32)], axis=0))            # (8, 128)

    return (jnp.stack(qkvw_l), jnp.stack(qkvb_l), jnp.stack(aow_l),
            jnp.stack(iw_l), jnp.stack(ow_l), jnp.stack(slab_l))


def bert_encoder_forward(hidden, mask, stacked):
    # Mirrors BertEncoder.forward with the break at i == align_layer - 1:
    # `stacked` already holds exactly the layers to execute.
    return bert_encoder_call(hidden, mask, stacked)


def init_layer_params(key):
    ks = jax.random.split(key, 8)
    std = 0.02

    def dense(k, fan_in, fan_out):
        return jax.random.normal(k, (fan_in, fan_out), jnp.float32) * std

    qw = dense(ks[0], HIDDEN, HIDDEN); qb = jnp.zeros((1, HIDDEN), jnp.float32)
    kw = dense(ks[1], HIDDEN, HIDDEN); kb = jnp.zeros((1, HIDDEN), jnp.float32)
    vw = dense(ks[2], HIDDEN, HIDDEN); vb = jnp.zeros((1, HIDDEN), jnp.float32)
    aow = dense(ks[3], HIDDEN, HIDDEN); aob = jnp.zeros((1, HIDDEN), jnp.float32)
    ln1g = jnp.ones((1, HIDDEN), jnp.float32); ln1b = jnp.zeros((1, HIDDEN), jnp.float32)
    iw = dense(ks[4], HIDDEN, INTERMEDIATE); ib = jnp.zeros((1, INTERMEDIATE), jnp.float32)
    ow = dense(ks[5], INTERMEDIATE, HIDDEN); ob = jnp.zeros((1, HIDDEN), jnp.float32)
    ln2g = jnp.ones((1, HIDDEN), jnp.float32); ln2b = jnp.zeros((1, HIDDEN), jnp.float32)
    return (qw, qb, kw, kb, vw, vb, aow, aob, ln1g, ln1b,
            iw, ib, ow, ob, ln2g, ln2b)


if __name__ == "__main__":
    root = jax.random.PRNGKey(0)
    k_h, k_p = jax.random.split(root)

    hidden = jax.random.normal(k_h, (BATCH, SEQ, HIDDEN), jnp.float32)

    # additive attention mask: [B, 1, S]; mask out the last key of batch 1
    mask = jnp.zeros((BATCH, 1, SEQ), jnp.float32)
    mask = mask.at[1, 0, SEQ - 1].set(-10000.0)

    layer_keys = jax.random.split(k_p, NUM_LAYERS)
    params = [init_layer_params(k) for k in layer_keys]

    # Executes exactly ALIGN_LAYER layers (torch breaks at i == align_layer - 1
    # after running that layer). Stacking is done once, outside the jitted call.
    n_exec = ALIGN_LAYER if 1 <= ALIGN_LAYER <= NUM_LAYERS else NUM_LAYERS
    stacked = stack_layer_params(params, n_exec)

    out = bert_encoder_forward(hidden, mask, stacked)
    out = jax.block_until_ready(out)
    assert out.shape == (BATCH, SEQ, HIDDEN)
    assert bool(jnp.all(jnp.isfinite(out)))
    print("KERNEL_OK")
</pallas_src>

<mosaic_0001>
module attributes {stable_mosaic.version = 11 : i64} {
  func.func @bert_encoder_kernel(%arg0: i32, %arg1: memref<1x8x32xf32, #tpu.memory_space<vmem>>, %arg2: memref<1x1x8xf32, #tpu.memory_space<vmem>>, %arg3: memref<2x12x32x8xbf16, #tpu.memory_space<vmem>>, %arg4: memref<2x12x1x8xf32, #tpu.memory_space<vmem>>, %arg5: memref<2x4x8x32xbf16, #tpu.memory_space<vmem>>, %arg6: memref<2x32x64xbf16, #tpu.memory_space<vmem>>, %arg7: memref<2x64x32xbf16, #tpu.memory_space<vmem>>, %arg8: memref<2x8x128xf32, #tpu.memory_space<vmem>>, %arg9: memref<1x8x32xf32, #tpu.memory_space<vmem>>) attributes {dimension_semantics = [#tpu.dimension_semantics<parallel>], iteration_bounds = array<i64: 2>, scalar_prefetch = 0 : i64, scratch_operands = 0 : i64, tpu.core_type = #tpu.core_type<tc>, window_params = [{transform_indices = @transform_0, window_bounds = array<i64: 1, 8, 32>}, {transform_indices = @transform_1, window_bounds = array<i64: 1, 1, 8>}, {pipeline_mode = #tpu.pipeline_mode<synchronous>, transform_indices = @transform_2, window_bounds = array<i64: 2, 12, 32, 8>}, {pipeline_mode = #tpu.pipeline_mode<synchronous>, transform_indices = @transform_3, window_bounds = array<i64: 2, 12, 1, 8>}, {pipeline_mode = #tpu.pipeline_mode<synchronous>, transform_indices = @transform_4, window_bounds = array<i64: 2, 4, 8, 32>}, {pipeline_mode = #tpu.pipeline_mode<synchronous>, transform_indices = @transform_5, window_bounds = array<i64: 2, 32, 64>}, {pipeline_mode = #tpu.pipeline_mode<synchronous>, transform_indices = @transform_6, window_bounds = array<i64: 2, 64, 32>}, {pipeline_mode = #tpu.pipeline_mode<synchronous>, transform_indices = @transform_7, window_bounds = array<i64: 2, 8, 128>}, {transform_indices = @transform_8, window_bounds = array<i64: 1, 8, 32>}]} {
    %c0 = arith.constant 0 : index
    %c0_0 = arith.constant 0 : index
    %c0_1 = arith.constant 0 : index
    %0 = vector.load %arg1[%c0, %c0_0, %c0_1] : memref<1x8x32xf32, #tpu.memory_space<vmem>>, vector<1x8x32xf32>
    %1 = vector.shape_cast %0 : vector<1x8x32xf32> to vector<8x32xf32>
    %c0_2 = arith.constant 0 : index
    %c0_3 = arith.constant 0 : index
    %c0_4 = arith.constant 0 : index
    %2 = vector.load %arg2[%c0_2, %c0_3, %c0_4] : memref<1x1x8xf32, #tpu.memory_space<vmem>>, vector<1x1x8xf32>
    %c0_5 = arith.constant 0 : index
    %c0_6 = arith.constant 0 : index
    %c0_7 = arith.constant 0 : index
    %3 = vector.load %arg8[%c0_5, %c0_6, %c0_7] : memref<2x8x128xf32, #tpu.memory_space<vmem>>, vector<1x8x128xf32>
    %4 = vector.shape_cast %3 : vector<1x8x128xf32> to vector<8x128xf32>
    %5 = vector.extract_strided_slice %4 {offsets = [0, 0], sizes = [1, 64], strides = [1, 1]} : vector<8x128xf32> to vector<1x64xf32>
    %6 = vector.extract_strided_slice %4 {offsets = [1, 0], sizes = [1, 32], strides = [1, 1]} : vector<8x128xf32> to vector<1x32xf32>
    %7 = vector.extract_strided_slice %4 {offsets = [2, 0], sizes = [1, 32], strides = [1, 1]} : vector<8x128xf32> to vector<1x32xf32>
    %8 = vector.extract_strided_slice %4 {offsets = [3, 0], sizes = [1, 32], strides = [1, 1]} : vector<8x128xf32> to vector<1x32xf32>
    %9 = vector.extract_strided_slice %4 {offsets = [4, 0], sizes = [1, 32], strides = [1, 1]} : vector<8x128xf32> to vector<1x32xf32>
    %10 = vector.extract_strided_slice %4 {offsets = [5, 0], sizes = [1, 32], strides = [1, 1]} : vector<8x128xf32> to vector<1x32xf32>
    %11 = vector.extract_strided_slice %4 {offsets = [6, 0], sizes = [1, 32], strides = [1, 1]} : vector<8x128xf32> to vector<1x32xf32>
    %12 = arith.truncf %1 : vector<8x32xf32> to vector<8x32xbf16>
    %13 = vector.shape_cast %12 : vector<8x32xbf16> to vector<1x8x32xbf16>
    %14 = vector.broadcast %13 : vector<1x8x32xbf16> to vector<12x8x32xbf16>
    %c0_8 = arith.constant 0 : index
    %c0_9 = arith.constant 0 : index
    %c0_10 = arith.constant 0 : index
    %c0_11 = arith.constant 0 : index
    %15 = vector.load %arg3[%c0_8, %c0_9, %c0_10, %c0_11] : memref<2x12x32x8xbf16, #tpu.memory_space<vmem>>, vector<1x12x32x8xbf16>
    %16 = vector.shape_cast %15 : vector<1x12x32x8xbf16> to vector<12x32x8xbf16>
    "tpu.trace_start"() <{level = 10 : i32, message = "nsh,nhd->nsd"}> : () -> ()
    %cst = arith.constant dense<0.000000e+00> : vector<12x8x8xf32>
    %17 = tpu.matmul %14, %16, %cst {dimension_numbers = #tpu.dot_dimension_numbers<[2], [1], [1], [2], [0, 0, 0, 1, 1, 2], [0], [0]>} : vector<12x8x32xbf16>, vector<12x32x8xbf16>, vector<12x8x8xf32> -> vector<12x8x8xf32>
    "tpu.trace_stop"() : () -> ()
    %c0_12 = arith.constant 0 : index
    %c0_13 = arith.constant 0 : index
    %c0_14 = arith.constant 0 : index
    %c0_15 = arith.constant 0 : index
    %18 = vector.load %arg4[%c0_12, %c0_13, %c0_14, %c0_15] : memref<2x12x1x8xf32, #tpu.memory_space<vmem>>, vector<1x12x1x8xf32>
    %19 = vector.shape_cast %18 : vector<1x12x1x8xf32> to vector<12x1x8xf32>
    %20 = vector.broadcast %19 : vector<12x1x8xf32> to vector<12x8x8xf32>
    %21 = arith.addf %17, %20 : vector<12x8x8xf32>
    %22 = vector.extract_strided_slice %21 {offsets = [0, 0, 0], sizes = [4, 8, 8], strides = [1, 1, 1]} : vector<12x8x8xf32> to vector<4x8x8xf32>
    %23 = vector.extract_strided_slice %21 {offsets = [4, 0, 0], sizes = [4, 8, 8], strides = [1, 1, 1]} : vector<12x8x8xf32> to vector<4x8x8xf32>
    %24 = vector.extract_strided_slice %21 {offsets = [8, 0, 0], sizes = [4, 8, 8], strides = [1, 1, 1]} : vector<12x8x8xf32> to vector<4x8x8xf32>
    %25 = arith.truncf %22 : vector<4x8x8xf32> to vector<4x8x8xbf16>
    %26 = arith.truncf %23 : vector<4x8x8xf32> to vector<4x8x8xbf16>
    "tpu.trace_start"() <{level = 10 : i32, message = "nqd,nkd->nqk"}> : () -> ()
    %cst_16 = arith.constant dense<0.000000e+00> : vector<4x8x8xf32>
    %27 = tpu.matmul %25, %26, %cst_16 {dimension_numbers = #tpu.dot_dimension_numbers<[2], [2], [1], [1], [0, 0, 0, 1, 1, 1], [0], [0]>} : vector<4x8x8xbf16>, vector<4x8x8xbf16>, vector<4x8x8xf32> -> vector<4x8x8xf32>
    "tpu.trace_stop"() : () -> ()
    %28 = vector.broadcast %2 : vector<1x1x8xf32> to vector<4x8x8xf32>
    %29 = arith.addf %27, %28 : vector<4x8x8xf32>
    %cst_17 = arith.constant dense<0xFF800000> : vector<4x8xf32>
    %30 = vector.multi_reduction <maximumf>, %29, %cst_17 [2] : vector<4x8x8xf32> to vector<4x8xf32>
    %31 = vector.shape_cast %30 : vector<4x8xf32> to vector<4x8x1xf32>
    %32 = vector.broadcast %31 : vector<4x8x1xf32> to vector<4x8x8xf32>
    %33 = arith.subf %29, %32 : vector<4x8x8xf32>
    %34 = math.exp %33 : vector<4x8x8xf32>
    %cst_18 = arith.constant dense<0.000000e+00> : vector<4x8xf32>
    %35 = vector.multi_reduction <add>, %34, %cst_18 [2] : vector<4x8x8xf32> to vector<4x8xf32>
    %36 = vector.shape_cast %35 : vector<4x8xf32> to vector<4x8x1xf32>
    %37 = vector.broadcast %36 : vector<4x8x1xf32> to vector<4x8x8xf32>
    %38 = arith.divf %34, %37 : vector<4x8x8xf32>
    %39 = arith.truncf %38 : vector<4x8x8xf32> to vector<4x8x8xbf16>
    %40 = arith.truncf %24 : vector<4x8x8xf32> to vector<4x8x8xbf16>
    "tpu.trace_start"() <{level = 10 : i32, message = "nqk,nkd->nqd"}> : () -> ()
    %cst_19 = arith.constant dense<0.000000e+00> : vector<4x8x8xf32>
    %41 = tpu.matmul %39, %40, %cst_19 {dimension_numbers = #tpu.dot_dimension_numbers<[2], [1], [1], [2], [0, 0, 0, 1, 1, 2], [0], [0]>} : vector<4x8x8xbf16>, vector<4x8x8xbf16>, vector<4x8x8xf32> -> vector<4x8x8xf32>
    "tpu.trace_stop"() : () -> ()
    %42 = arith.truncf %41 : vector<4x8x8xf32> to vector<4x8x8xbf16>
    %c0_20 = arith.constant 0 : index
    %c0_21 = arith.constant 0 : index
    %c0_22 = arith.constant 0 : index
    %c0_23 = arith.constant 0 : index
    %43 = vector.load %arg5[%c0_20, %c0_21, %c0_22, %c0_23] : memref<2x4x8x32xbf16, #tpu.memory_space<vmem>>, vector<1x4x8x32xbf16>
    %44 = vector.shape_cast %43 : vector<1x4x8x32xbf16> to vector<4x8x32xbf16>
    "tpu.trace_start"() <{level = 10 : i32, message = "nqd,ndh->nqh"}> : () -> ()
    %cst_24 = arith.constant dense<0.000000e+00> : vector<4x8x32xf32>
    %45 = tpu.matmul %42, %44, %cst_24 {dimension_numbers = #tpu.dot_dimension_numbers<[2], [1], [1], [2], [0, 0, 0, 1, 1, 2], [0], [0]>} : vector<4x8x8xbf16>, vector<4x8x32xbf16>, vector<4x8x32xf32> -> vector<4x8x32xf32>
    "tpu.trace_stop"() : () -> ()
    %cst_25 = arith.constant dense<0.000000e+00> : vector<8x32xf32>
    %46 = vector.multi_reduction <add>, %45, %cst_25 [0] : vector<4x8x32xf32> to vector<8x32xf32>
    %47 = vector.broadcast %6 : vector<1x32xf32> to vector<8x32xf32>
    %48 = arith.addf %46, %47 : vector<8x32xf32>
    %49 = arith.addf %48, %1 : vector<8x32xf32>
    %cst_26 = arith.constant dense<0.000000e+00> : vector<8xf32>
    %50 = vector.multi_reduction <add>, %49, %cst_26 [1] : vector<8x32xf32> to vector<8xf32>
    %51 = vector.shape_cast %50 : vector<8xf32> to vector<8x1xf32>
    %cst_27 = arith.constant 3.200000e+01 : f32
    %52 = vector.broadcast %cst_27 : f32 to vector<8x1xf32>
    %53 = arith.divf %51, %52 : vector<8x1xf32>
    %54 = arith.mulf %49, %49 : vector<8x32xf32>
    %cst_28 = arith.constant dense<0.000000e+00> : vector<8xf32>
    %55 = vector.multi_reduction <add>, %54, %cst_28 [1] : vector<8x32xf32> to vector<8xf32>
    %56 = vector.shape_cast %55 : vector<8xf32> to vector<8x1xf32>
    %cst_29 = arith.constant 3.200000e+01 : f32
    %57 = vector.broadcast %cst_29 : f32 to vector<8x1xf32>
    %58 = arith.divf %56, %57 : vector<8x1xf32>
    %59 = arith.mulf %53, %53 : vector<8x1xf32>
    %60 = arith.subf %58, %59 : vector<8x1xf32>
    %61 = vector.broadcast %53 : vector<8x1xf32> to vector<8x32xf32>
    %62 = arith.subf %49, %61 : vector<8x32xf32>
    %cst_30 = arith.constant 9.99999996E-13 : f32
    %63 = vector.broadcast %cst_30 : f32 to vector<8x1xf32>
    %64 = arith.addf %60, %63 : vector<8x1xf32>
    %65 = math.rsqrt %64 : vector<8x1xf32>
    %66 = vector.broadcast %65 : vector<8x1xf32> to vector<8x32xf32>
    %67 = arith.mulf %62, %66 : vector<8x32xf32>
    %68 = vector.broadcast %8 : vector<1x32xf32> to vector<8x32xf32>
    %69 = arith.mulf %67, %68 : vector<8x32xf32>
    %70 = vector.broadcast %9 : vector<1x32xf32> to vector<8x32xf32>
    %71 = arith.addf %69, %70 : vector<8x32xf32>
    %72 = arith.truncf %71 : vector<8x32xf32> to vector<8x32xbf16>
    %c0_31 = arith.constant 0 : index
    %c0_32 = arith.constant 0 : index
    %c0_33 = arith.constant 0 : index
    %73 = vector.load %arg6[%c0_31, %c0_32, %c0_33] : memref<2x32x64xbf16, #tpu.memory_space<vmem>>, vector<1x32x64xbf16>
    %74 = vector.shape_cast %73 : vector<1x32x64xbf16> to vector<32x64xbf16>
    %cst_34 = arith.constant dense<0.000000e+00> : vector<8x64xf32>
    %75 = tpu.matmul %72, %74, %cst_34 {dimension_numbers = #tpu.dot_dimension_numbers<[1], [0], [0], [1], [0, 0, 1, 1], [], []>} : vector<8x32xbf16>, vector<32x64xbf16>, vector<8x64xf32> -> vector<8x64xf32>
    %76 = vector.broadcast %5 : vector<1x64xf32> to vector<8x64xf32>
    %77 = arith.addf %75, %76 : vector<8x64xf32>
    %cst_35 = arith.constant 5.000000e-01 : f32
    %78 = vector.broadcast %cst_35 : f32 to vector<8x64xf32>
    %79 = arith.mulf %78, %77 : vector<8x64xf32>
    %cst_36 = arith.constant 0.707106769 : f32
    %80 = vector.broadcast %cst_36 : f32 to vector<8x64xf32>
    %81 = arith.mulf %77, %80 : vector<8x64xf32>
    %82 = math.erf %81 : vector<8x64xf32>
    %cst_37 = arith.constant 1.000000e+00 : f32
    %83 = vector.broadcast %cst_37 : f32 to vector<8x64xf32>
    %84 = arith.addf %83, %82 : vector<8x64xf32>
    %85 = arith.mulf %79, %84 : vector<8x64xf32>
    %86 = arith.truncf %85 : vector<8x64xf32> to vector<8x64xbf16>
    %c0_38 = arith.constant 0 : index
    %c0_39 = arith.constant 0 : index
    %c0_40 = arith.constant 0 : index
    %87 = vector.load %arg7[%c0_38, %c0_39, %c0_40] : memref<2x64x32xbf16, #tpu.memory_space<vmem>>, vector<1x64x32xbf16>
    %88 = vector.shape_cast %87 : vector<1x64x32xbf16> to vector<64x32xbf16>
    %cst_41 = arith.constant dense<0.000000e+00> : vector<8x32xf32>
    %89 = tpu.matmul %86, %88, %cst_41 {dimension_numbers = #tpu.dot_dimension_numbers<[1], [0], [0], [1], [0, 0, 1, 1], [], []>} : vector<8x64xbf16>, vector<64x32xbf16>, vector<8x32xf32> -> vector<8x32xf32>
    %90 = vector.broadcast %7 : vector<1x32xf32> to vector<8x32xf32>
    %91 = arith.addf %89, %90 : vector<8x32xf32>
    %92 = arith.addf %91, %71 : vector<8x32xf32>
    %cst_42 = arith.constant dense<0.000000e+00> : vector<8xf32>
    %93 = vector.multi_reduction <add>, %92, %cst_42 [1] : vector<8x32xf32> to vector<8xf32>
    %94 = vector.shape_cast %93 : vector<8xf32> to vector<8x1xf32>
    %cst_43 = arith.constant 3.200000e+01 : f32
    %95 = vector.broadcast %cst_43 : f32 to vector<8x1xf32>
    %96 = arith.divf %94, %95 : vector<8x1xf32>
    %97 = arith.mulf %92, %92 : vector<8x32xf32>
    %cst_44 = arith.constant dense<0.000000e+00> : vector<8xf32>
    %98 = vector.multi_reduction <add>, %97, %cst_44 [1] : vector<8x32xf32> to vector<8xf32>
    %99 = vector.shape_cast %98 : vector<8xf32> to vector<8x1xf32>
    %cst_45 = arith.constant 3.200000e+01 : f32
    %100 = vector.broadcast %cst_45 : f32 to vector<8x1xf32>
    %101 = arith.divf %99, %100 : vector<8x1xf32>
    %102 = arith.mulf %96, %96 : vector<8x1xf32>
    %103 = arith.subf %101, %102 : vector<8x1xf32>
    %104 = vector.broadcast %96 : vector<8x1xf32> to vector<8x32xf32>
    %105 = arith.subf %92, %104 : vector<8x32xf32>
    %cst_46 = arith.constant 9.99999996E-13 : f32
    %106 = vector.broadcast %cst_46 : f32 to vector<8x1xf32>
    %107 = arith.addf %103, %106 : vector<8x1xf32>
    %108 = math.rsqrt %107 : vector<8x1xf32>
    %109 = vector.broadcast %108 : vector<8x1xf32> to vector<8x32xf32>
    %110 = arith.mulf %105, %109 : vector<8x32xf32>
    %111 = vector.broadcast %10 : vector<1x32xf32> to vector<8x32xf32>
    %112 = arith.mulf %110, %111 : vector<8x32xf32>
    %113 = vector.broadcast %11 : vector<1x32xf32> to vector<8x32xf32>
    %114 = arith.addf %112, %113 : vector<8x32xf32>
    %c1 = arith.constant 1 : index
    %c0_47 = arith.constant 0 : index
    %c0_48 = arith.constant 0 : index
    %115 = vector.load %arg8[%c1, %c0_47, %c0_48] : memref<2x8x128xf32, #tpu.memory_space<vmem>>, vector<1x8x128xf32>
    %116 = vector.shape_cast %115 : vector<1x8x128xf32> to vector<8x128xf32>
    %117 = vector.extract_strided_slice %116 {offsets = [0, 0], sizes = [1, 64], strides = [1, 1]} : vector<8x128xf32> to vector<1x64xf32>
    %118 = vector.extract_strided_slice %116 {offsets = [1, 0], sizes = [1, 32], strides = [1, 1]} : vector<8x128xf32> to vector<1x32xf32>
    %119 = vector.extract_strided_slice %116 {offsets = [2, 0], sizes = [1, 32], strides = [1, 1]} : vector<8x128xf32> to vector<1x32xf32>
    %120 = vector.extract_strided_slice %116 {offsets = [3, 0], sizes = [1, 32], strides = [1, 1]} : vector<8x128xf32> to vector<1x32xf32>
    %121 = vector.extract_strided_slice %116 {offsets = [4, 0], sizes = [1, 32], strides = [1, 1]} : vector<8x128xf32> to vector<1x32xf32>
    %122 = vector.extract_strided_slice %116 {offsets = [5, 0], sizes = [1, 32], strides = [1, 1]} : vector<8x128xf32> to vector<1x32xf32>
    %123 = vector.extract_strided_slice %116 {offsets = [6, 0], sizes = [1, 32], strides = [1, 1]} : vector<8x128xf32> to vector<1x32xf32>
    %124 = arith.truncf %114 : vector<8x32xf32> to vector<8x32xbf16>
    %125 = vector.shape_cast %124 : vector<8x32xbf16> to vector<1x8x32xbf16>
    %126 = vector.broadcast %125 : vector<1x8x32xbf16> to vector<12x8x32xbf16>
    %c1_49 = arith.constant 1 : index
    %c0_50 = arith.constant 0 : index
    %c0_51 = arith.constant 0 : index
    %c0_52 = arith.constant 0 : index
    %127 = vector.load %arg3[%c1_49, %c0_50, %c0_51, %c0_52] : memref<2x12x32x8xbf16, #tpu.memory_space<vmem>>, vector<1x12x32x8xbf16>
    %128 = vector.shape_cast %127 : vector<1x12x32x8xbf16> to vector<12x32x8xbf16>
    "tpu.trace_start"() <{level = 10 : i32, message = "nsh,nhd->nsd"}> : () -> ()
    %cst_53 = arith.constant dense<0.000000e+00> : vector<12x8x8xf32>
    %129 = tpu.matmul %126, %128, %cst_53 {dimension_numbers = #tpu.dot_dimension_numbers<[2], [1], [1], [2], [0, 0, 0, 1, 1, 2], [0], [0]>} : vector<12x8x32xbf16>, vector<12x32x8xbf16>, vector<12x8x8xf32> -> vector<12x8x8xf32>
    "tpu.trace_stop"() : () -> ()
    %c1_54 = arith.constant 1 : index
    %c0_55 = arith.constant 0 : index
    %c0_56 = arith.constant 0 : index
    %c0_57 = arith.constant 0 : index
    %130 = vector.load %arg4[%c1_54, %c0_55, %c0_56, %c0_57] : memref<2x12x1x8xf32, #tpu.memory_space<vmem>>, vector<1x12x1x8xf32>
    %131 = vector.shape_cast %130 : vector<1x12x1x8xf32> to vector<12x1x8xf32>
    %132 = vector.broadcast %131 : vector<12x1x8xf32> to vector<12x8x8xf32>
    %133 = arith.addf %129, %132 : vector<12x8x8xf32>
    %134 = vector.extract_strided_slice %133 {offsets = [0, 0, 0], sizes = [4, 8, 8], strides = [1, 1, 1]} : vector<12x8x8xf32> to vector<4x8x8xf32>
    %135 = vector.extract_strided_slice %133 {offsets = [4, 0, 0], sizes = [4, 8, 8], strides = [1, 1, 1]} : vector<12x8x8xf32> to vector<4x8x8xf32>
    %136 = vector.extract_strided_slice %133 {offsets = [8, 0, 0], sizes = [4, 8, 8], strides = [1, 1, 1]} : vector<12x8x8xf32> to vector<4x8x8xf32>
    %137 = arith.truncf %134 : vector<4x8x8xf32> to vector<4x8x8xbf16>
    %138 = arith.truncf %135 : vector<4x8x8xf32> to vector<4x8x8xbf16>
    "tpu.trace_start"() <{level = 10 : i32, message = "nqd,nkd->nqk"}> : () -> ()
    %cst_58 = arith.constant dense<0.000000e+00> : vector<4x8x8xf32>
    %139 = tpu.matmul %137, %138, %cst_58 {dimension_numbers = #tpu.dot_dimension_numbers<[2], [2], [1], [1], [0, 0, 0, 1, 1, 1], [0], [0]>} : vector<4x8x8xbf16>, vector<4x8x8xbf16>, vector<4x8x8xf32> -> vector<4x8x8xf32>
    "tpu.trace_stop"() : () -> ()
    %140 = vector.broadcast %2 : vector<1x1x8xf32> to vector<4x8x8xf32>
    %141 = arith.addf %139, %140 : vector<4x8x8xf32>
    %cst_59 = arith.constant dense<0xFF800000> : vector<4x8xf32>
    %142 = vector.multi_reduction <maximumf>, %141, %cst_59 [2] : vector<4x8x8xf32> to vector<4x8xf32>
    %143 = vector.shape_cast %142 : vector<4x8xf32> to vector<4x8x1xf32>
    %144 = vector.broadcast %143 : vector<4x8x1xf32> to vector<4x8x8xf32>
    %145 = arith.subf %141, %144 : vector<4x8x8xf32>
    %146 = math.exp %145 : vector<4x8x8xf32>
    %cst_60 = arith.constant dense<0.000000e+00> : vector<4x8xf32>
    %147 = vector.multi_reduction <add>, %146, %cst_60 [2] : vector<4x8x8xf32> to vector<4x8xf32>
    %148 = vector.shape_cast %147 : vector<4x8xf32> to vector<4x8x1xf32>
    %149 = vector.broadcast %148 : vector<4x8x1xf32> to vector<4x8x8xf32>
    %150 = arith.divf %146, %149 : vector<4x8x8xf32>
    %151 = arith.truncf %150 : vector<4x8x8xf32> to vector<4x8x8xbf16>
    %152 = arith.truncf %136 : vector<4x8x8xf32> to vector<4x8x8xbf16>
    "tpu.trace_start"() <{level = 10 : i32, message = "nqk,nkd->nqd"}> : () -> ()
    %cst_61 = arith.constant dense<0.000000e+00> : vector<4x8x8xf32>
    %153 = tpu.matmul %151, %152, %cst_61 {dimension_numbers = #tpu.dot_dimension_numbers<[2], [1], [1], [2], [0, 0, 0, 1, 1, 2], [0], [0]>} : vector<4x8x8xbf16>, vector<4x8x8xbf16>, vector<4x8x8xf32> -> vector<4x8x8xf32>
    "tpu.trace_stop"() : () -> ()
    %154 = arith.truncf %153 : vector<4x8x8xf32> to vector<4x8x8xbf16>
    %c1_62 = arith.constant 1 : index
    %c0_63 = arith.constant 0 : index
    %c0_64 = arith.constant 0 : index
    %c0_65 = arith.constant 0 : index
    %155 = vector.load %arg5[%c1_62, %c0_63, %c0_64, %c0_65] : memref<2x4x8x32xbf16, #tpu.memory_space<vmem>>, vector<1x4x8x32xbf16>
    %156 = vector.shape_cast %155 : vector<1x4x8x32xbf16> to vector<4x8x32xbf16>
    "tpu.trace_start"() <{level = 10 : i32, message = "nqd,ndh->nqh"}> : () -> ()
    %cst_66 = arith.constant dense<0.000000e+00> : vector<4x8x32xf32>
    %157 = tpu.matmul %154, %156, %cst_66 {dimension_numbers = #tpu.dot_dimension_numbers<[2], [1], [1], [2], [0, 0, 0, 1, 1, 2], [0], [0]>} : vector<4x8x8xbf16>, vector<4x8x32xbf16>, vector<4x8x32xf32> -> vector<4x8x32xf32>
    "tpu.trace_stop"() : () -> ()
    %cst_67 = arith.constant dense<0.000000e+00> : vector<8x32xf32>
    %158 = vector.multi_reduction <add>, %157, %cst_67 [0] : vector<4x8x32xf32> to vector<8x32xf32>
    %159 = vector.broadcast %118 : vector<1x32xf32> to vector<8x32xf32>
    %160 = arith.addf %158, %159 : vector<8x32xf32>
    %161 = arith.addf %160, %114 : vector<8x32xf32>
    %cst_68 = arith.constant dense<0.000000e+00> : vector<8xf32>
    %162 = vector.multi_reduction <add>, %161, %cst_68 [1] : vector<8x32xf32> to vector<8xf32>
    %163 = vector.shape_cast %162 : vector<8xf32> to vector<8x1xf32>
    %cst_69 = arith.constant 3.200000e+01 : f32
    %164 = vector.broadcast %cst_69 : f32 to vector<8x1xf32>
    %165 = arith.divf %163, %164 : vector<8x1xf32>
    %166 = arith.mulf %161, %161 : vector<8x32xf32>
    %cst_70 = arith.constant dense<0.000000e+00> : vector<8xf32>
    %167 = vector.multi_reduction <add>, %166, %cst_70 [1] : vector<8x32xf32> to vector<8xf32>
    %168 = vector.shape_cast %167 : vector<8xf32> to vector<8x1xf32>
    %cst_71 = arith.constant 3.200000e+01 : f32
    %169 = vector.broadcast %cst_71 : f32 to vector<8x1xf32>
    %170 = arith.divf %168, %169 : vector<8x1xf32>
    %171 = arith.mulf %165, %165 : vector<8x1xf32>
    %172 = arith.subf %170, %171 : vector<8x1xf32>
    %173 = vector.broadcast %165 : vector<8x1xf32> to vector<8x32xf32>
    %174 = arith.subf %161, %173 : vector<8x32xf32>
    %cst_72 = arith.constant 9.99999996E-13 : f32
    %175 = vector.broadcast %cst_72 : f32 to vector<8x1xf32>
    %176 = arith.addf %172, %175 : vector<8x1xf32>
    %177 = math.rsqrt %176 : vector<8x1xf32>
    %178 = vector.broadcast %177 : vector<8x1xf32> to vector<8x32xf32>
    %179 = arith.mulf %174, %178 : vector<8x32xf32>
    %180 = vector.broadcast %120 : vector<1x32xf32> to vector<8x32xf32>
    %181 = arith.mulf %179, %180 : vector<8x32xf32>
    %182 = vector.broadcast %121 : vector<1x32xf32> to vector<8x32xf32>
    %183 = arith.addf %181, %182 : vector<8x32xf32>
    %184 = arith.truncf %183 : vector<8x32xf32> to vector<8x32xbf16>
    %c1_73 = arith.constant 1 : index
    %c0_74 = arith.constant 0 : index
    %c0_75 = arith.constant 0 : index
    %185 = vector.load %arg6[%c1_73, %c0_74, %c0_75] : memref<2x32x64xbf16, #tpu.memory_space<vmem>>, vector<1x32x64xbf16>
    %186 = vector.shape_cast %185 : vector<1x32x64xbf16> to vector<32x64xbf16>
    %cst_76 = arith.constant dense<0.000000e+00> : vector<8x64xf32>
    %187 = tpu.matmul %184, %186, %cst_76 {dimension_numbers = #tpu.dot_dimension_numbers<[1], [0], [0], [1], [0, 0, 1, 1], [], []>} : vector<8x32xbf16>, vector<32x64xbf16>, vector<8x64xf32> -> vector<8x64xf32>
    %188 = vector.broadcast %117 : vector<1x64xf32> to vector<8x64xf32>
    %189 = arith.addf %187, %188 : vector<8x64xf32>
    %cst_77 = arith.constant 5.000000e-01 : f32
    %190 = vector.broadcast %cst_77 : f32 to vector<8x64xf32>
    %191 = arith.mulf %190, %189 : vector<8x64xf32>
    %cst_78 = arith.constant 0.707106769 : f32
    %192 = vector.broadcast %cst_78 : f32 to vector<8x64xf32>
    %193 = arith.mulf %189, %192 : vector<8x64xf32>
    %194 = math.erf %193 : vector<8x64xf32>
    %cst_79 = arith.constant 1.000000e+00 : f32
    %195 = vector.broadcast %cst_79 : f32 to vector<8x64xf32>
    %196 = arith.addf %195, %194 : vector<8x64xf32>
    %197 = arith.mulf %191, %196 : vector<8x64xf32>
    %198 = arith.truncf %197 : vector<8x64xf32> to vector<8x64xbf16>
    %c1_80 = arith.constant 1 : index
    %c0_81 = arith.constant 0 : index
    %c0_82 = arith.constant 0 : index
    %199 = vector.load %arg7[%c1_80, %c0_81, %c0_82] : memref<2x64x32xbf16, #tpu.memory_space<vmem>>, vector<1x64x32xbf16>
    %200 = vector.shape_cast %199 : vector<1x64x32xbf16> to vector<64x32xbf16>
    %cst_83 = arith.constant dense<0.000000e+00> : vector<8x32xf32>
    %201 = tpu.matmul %198, %200, %cst_83 {dimension_numbers = #tpu.dot_dimension_numbers<[1], [0], [0], [1], [0, 0, 1, 1], [], []>} : vector<8x64xbf16>, vector<64x32xbf16>, vector<8x32xf32> -> vector<8x32xf32>
    %202 = vector.broadcast %119 : vector<1x32xf32> to vector<8x32xf32>
    %203 = arith.addf %201, %202 : vector<8x32xf32>
    %204 = arith.addf %203, %183 : vector<8x32xf32>
    %cst_84 = arith.constant dense<0.000000e+00> : vector<8xf32>
    %205 = vector.multi_reduction <add>, %204, %cst_84 [1] : vector<8x32xf32> to vector<8xf32>
    %206 = vector.shape_cast %205 : vector<8xf32> to vector<8x1xf32>
    %cst_85 = arith.constant 3.200000e+01 : f32
    %207 = vector.broadcast %cst_85 : f32 to vector<8x1xf32>
    %208 = arith.divf %206, %207 : vector<8x1xf32>
    %209 = arith.mulf %204, %204 : vector<8x32xf32>
    %cst_86 = arith.constant dense<0.000000e+00> : vector<8xf32>
    %210 = vector.multi_reduction <add>, %209, %cst_86 [1] : vector<8x32xf32> to vector<8xf32>
    %211 = vector.shape_cast %210 : vector<8xf32> to vector<8x1xf32>
    %cst_87 = arith.constant 3.200000e+01 : f32
    %212 = vector.broadcast %cst_87 : f32 to vector<8x1xf32>
    %213 = arith.divf %211, %212 : vector<8x1xf32>
    %214 = arith.mulf %208, %208 : vector<8x1xf32>
    %215 = arith.subf %213, %214 : vector<8x1xf32>
    %216 = vector.broadcast %208 : vector<8x1xf32> to vector<8x32xf32>
    %217 = arith.subf %204, %216 : vector<8x32xf32>
    %cst_88 = arith.constant 9.99999996E-13 : f32
    %218 = vector.broadcast %cst_88 : f32 to vector<8x1xf32>
    %219 = arith.addf %215, %218 : vector<8x1xf32>
    %220 = math.rsqrt %219 : vector<8x1xf32>
    %221 = vector.broadcast %220 : vector<8x1xf32> to vector<8x32xf32>
    %222 = arith.mulf %217, %221 : vector<8x32xf32>
    %223 = vector.broadcast %122 : vector<1x32xf32> to vector<8x32xf32>
    %224 = arith.mulf %222, %223 : vector<8x32xf32>
    %225 = vector.broadcast %123 : vector<1x32xf32> to vector<8x32xf32>
    %226 = arith.addf %224, %225 : vector<8x32xf32>
    %227 = vector.shape_cast %226 : vector<8x32xf32> to vector<1x8x32xf32>
    %c0_89 = arith.constant 0 : index
    %c0_90 = arith.constant 0 : index
    %c0_91 = arith.constant 0 : index
    %228 = vector.load %arg9[%c0_89, %c0_90, %c0_91] : memref<1x8x32xf32, #tpu.memory_space<vmem>>, vector<1x8x32xf32>
    tpu.vector_store %arg9[%c0_89, %c0_90, %c0_91], %227 {strides = array<i32>} : memref<1x8x32xf32, #tpu.memory_space<vmem>>, vector<1x8x32xf32>,
    return
  }
  func.func @transform_0(%arg0: i32) -> (i32, i32, i32) {
    %c0_i32 = arith.constant 0 : i32
    %c0_i32_0 = arith.constant 0 : i32
    %c0_i32_1 = arith.constant 0 : i32
    return %arg0, %c0_i32, %c0_i32_0 : i32, i32, i32
  }
  func.func @transform_1(%arg0: i32) -> (i32, i32, i32) {
    %c0_i32 = arith.constant 0 : i32
    %c0_i32_0 = arith.constant 0 : i32
    %c0_i32_1 = arith.constant 0 : i32
    return %arg0, %c0_i32, %c0_i32_0 : i32, i32, i32
  }
  func.func @transform_2(%arg0: i32) -> (i32, i32, i32, i32) {
    %c0_i32 = arith.constant 0 : i32
    %c0_i32_0 = arith.constant 0 : i32
    %c0_i32_1 = arith.constant 0 : i32
    %c0_i32_2 = arith.constant 0 : i32
    %c0_i32_3 = arith.constant 0 : i32
    return %c0_i32, %c0_i32_0, %c0_i32_1, %c0_i32_2 : i32, i32, i32, i32
  }
  func.func @transform_3(%arg0: i32) -> (i32, i32, i32, i32) {
    %c0_i32 = arith.constant 0 : i32
    %c0_i32_0 = arith.constant 0 : i32
    %c0_i32_1 = arith.constant 0 : i32
    %c0_i32_2 = arith.constant 0 : i32
    %c0_i32_3 = arith.constant 0 : i32
    return %c0_i32, %c0_i32_0, %c0_i32_1, %c0_i32_2 : i32, i32, i32, i32
  }
  func.func @transform_4(%arg0: i32) -> (i32, i32, i32, i32) {
    %c0_i32 = arith.constant 0 : i32
    %c0_i32_0 = arith.constant 0 : i32
    %c0_i32_1 = arith.constant 0 : i32
    %c0_i32_2 = arith.constant 0 : i32
    %c0_i32_3 = arith.constant 0 : i32
    return %c0_i32, %c0_i32_0, %c0_i32_1, %c0_i32_2 : i32, i32, i32, i32
  }
  func.func @transform_5(%arg0: i32) -> (i32, i32, i32) {
    %c0_i32 = arith.constant 0 : i32
    %c0_i32_0 = arith.constant 0 : i32
    %c0_i32_1 = arith.constant 0 : i32
    %c0_i32_2 = arith.constant 0 : i32
    return %c0_i32, %c0_i32_0, %c0_i32_1 : i32, i32, i32
  }
  func.func @transform_6(%arg0: i32) -> (i32, i32, i32) {
    %c0_i32 = arith.constant 0 : i32
    %c0_i32_0 = arith.constant 0 : i32
    %c0_i32_1 = arith.constant 0 : i32
    %c0_i32_2 = arith.constant 0 : i32
    return %c0_i32, %c0_i32_0, %c0_i32_1 : i32, i32, i32
  }
  func.func @transform_7(%arg0: i32) -> (i32, i32, i32) {
    %c0_i32 = arith.constant 0 : i32
    %c0_i32_0 = arith.constant 0 : i32
    %c0_i32_1 = arith.constant 0 : i32
    %c0_i32_2 = arith.constant 0 : i32
    return %c0_i32, %c0_i32_0, %c0_i32_1 : i32, i32, i32
  }
  func.func @transform_8(%arg0: i32) -> (i32, i32, i32) {
    %c0_i32 = arith.constant 0 : i32
    %c0_i32_0 = arith.constant 0 : i32
    %c0_i32_1 = arith.constant 0 : i32
    return %arg0, %c0_i32, %c0_i32_0 : i32, i32, i32
  }
}

</mosaic_0001>

<llo_original>
// kernel: bert_encoder_call.1
$region0: #{bert_encoder_call.1}
  #allocation0 [shape = 'u32[]', space=smem, size = 0x4, offset = 0x4, fixed_abs, tag = 'smem constant byte address 0x4 - core index']
  #allocation1 [shape = 'u32[144,128]{1,0:T(1,128)}', space=vmem, size = 0x12000, scoped, tag = 'internal scratch']
  %s0 = inlined_call_operand.vmem [shape: f32[2,8,32], index: 0, kind: input, shape index: {}]
  %s1 = inlined_call_operand.vmem [shape: f32[2,1,8], index: 1, kind: input, shape index: {}]
  %s2 = inlined_call_operand.vmem [shape: bf16[2,12,32,8], index: 2, kind: input, shape index: {}]
  %s3 = inlined_call_operand.vmem [shape: f32[2,12,1,8], index: 3, kind: input, shape index: {}]
  %s4 = inlined_call_operand.vmem [shape: bf16[2,4,8,32], index: 4, kind: input, shape index: {}]
  %s5 = inlined_call_operand.vmem [shape: bf16[2,32,64], index: 5, kind: input, shape index: {}]
  %s6 = inlined_call_operand.vmem [shape: bf16[2,64,32], index: 6, kind: input, shape index: {}]
  %s7 = inlined_call_operand.vmem [shape: f32[2,8,128], index: 7, kind: input, shape index: {}]
  %s8 = inlined_call_operand.hbm [shape: f32[2,8,32], index: 8, kind: output, shape index: {}]
  %s9 = sld [smem:[#allocation0]]
  $region65: #{bert_encoder_call.1} parent=0
    _
  %s11 = ssub.s32 1, %s9
  %s12 = scalar_select 0, %s11, %s9
  $region1: #{bert_encoder_call.1} parent=0
    #allocation2 [shape = 'u8[8192]{0}', space=vmem, size = 0x2000, scoped, tag = 'output window, operand 0']
    #allocation3 [shape = 's32[2]{0}', space=sflag, size = 0x8, scoped, tag = 'scoped memory for bert_encoder_call.1']
    %13 = vsyncpa [#allocation3], 0
    %s14 = scalar_lea.sflag [#allocation3], 1
    %15 = vsyncpa %s14, 0
    loop: start=0, step=1, limit=4
    $region2: #{bert_encoder_call.1} parent=1 // loop_pre_header
      _
    $region3: #{bert_encoder_call.1} parent=1 // loop_header
      %s17 = sphi 0, %s21
      %p18 = scmp.ge.s32.totalorder %s17, 4
      %s27 = sphi 0, %s29
      %s30 = sphi 0, %s27
      %s31 = sphi 0, %s30
      %s47 = sphi 0, %s31
      %s53 = sphi 0, %s55
      %s56 = sphi 0, %s53
      %s57 = sphi 0, %s56
      %s73 = sphi 0, %s57
      %s77 = sphi 0, %s77
      %s79 = sphi 0, %s77
      %s80 = sphi 0, %s79
      %s94 = sphi 0, %s80
      %s98 = sphi 0, %s98
      %s100 = sphi 0, %s98
      %s101 = sphi 0, %s100
      %s115 = sphi 0, %s101
      %s119 = sphi 0, %s119
      %s121 = sphi 0, %s119
      %s122 = sphi 0, %s121
      %s136 = sphi 0, %s122
      %s140 = sphi 0, %s140
      %s142 = sphi 0, %s140
      %s143 = sphi 0, %s142
      %s157 = sphi 0, %s143
      %s161 = sphi 0, %s161
      %s163 = sphi 0, %s161
      %s164 = sphi 0, %s163
      %s178 = sphi 0, %s164
      %s182 = sphi 0, %s182
      %s184 = sphi 0, %s182
      %s185 = sphi 0, %s184
      %s199 = sphi 0, %s185
      %s205 = sphi 0, %s207
      %s208 = sphi 0, %s205
      %s209 = sphi 0, %s208
      %s225 = sphi 0, %s209
    $region4: #{bert_encoder_call.1} parent=1 // loop_header_branch
      %20 = sbr.rel (%p18) target = $region8
    $region5: #{bert_encoder_call.1} parent=1 // loop_body
      %s22 = ssub.s32 %s17, 1
      %s23 = ssub.s32 %s17, 2
      %s24 = sadd.s32 %s17, 1
      %s25 = ssub.s32 %s17, %s24
      %p26 = scmp.eq.s32.totalorder %s25, 0
      %s28 = sadd.s32 %s27, 1
      %s29 = scalar_select %p26, %s27, %s28
      %p32 = pneg %p26
      %p33 = scmp.eq.s32.totalorder %s17, 1
      %p34 = por %p32, %p33
      %p35 = scmp.ne.s32.totalorder %s27, %s30
      %p36 = scmp.eq.s32.totalorder %s17, 0
      %p37 = por %p35, %p36
      %p38 = scmp.ne.s32.totalorder %s27, %s30
      %p39 = scmp.eq.s32.totalorder %s22, 1
      %p40 = por %p38, %p39
      %p41 = scmp.ne.s32.totalorder %s30, %s31
      %p42 = scmp.eq.s32.totalorder %s22, 0
      %p43 = por %p41, %p42
      %p44 = scmp.ne.s32.totalorder %s30, %s31
      %p45 = scmp.eq.s32.totalorder %s23, 1
      %p46 = por %p44, %p45
      %p48 = scmp.ne.s32.totalorder %s31, %s47
      %p49 = scmp.eq.s32.totalorder %s23, 0
      %p50 = por %p48, %p49
      %s51 = ssub.s32 %s17, %s24
      %p52 = scmp.eq.s32.totalorder %s51, 0
      %s54 = sadd.s32 %s53, 1
      %s55 = scalar_select %p52, %s53, %s54
      %p58 = pneg %p52
      %p59 = scmp.eq.s32.totalorder %s17, 1
      %p60 = por %p58, %p59
      %p61 = scmp.ne.s32.totalorder %s53, %s56
      %p62 = scmp.eq.s32.totalorder %s17, 0
      %p63 = por %p61, %p62
      %p64 = scmp.ne.s32.totalorder %s53, %s56
      %p65 = scmp.eq.s32.totalorder %s22, 1
      %p66 = por %p64, %p65
      %p67 = scmp.ne.s32.totalorder %s56, %s57
      %p68 = scmp.eq.s32.totalorder %s22, 0
      %p69 = por %p67, %p68
      %p70 = scmp.ne.s32.totalorder %s56, %s57
      %p71 = scmp.eq.s32.totalorder %s23, 1
      %p72 = por %p70, %p71
      %p74 = scmp.ne.s32.totalorder %s57, %s73
      %p75 = scmp.eq.s32.totalorder %s23, 0
      %p76 = por %p74, %p75
      %s78 = sadd.s32 %s77, 1
      %p81 = scmp.eq.s32.totalorder %s17, 1
      %p82 = scmp.ne.s32.totalorder %s77, %s79
      %p83 = scmp.eq.s32.totalorder %s17, 0
      %p84 = por %p82, %p83
      %p85 = scmp.ne.s32.totalorder %s77, %s79
      %p86 = scmp.eq.s32.totalorder %s22, 1
      %p87 = por %p85, %p86
      %p88 = scmp.ne.s32.totalorder %s79, %s80
      %p89 = scmp.eq.s32.totalorder %s22, 0
      %p90 = por %p88, %p89
      %p91 = scmp.ne.s32.totalorder %s79, %s80
      %p92 = scmp.eq.s32.totalorder %s23, 1
      %p93 = por %p91, %p92
      %p95 = scmp.ne.s32.totalorder %s80, %s94
      %p96 = scmp.eq.s32.totalorder %s23, 0
      %p97 = por %p95, %p96
      %s99 = sadd.s32 %s98, 1
      %p102 = scmp.eq.s32.totalorder %s17, 1
      %p103 = scmp.ne.s32.totalorder %s98, %s100
      %p104 = scmp.eq.s32.totalorder %s17, 0
      %p105 = por %p103, %p104
      %p106 = scmp.ne.s32.totalorder %s98, %s100
      %p107 = scmp.eq.s32.totalorder %s22, 1
      %p108 = por %p106, %p107
      %p109 = scmp.ne.s32.totalorder %s100, %s101
      %p110 = scmp.eq.s32.totalorder %s22, 0
      %p111 = por %p109, %p110
      %p112 = scmp.ne.s32.totalorder %s100, %s101
      %p113 = scmp.eq.s32.totalorder %s23, 1
      %p114 = por %p112, %p113
      %p116 = scmp.ne.s32.totalorder %s101, %s115
      %p117 = scmp.eq.s32.totalorder %s23, 0
      %p118 = por %p116, %p117
      %s120 = sadd.s32 %s119, 1
      %p123 = scmp.eq.s32.totalorder %s17, 1
      %p124 = scmp.ne.s32.totalorder %s119, %s121
      %p125 = scmp.eq.s32.totalorder %s17, 0
      %p126 = por %p124, %p125
      %p127 = scmp.ne.s32.totalorder %s119, %s121
      %p128 = scmp.eq.s32.totalorder %s22, 1
      %p129 = por %p127, %p128
      %p130 = scmp.ne.s32.totalorder %s121, %s122
      %p131 = scmp.eq.s32.totalorder %s22, 0
      %p132 = por %p130, %p131
      %p133 = scmp.ne.s32.totalorder %s121, %s122
      %p134 = scmp.eq.s32.totalorder %s23, 1
      %p135 = por %p133, %p134
      %p137 = scmp.ne.s32.totalorder %s122, %s136
      %p138 = scmp.eq.s32.totalorder %s23, 0
      %p139 = por %p137, %p138
      %s141 = sadd.s32 %s140, 1
      %p144 = scmp.eq.s32.totalorder %s17, 1
      %p145 = scmp.ne.s32.totalorder %s140, %s142
      %p146 = scmp.eq.s32.totalorder %s17, 0
      %p147 = por %p145, %p146
      %p148 = scmp.ne.s32.totalorder %s140, %s142
      %p149 = scmp.eq.s32.totalorder %s22, 1
      %p150 = por %p148, %p149
      %p151 = scmp.ne.s32.totalorder %s142, %s143
      %p152 = scmp.eq.s32.totalorder %s22, 0
      %p153 = por %p151, %p152
      %p154 = scmp.ne.s32.totalorder %s142, %s143
      %p155 = scmp.eq.s32.totalorder %s23, 1
      %p156 = por %p154, %p155
      %p158 = scmp.ne.s32.totalorder %s143, %s157
      %p159 = scmp.eq.s32.totalorder %s23, 0
      %p160 = por %p158, %p159
      %s162 = sadd.s32 %s161, 1
      %p165 = scmp.eq.s32.totalorder %s17, 1
      %p166 = scmp.ne.s32.totalorder %s161, %s163
      %p167 = scmp.eq.s32.totalorder %s17, 0
      %p168 = por %p166, %p167
      %p169 = scmp.ne.s32.totalorder %s161, %s163
      %p170 = scmp.eq.s32.totalorder %s22, 1
      %p171 = por %p169, %p170
      %p172 = scmp.ne.s32.totalorder %s163, %s164
      %p173 = scmp.eq.s32.totalorder %s22, 0
      %p174 = por %p172, %p173
      %p175 = scmp.ne.s32.totalorder %s163, %s164
      %p176 = scmp.eq.s32.totalorder %s23, 1
      %p177 = por %p175, %p176
      %p179 = scmp.ne.s32.totalorder %s164, %s178
      %p180 = scmp.eq.s32.totalorder %s23, 0
      %p181 = por %p179, %p180
      %s183 = sadd.s32 %s182, 1
      %p186 = scmp.eq.s32.totalorder %s17, 1
      %p187 = scmp.ne.s32.totalorder %s182, %s184
      %p188 = scmp.eq.s32.totalorder %s17, 0
      %p189 = por %p187, %p188
      %p190 = scmp.ne.s32.totalorder %s182, %s184
      %p191 = scmp.eq.s32.totalorder %s22, 1
      %p192 = por %p190, %p191
      %p193 = scmp.ne.s32.totalorder %s184, %s185
      %p194 = scmp.eq.s32.totalorder %s22, 0
      %p195 = por %p193, %p194
      %p196 = scmp.ne.s32.totalorder %s184, %s185
      %p197 = scmp.eq.s32.totalorder %s23, 1
      %p198 = por %p196, %p197
      %p200 = scmp.ne.s32.totalorder %s185, %s199
      %p201 = scmp.eq.s32.totalorder %s23, 0
      %p202 = por %p200, %p201
      %s203 = ssub.s32 %s17, %s24
      %p204 = scmp.eq.s32.totalorder %s203, 0
      %s206 = sadd.s32 %s205, 1
      %s207 = scalar_select %p204, %s205, %s206
      %p210 = pneg %p204
      %p211 = scmp.eq.s32.totalorder %s17, 1
      %p212 = por %p210, %p211
      %p213 = scmp.ne.s32.totalorder %s205, %s208
      %p214 = scmp.eq.s32.totalorder %s17, 0
      %p215 = por %p213, %p214
      %p216 = scmp.ne.s32.totalorder %s205, %s208
      %p217 = scmp.eq.s32.totalorder %s22, 1
      %p218 = por %p216, %p217
      %p219 = scmp.ne.s32.totalorder %s208, %s209
      %p220 = scmp.eq.s32.totalorder %s22, 0
      %p221 = por %p219, %p220
      %p222 = scmp.ne.s32.totalorder %s208, %s209
      %p223 = scmp.eq.s32.totalorder %s23, 1
      %p224 = por %p222, %p223
      %p226 = scmp.ne.s32.totalorder %s209, %s225
      %p227 = scmp.eq.s32.totalorder %s23, 0
      %p228 = por %p226, %p227
      %p229 = scmp.le.s32.totalorder 1, %s17
      %p230 = scmp.lt.s32.totalorder %s17, 3
      %p231 = pnand %p229, %p230
      %p232 = pneg %p231
      // Predicated region
      $region9: #{bert_encoder_call.1} parent=5 // pred_check
        _
      $region10: #{bert_encoder_call.1} parent=5 // pred_check_branch
        %234 = sbr.rel (%p231) target = $region12
      $region11: #{bert_encoder_call.1} parent=5 // pred_region
        %s235 = ssub.s32 %s17, 1
        // Predicated region
        $region13: #{bert_encoder_call.1} parent=11 // pred_check
          %p236 = pneg %p90
        $region14: #{bert_encoder_call.1} parent=11 // pred_check_branch
          %238 = sbr.rel (%p236) target = $region16
        $region15: #{bert_encoder_call.1} parent=11 // pred_region
          _
        $region16: #{bert_encoder_call.1} parent=11 // pred_fallthru
          _
        // Predicated region
        $region17: #{bert_encoder_call.1} parent=11 // pred_check
          %p239 = pneg %p111
        $region18: #{bert_encoder_call.1} parent=11 // pred_check_branch
          %241 = sbr.rel (%p239) target = $region20
        $region19: #{bert_encoder_call.1} parent=11 // pred_region
          _
        $region20: #{bert_encoder_call.1} parent=11 // pred_fallthru
          _
        // Predicated region
        $region21: #{bert_encoder_call.1} parent=11 // pred_check
          %p242 = pneg %p132
        $region22: #{bert_encoder_call.1} parent=11 // pred_check_branch
          %244 = sbr.rel (%p242) target = $region24
        $region23: #{bert_encoder_call.1} parent=11 // pred_region
          _
        $region24: #{bert_encoder_call.1} parent=11 // pred_fallthru
          _
        // Predicated region
        $region25: #{bert_encoder_call.1} parent=11 // pred_check
          %p245 = pneg %p153
        $region26: #{bert_encoder_call.1} parent=11 // pred_check_branch
          %247 = sbr.rel (%p245) target = $region28
        $region27: #{bert_encoder_call.1} parent=11 // pred_region
          _
        $region28: #{bert_encoder_call.1} parent=11 // pred_fallthru
          _
        // Predicated region
        $region29: #{bert_encoder_call.1} parent=11 // pred_check
          %p248 = pneg %p174
        $region30: #{bert_encoder_call.1} parent=11 // pred_check_branch
          %250 = sbr.rel (%p248) target = $region32
        $region31: #{bert_encoder_call.1} parent=11 // pred_region
          _
        $region32: #{bert_encoder_call.1} parent=11 // pred_fallthru
          _
        // Predicated region
        $region33: #{bert_encoder_call.1} parent=11 // pred_check
          %p251 = pneg %p195
        $region34: #{bert_encoder_call.1} parent=11 // pred_check_branch
          %253 = sbr.rel (%p251) target = $region36
        $region35: #{bert_encoder_call.1} parent=11 // pred_region
          _
        $region36: #{bert_encoder_call.1} parent=11 // pred_fallthru
          _
      $region12: #{bert_encoder_call.1} parent=5 // pred_fallthru
        _
      %p254 = scmp.lt.s32.totalorder %s17, 2
      // Predicated region
      $region37: #{bert_encoder_call.1} parent=5 // pred_check
        %p255 = pneg %p254
      $region38: #{bert_encoder_call.1} parent=5 // pred_check_branch
        %257 = sbr.rel (%p255) target = $region40
      $region39: #{bert_encoder_call.1} parent=5 // pred_region
        // Predicated region
        $region41: #{bert_encoder_call.1} parent=39 // pred_check
          %p258 = pneg %p37
        $region42: #{bert_encoder_call.1} parent=39 // pred_check_branch
          %260 = sbr.rel (%p258) target = $region44
        $region43: #{bert_encoder_call.1} parent=39 // pred_region
          %p261 = scmp.lt.s32.totalorder %s17, 1
          %s262 = scalar_select %p261, %s17, 1
          %s263 = smul.addr %s262, 8
          %s264 = scalar_lea.vmem %s0, %s263
        $region44: #{bert_encoder_call.1} parent=39 // pred_fallthru
          _
        // Predicated region
        $region45: #{bert_encoder_call.1} parent=39 // pred_check
          %p265 = pneg %p63
        $region46: #{bert_encoder_call.1} parent=39 // pred_check_branch
          %267 = sbr.rel (%p265) target = $region48
        $region47: #{bert_encoder_call.1} parent=39 // pred_region
          %p268 = scmp.lt.s32.totalorder %s17, 1
          %s269 = scalar_select %p268, %s17, 1
          %s270 = scalar_lea.vmem %s1, %s269
        $region48: #{bert_encoder_call.1} parent=39 // pred_fallthru
          _
      $region40: #{bert_encoder_call.1} parent=5 // pred_fallthru
        _
      %p271 = scmp.le.s32.totalorder 1, %s17
      %p272 = scmp.lt.s32.totalorder %s17, 3
      %p273 = pnand %p271, %p272
      %p274 = pneg %p273
      // Predicated region
      $region49: #{bert_encoder_call.1} parent=5 // pred_check
        _
      $region50: #{bert_encoder_call.1} parent=5 // pred_check_branch
        %276 = sbr.rel (%p273) target = $region52
      $region51: #{bert_encoder_call.1} parent=5 // pred_region
        %s277 = ssub.s32 %s17, 1
        %p278 = scmp.lt.s32.totalorder %s22, 1
        %s279 = scalar_select %p278, %s22, 1
        %s280 = smul.addr %s279, 8
        %s281 = scalar_lea.vmem %s0, %s280
        %p282 = pneg %p43
        %p283 = pneg %p40
        %p284 = scmp.lt.s32.totalorder %s22, 1
        %s285 = scalar_select %p284, %s22, 1
        %s286 = scalar_lea.vmem %s1, %s285
        %p287 = pneg %p69
        %p288 = pneg %p66
        %p289 = pneg %p90
        %p290 = pneg %p87
        %p291 = pneg %p111
        %p292 = pneg %p108
        %p293 = pneg %p132
        %p294 = pneg %p129
        %p295 = pneg %p153
        %p296 = pneg %p150
        %p297 = pneg %p174
        %p298 = pneg %p171
        %p299 = pneg %p195
        %p300 = pneg %p192
        %p301 = pneg %p221
        %p302 = pneg %p218
        %s303 = sand.u32 %s208, 1
        %s304 = scalar_lea.sflag [#allocation3], %s303
        %s305 = sand.u32 %s208, 1
        %s306 = smul.addr %s305, 8
        %s307 = scalar_lea.vmem [#allocation2], %s306
        %p308 = scmp.lt.s32.totalorder %s22, 1
        %s309 = scalar_select %p308, %s22, 1
        %s310 = smul.addr %s309, 8
        %s311 = scalar_lea.vmem %s0, %s310
        %p312 = scmp.lt.s32.totalorder %s22, 1
        %s313 = scalar_select %p312, %s22, 1
        %s314 = scalar_lea.vmem %s1, %s313
        %v316 = vld [vmem:[%s311] sm:$0xff]
        %v317 = vld [vmem:[%s314] sm:$0x1]
        %v318 = vld [vmem:[%s7] sm:$0xff]
        %v319 = vpack.c.bf16 %v316, %v316
        %v320 = vld [vmem:[%s2] sm:$0xf]
        %v321 = vld [vmem:[%s2 + $0x4] sm:$0xf]
        %v322 = vld [vmem:[%s2 + $0x8] sm:$0xf]
        %v323 = vld [vmem:[%s2 + $0xc] sm:$0xf]
        %v324 = vld [vmem:[%s2 + $0x10] sm:$0xf]
        %v325 = vld [vmem:[%s2 + $0x14] sm:$0xf]
        %v326 = vld [vmem:[%s2 + $0x18] sm:$0xf]
        %v327 = vld [vmem:[%s2 + $0x1c] sm:$0xf]
        %v328 = vld [vmem:[%s2 + $0x20] sm:$0xf]
        %v329 = vld [vmem:[%s2 + $0x24] sm:$0xf]
        %v330 = vld [vmem:[%s2 + $0x28] sm:$0xf]
        %v331 = vld [vmem:[%s2 + $0x2c] sm:$0xf]
        %v332 = vld [vmem:[%s2 + $0x30] sm:$0xf]
        %v333 = vld [vmem:[%s2 + $0x34] sm:$0xf]
        %v334 = vld [vmem:[%s2 + $0x38] sm:$0xf]
        %v335 = vld [vmem:[%s2 + $0x3c] sm:$0xf]
        %v336 = vld [vmem:[%s2 + $0x40] sm:$0xf]
        %v337 = vld [vmem:[%s2 + $0x44] sm:$0xf]
        %v338 = vld [vmem:[%s2 + $0x48] sm:$0xf]
        %v339 = vld [vmem:[%s2 + $0x4c] sm:$0xf]
        %v340 = vld [vmem:[%s2 + $0x50] sm:$0xf]
        %v341 = vld [vmem:[%s2 + $0x54] sm:$0xf]
        %v342 = vld [vmem:[%s2 + $0x58] sm:$0xf]
        %v343 = vld [vmem:[%s2 + $0x5c] sm:$0xf]
        %v344 = vld [vmem:[%s2 + $0x60] sm:$0xf]
        %v345 = vld [vmem:[%s2 + $0x64] sm:$0xf]
        %v346 = vld [vmem:[%s2 + $0x68] sm:$0xf]
        %v347 = vld [vmem:[%s2 + $0x6c] sm:$0xf]
        %v348 = vld [vmem:[%s2 + $0x70] sm:$0xf]
        %v349 = vld [vmem:[%s2 + $0x74] sm:$0xf]
        %v350 = vld [vmem:[%s2 + $0x78] sm:$0xf]
        %v351 = vld [vmem:[%s2 + $0x7c] sm:$0xf]
        %v352 = vld [vmem:[%s2 + $0x80] sm:$0xf]
        %v353 = vld [vmem:[%s2 + $0x84] sm:$0xf]
        %v354 = vld [vmem:[%s2 + $0x88] sm:$0xf]
        %v355 = vld [vmem:[%s2 + $0x8c] sm:$0xf]
        %v356 = vld [vmem:[%s2 + $0x90] sm:$0xf]
        %v357 = vld [vmem:[%s2 + $0x94] sm:$0xf]
        %v358 = vld [vmem:[%s2 + $0x98] sm:$0xf]
        %v359 = vld [vmem:[%s2 + $0x9c] sm:$0xf]
        %v360 = vld [vmem:[%s2 + $0xa0] sm:$0xf]
        %v361 = vld [vmem:[%s2 + $0xa4] sm:$0xf]
        %v362 = vld [vmem:[%s2 + $0xa8] sm:$0xf]
        %v363 = vld [vmem:[%s2 + $0xac] sm:$0xf]
        %v364 = vld [vmem:[%s2 + $0xb0] sm:$0xf]
        %v365 = vld [vmem:[%s2 + $0xb4] sm:$0xf]
        %v366 = vld [vmem:[%s2 + $0xb8] sm:$0xf]
        %v367 = vld [vmem:[%s2 + $0xbc] sm:$0xf]
        %v368 = vld [vmem:[%s3] sm:$0x1]
        %v369 = vld [vmem:[%s3 + $0x1] sm:$0x1]
        %v370 = vld [vmem:[%s3 + $0x2] sm:$0x1]
        %v371 = vld [vmem:[%s3 + $0x3] sm:$0x1]
        %v372 = vld [vmem:[%s3 + $0x4] sm:$0x1]
        %v373 = vld [vmem:[%s3 + $0x5] sm:$0x1]
        %v374 = vld [vmem:[%s3 + $0x6] sm:$0x1]
        %v375 = vld [vmem:[%s3 + $0x7] sm:$0x1]
        %v376 = vld [vmem:[%s3 + $0x8] sm:$0x1]
        %v377 = vld [vmem:[%s3 + $0x9] sm:$0x1]
        %v378 = vld [vmem:[%s3 + $0xa] sm:$0x1]
        %v379 = vld [vmem:[%s3 + $0xb] sm:$0x1]
        %v392 = vlaneseq
        %v393 = vshrl.u32 %v392, 7
        %v394 = vsub.s32 0, %v393
        %v395 = vrot.slane %v368, %v394
        %v396 = vlaneseq
        %v397 = vshrl.u32 %v396, 7
        %v398 = vsub.s32 0, %v397
        %v399 = vrot.slane %v369, %v398
        %v400 = vlaneseq
        %v401 = vshrl.u32 %v400, 7
        %v402 = vsub.s32 0, %v401
        %v403 = vrot.slane %v370, %v402
        %v404 = vlaneseq
        %v405 = vshrl.u32 %v404, 7
        %v406 = vsub.s32 0, %v405
        %v407 = vrot.slane %v371, %v406
        %v408 = vlaneseq
        %v409 = vshrl.u32 %v408, 7
        %v410 = vsub.s32 0, %v409
        %v411 = vrot.slane %v372, %v410
        %v412 = vlaneseq
        %v413 = vshrl.u32 %v412, 7
        %v414 = vsub.s32 0, %v413
        %v415 = vrot.slane %v373, %v414
        %v416 = vlaneseq
        %v417 = vshrl.u32 %v416, 7
        %v418 = vsub.s32 0, %v417
        %v419 = vrot.slane %v374, %v418
        %v420 = vlaneseq
        %v421 = vshrl.u32 %v420, 7
        %v422 = vsub.s32 0, %v421
        %v423 = vrot.slane %v375, %v422
        %v424 = vlaneseq
        %v425 = vshrl.u32 %v424, 7
        %v426 = vsub.s32 0, %v425
        %v427 = vrot.slane %v376, %v426
        %v428 = vlaneseq
        %v429 = vshrl.u32 %v428, 7
        %v430 = vsub.s32 0, %v429
        %v431 = vrot.slane %v377, %v430
        %v432 = vlaneseq
        %v433 = vshrl.u32 %v432, 7
        %v434 = vsub.s32 0, %v433
        %v435 = vrot.slane %v378, %v434
        %v436 = vlaneseq
        %v437 = vshrl.u32 %v436, 7
        %v438 = vsub.s32 0, %v437
        %v439 = vrot.slane %v379, %v438
        %v456 = vunpack.c.l.b16 %v320
        %v457 = vunpack.c.l.b16 %v321
        %v458 = vunpack.c.l.b16 %v322
        %v459 = vunpack.c.l.b16 %v323
        %v460 = vpack.c.b16 %v457, %v456
        %v461 = vpack.c.b16 %v459, %v458
        %vm464 = vcmask 261120
        %v466 = vsel %vm464, %v319, 0
        %468 = vmatprep.subr.bf16.mxu0 0
        %469 = vmatpush1.bf16.msra.mxu0 %v460
        %470 = vmatprep.subr.bf16.mxu0 0
        %471 = vmatpush1.bf16.msra.mxu0 %v461
        %472 = vmatprep.subr.bf16.mxu0 0
        %473 = vmatpush1.bf16.msra.mxu0 0
        %474 = vmatprep.subr.bf16.mxu0 0
        %475 = vmatpush1.bf16.msra.mxu0 0
        %476 = vmatprep.subr.bf16.mxu0 0
        %477 = vmatpush1.bf16.msra.mxu0 0
        %478 = vmatprep.subr.bf16.mxu0 0
        %479 = vmatpush1.bf16.msra.mxu0 0
        %480 = vmatprep.subr.bf16.mxu0 0
        %481 = vmatpush1.bf16.msra.mxu0 0
        %482 = vmatprep.subr.bf16.mxu0 0
        %483 = vmatpush1.bf16.msra.mxu0 0
        %484 = vmatprep.subr.bf16.mxu0 0
        %485 = vmatpush1.bf16.msra.mxu0 0
        %486 = vmatprep.subr.bf16.mxu0 0
        %487 = vmatpush1.bf16.msra.mxu0 0
        %488 = vmatprep.subr.bf16.mxu0 0
        %489 = vmatpush1.bf16.msra.mxu0 0
        %490 = vmatprep.subr.bf16.mxu0 0
        %491 = vmatpush1.bf16.msra.mxu0 0
        %492 = vmatprep.subr.bf16.mxu0 0
        %493 = vmatpush1.bf16.msra.mxu0 0
        %494 = vmatprep.subr.bf16.mxu0 0
        %495 = vmatpush1.bf16.msra.mxu0 0
        %496 = vmatprep.subr.bf16.mxu0 0
        %497 = vmatpush1.bf16.msra.mxu0 0
        %498 = vmatprep.subr.bf16.mxu0 0
        %499 = vmatpush1.bf16.msra.mxu0 0
        %500 = vmatprep.mubr.bf16.mxu0 0
        %501 = vmatmul.mubr.bf16.gmra.mrb[0].mxu0 %v466
        %v502 = vpop.f32.mrb[0].mxu0
        %v503 = vadd.f32 %v395, %v502
        %v504 = vpop.f32.mrb[0].mxu0
        %v505 = vpop.f32.mrb[0].mxu0
        %v506 = vpop.f32.mrb[0].mxu0
        %507 = vdwg.mxu0
        %v512 = vunpack.c.l.b16 %v324
        %v513 = vunpack.c.l.b16 %v325
        %v514 = vunpack.c.l.b16 %v326
        %v515 = vunpack.c.l.b16 %v327
        %v516 = vpack.c.b16 %v513, %v512
        %v517 = vpack.c.b16 %v515, %v514
        %520 = vmatprep.subr.bf16.mxu0 0
        %521 = vmatpush1.bf16.msra.mxu0 %v516
        %522 = vmatprep.subr.bf16.mxu0 0
        %523 = vmatpush1.bf16.msra.mxu0 %v517
        %524 = vmatprep.subr.bf16.mxu0 0
        %525 = vmatpush1.bf16.msra.mxu0 0
        %526 = vmatprep.subr.bf16.mxu0 0
        %527 = vmatpush1.bf16.msra.mxu0 0
        %528 = vmatprep.subr.bf16.mxu0 0
        %529 = vmatpush1.bf16.msra.mxu0 0
        %530 = vmatprep.subr.bf16.mxu0 0
        %531 = vmatpush1.bf16.msra.mxu0 0
        %532 = vmatprep.subr.bf16.mxu0 0
        %533 = vmatpush1.bf16.msra.mxu0 0
        %534 = vmatprep.subr.bf16.mxu0 0
        %535 = vmatpush1.bf16.msra.mxu0 0
        %536 = vmatprep.subr.bf16.mxu0 0
        %537 = vmatpush1.bf16.msra.mxu0 0
        %538 = vmatprep.subr.bf16.mxu0 0
        %539 = vmatpush1.bf16.msra.mxu0 0
        %540 = vmatprep.subr.bf16.mxu0 0
        %541 = vmatpush1.bf16.msra.mxu0 0
        %542 = vmatprep.subr.bf16.mxu0 0
        %543 = vmatpush1.bf16.msra.mxu0 0
        %544 = vmatprep.subr.bf16.mxu0 0
        %545 = vmatpush1.bf16.msra.mxu0 0
        %546 = vmatprep.subr.bf16.mxu0 0
        %547 = vmatpush1.bf16.msra.mxu0 0
        %548 = vmatprep.subr.bf16.mxu0 0
        %549 = vmatpush1.bf16.msra.mxu0 0
        %550 = vmatprep.subr.bf16.mxu0 0
        %551 = vmatpush1.bf16.msra.mxu0 0
        %552 = vmatprep.mubr.bf16.mxu0 0
        %553 = vmatmul.mubr.bf16.gmra.mrb[0].mxu0 %v466
        %v554 = vpop.f32.mrb[0].mxu0
        %v555 = vadd.f32 %v399, %v554
        %v556 = vpop.f32.mrb[0].mxu0
        %v557 = vpop.f32.mrb[0].mxu0
        %v558 = vpop.f32.mrb[0].mxu0
        %559 = vdwg.mxu0
        %v564 = vunpack.c.l.b16 %v328
        %v565 = vunpack.c.l.b16 %v329
        %v566 = vunpack.c.l.b16 %v330
        %v567 = vunpack.c.l.b16 %v331
        %v568 = vpack.c.b16 %v565, %v564
        %v569 = vpack.c.b16 %v567, %v566
        %572 = vmatprep.subr.bf16.mxu0 0
        %573 = vmatpush1.bf16.msra.mxu0 %v568
        %574 = vmatprep.subr.bf16.mxu0 0
        %575 = vmatpush1.bf16.msra.mxu0 %v569
        %576 = vmatprep.subr.bf16.mxu0 0
        %577 = vmatpush1.bf16.msra.mxu0 0
        %578 = vmatprep.subr.bf16.mxu0 0
        %579 = vmatpush1.bf16.msra.mxu0 0
        %580 = vmatprep.subr.bf16.mxu0 0
        %581 = vmatpush1.bf16.msra.mxu0 0
        %582 = vmatprep.subr.bf16.mxu0 0
        %583 = vmatpush1.bf16.msra.mxu0 0
        %584 = vmatprep.subr.bf16.mxu0 0
        %585 = vmatpush1.bf16.msra.mxu0 0
        %586 = vmatprep.subr.bf16.mxu0 0
        %587 = vmatpush1.bf16.msra.mxu0 0
        %588 = vmatprep.subr.bf16.mxu0 0
        %589 = vmatpush1.bf16.msra.mxu0 0
        %590 = vmatprep.subr.bf16.mxu0 0
        %591 = vmatpush1.bf16.msra.mxu0 0
        %592 = vmatprep.subr.bf16.mxu0 0
        %593 = vmatpush1.bf16.msra.mxu0 0
        %594 = vmatprep.subr.bf16.mxu0 0
        %595 = vmatpush1.bf16.msra.mxu0 0
        %596 = vmatprep.subr.bf16.mxu0 0
        %597 = vmatpush1.bf16.msra.mxu0 0
        %598 = vmatprep.subr.bf16.mxu0 0
        %599 = vmatpush1.bf16.msra.mxu0 0
        %600 = vmatprep.subr.bf16.mxu0 0
        %601 = vmatpush1.bf16.msra.mxu0 0
        %602 = vmatprep.subr.bf16.mxu0 0
        %603 = vmatpush1.bf16.msra.mxu0 0
        %604 = vmatprep.mubr.bf16.mxu0 0
        %605 = vmatmul.mubr.bf16.gmra.mrb[0].mxu0 %v466
        %v606 = vpop.f32.mrb[0].mxu0
        %v607 = vadd.f32 %v403, %v606
        %v608 = vpop.f32.mrb[0].mxu0
        %v609 = vpop.f32.mrb[0].mxu0
        %v610 = vpop.f32.mrb[0].mxu0
        %611 = vdwg.mxu0
        %v616 = vunpack.c.l.b16 %v332
        %v617 = vunpack.c.l.b16 %v333
        %v618 = vunpack.c.l.b16 %v334
        %v619 = vunpack.c.l.b16 %v335
        %v620 = vpack.c.b16 %v617, %v616
        %v621 = vpack.c.b16 %v619, %v618
        %624 = vmatprep.subr.bf16.mxu0 0
        %625 = vmatpush1.bf16.msra.mxu0 %v620
        %626 = vmatprep.subr.bf16.mxu0 0
        %627 = vmatpush1.bf16.msra.mxu0 %v621
        %628 = vmatprep.subr.bf16.mxu0 0
        %629 = vmatpush1.bf16.msra.mxu0 0
        %630 = vmatprep.subr.bf16.mxu0 0
        %631 = vmatpush1.bf16.msra.mxu0 0
        %632 = vmatprep.subr.bf16.mxu0 0
        %633 = vmatpush1.bf16.msra.mxu0 0
        %634 = vmatprep.subr.bf16.mxu0 0
        %635 = vmatpush1.bf16.msra.mxu0 0
        %636 = vmatprep.subr.bf16.mxu0 0
        %637 = vmatpush1.bf16.msra.mxu0 0
        %638 = vmatprep.subr.bf16.mxu0 0
        %639 = vmatpush1.bf16.msra.mxu0 0
        %640 = vmatprep.subr.bf16.mxu0 0
        %641 = vmatpush1.bf16.msra.mxu0 0
        %642 = vmatprep.subr.bf16.mxu0 0
        %643 = vmatpush1.bf16.msra.mxu0 0
        %644 = vmatprep.subr.bf16.mxu0 0
        %645 = vmatpush1.bf16.msra.mxu0 0
        %646 = vmatprep.subr.bf16.mxu0 0
        %647 = vmatpush1.bf16.msra.mxu0 0
        %648 = vmatprep.subr.bf16.mxu0 0
        %649 = vmatpush1.bf16.msra.mxu0 0
        %650 = vmatprep.subr.bf16.mxu0 0
        %651 = vmatpush1.bf16.msra.mxu0 0
        %652 = vmatprep.subr.bf16.mxu0 0
        %653 = vmatpush1.bf16.msra.mxu0 0
        %654 = vmatprep.subr.bf16.mxu0 0
        %655 = vmatpush1.bf16.msra.mxu0 0
        %656 = vmatprep.mubr.bf16.mxu0 0
        %657 = vmatmul.mubr.bf16.gmra.mrb[0].mxu0 %v466
        %v658 = vpop.f32.mrb[0].mxu0
        %v659 = vadd.f32 %v407, %v658
        %v660 = vpop.f32.mrb[0].mxu0
        %v661 = vpop.f32.mrb[0].mxu0
        %v662 = vpop.f32.mrb[0].mxu0
        %663 = vdwg.mxu0
        %v668 = vunpack.c.l.b16 %v336
        %v669 = vunpack.c.l.b16 %v337
        %v670 = vunpack.c.l.b16 %v338
        %v671 = vunpack.c.l.b16 %v339
        %v672 = vpack.c.b16 %v669, %v668
        %v673 = vpack.c.b16 %v671, %v670
        %676 = vmatprep.subr.bf16.mxu0 0
        %677 = vmatpush1.bf16.msra.mxu0 %v672
        %678 = vmatprep.subr.bf16.mxu0 0
        %679 = vmatpush1.bf16.msra.mxu0 %v673
        %680 = vmatprep.subr.bf16.mxu0 0
        %681 = vmatpush1.bf16.msra.mxu0 0
        %682 = vmatprep.subr.bf16.mxu0 0
        %683 = vmatpush1.bf16.msra.mxu0 0
        %684 = vmatprep.subr.bf16.mxu0 0
        %685 = vmatpush1.bf16.msra.mxu0 0
        %686 = vmatprep.subr.bf16.mxu0 0
        %687 = vmatpush1.bf16.msra.mxu0 0
        %688 = vmatprep.subr.bf16.mxu0 0
        %689 = vmatpush1.bf16.msra.mxu0 0
        %690 = vmatprep.subr.bf16.mxu0 0
        %691 = vmatpush1.bf16.msra.mxu0 0
        %692 = vmatprep.subr.bf16.mxu0 0
        %693 = vmatpush1.bf16.msra.mxu0 0
        %694 = vmatprep.subr.bf16.mxu0 0
        %695 = vmatpush1.bf16.msra.mxu0 0
        %696 = vmatprep.subr.bf16.mxu0 0
        %697 = vmatpush1.bf16.msra.mxu0 0
        %698 = vmatprep.subr.bf16.mxu0 0
        %699 = vmatpush1.bf16.msra.mxu0 0
        %700 = vmatprep.subr.bf16.mxu0 0
        %701 = vmatpush1.bf16.msra.mxu0 0
        %702 = vmatprep.subr.bf16.mxu0 0
        %703 = vmatpush1.bf16.msra.mxu0 0
        %704 = vmatprep.subr.bf16.mxu0 0
        %705 = vmatpush1.bf16.msra.mxu0 0
        %706 = vmatprep.subr.bf16.mxu0 0
        %707 = vmatpush1.bf16.msra.mxu0 0
        %708 = vmatprep.mubr.bf16.mxu0 0
        %709 = vmatmul.mubr.bf16.gmra.mrb[0].mxu0 %v466
        %v710 = vpop.f32.mrb[0].mxu0
        %v711 = vadd.f32 %v411, %v710
        %v712 = vpop.f32.mrb[0].mxu0
        %v713 = vpop.f32.mrb[0].mxu0
        %v714 = vpop.f32.mrb[0].mxu0
        %715 = vdwg.mxu0
        %v720 = vunpack.c.l.b16 %v340
        %v721 = vunpack.c.l.b16 %v341
        %v722 = vunpack.c.l.b16 %v342
        %v723 = vunpack.c.l.b16 %v343
        %v724 = vpack.c.b16 %v721, %v720
        %v725 = vpack.c.b16 %v723, %v722
        %728 = vmatprep.subr.bf16.mxu0 0
        %729 = vmatpush1.bf16.msra.mxu0 %v724
        %730 = vmatprep.subr.bf16.mxu0 0
        %731 = vmatpush1.bf16.msra.mxu0 %v725
        %732 = vmatprep.subr.bf16.mxu0 0
        %733 = vmatpush1.bf16.msra.mxu0 0
        %734 = vmatprep.subr.bf16.mxu0 0
        %735 = vmatpush1.bf16.msra.mxu0 0
        %736 = vmatprep.subr.bf16.mxu0 0
        %737 = vmatpush1.bf16.msra.mxu0 0
        %738 = vmatprep.subr.bf16.mxu0 0
        %739 = vmatpush1.bf16.msra.mxu0 0
        %740 = vmatprep.subr.bf16.mxu0 0
        %741 = vmatpush1.bf16.msra.mxu0 0
        %742 = vmatprep.subr.bf16.mxu0 0
        %743 = vmatpush1.bf16.msra.mxu0 0
        %744 = vmatprep.subr.bf16.mxu0 0
        %745 = vmatpush1.bf16.msra.mxu0 0
        %746 = vmatprep.subr.bf16.mxu0 0
        %747 = vmatpush1.bf16.msra.mxu0 0
        %748 = vmatprep.subr.bf16.mxu0 0
        %749 = vmatpush1.bf16.msra.mxu0 0
        %750 = vmatprep.subr.bf16.mxu0 0
        %751 = vmatpush1.bf16.msra.mxu0 0
        %752 = vmatprep.subr.bf16.mxu0 0
        %753 = vmatpush1.bf16.msra.mxu0 0
        %754 = vmatprep.subr.bf16.mxu0 0
        %755 = vmatpush1.bf16.msra.mxu0 0
        %756 = vmatprep.subr.bf16.mxu0 0
        %757 = vmatpush1.bf16.msra.mxu0 0
        %758 = vmatprep.subr.bf16.mxu0 0
        %759 = vmatpush1.bf16.msra.mxu0 0
        %760 = vmatprep.mubr.bf16.mxu0 0
        %761 = vmatmul.mubr.bf16.gmra.mrb[0].mxu0 %v466
        %v762 = vpop.f32.mrb[0].mxu0
        %v763 = vadd.f32 %v415, %v762
        %v764 = vpop.f32.mrb[0].mxu0
        %v765 = vpop.f32.mrb[0].mxu0
        %v766 = vpop.f32.mrb[0].mxu0
        %767 = vdwg.mxu0
        %v772 = vunpack.c.l.b16 %v344
        %v773 = vunpack.c.l.b16 %v345
        %v774 = vunpack.c.l.b16 %v346
        %v775 = vunpack.c.l.b16 %v347
        %v776 = vpack.c.b16 %v773, %v772
        %v777 = vpack.c.b16 %v775, %v774
        %780 = vmatprep.subr.bf16.mxu0 0
        %781 = vmatpush1.bf16.msra.mxu0 %v776
        %782 = vmatprep.subr.bf16.mxu0 0
        %783 = vmatpush1.bf16.msra.mxu0 %v777
        %784 = vmatprep.subr.bf16.mxu0 0
        %785 = vmatpush1.bf16.msra.mxu0 0
        %786 = vmatprep.subr.bf16.mxu0 0
        %787 = vmatpush1.bf16.msra.mxu0 0
        %788 = vmatprep.subr.bf16.mxu0 0
        %789 = vmatpush1.bf16.msra.mxu0 0
        %790 = vmatprep.subr.bf16.mxu0 0
        %791 = vmatpush1.bf16.msra.mxu0 0
        %792 = vmatprep.subr.bf16.mxu0 0
        %793 = vmatpush1.bf16.msra.mxu0 0
        %794 = vmatprep.subr.bf16.mxu0 0
        %795 = vmatpush1.bf16.msra.mxu0 0
        %796 = vmatprep.subr.bf16.mxu0 0
        %797 = vmatpush1.bf16.msra.mxu0 0
        %798 = vmatprep.subr.bf16.mxu0 0
        %799 = vmatpush1.bf16.msra.mxu0 0
        %800 = vmatprep.subr.bf16.mxu0 0
        %801 = vmatpush1.bf16.msra.mxu0 0
        %802 = vmatprep.subr.bf16.mxu0 0
        %803 = vmatpush1.bf16.msra.mxu0 0
        %804 = vmatprep.subr.bf16.mxu0 0
        %805 = vmatpush1.bf16.msra.mxu0 0
        %806 = vmatprep.subr.bf16.mxu0 0
        %807 = vmatpush1.bf16.msra.mxu0 0
        %808 = vmatprep.subr.bf16.mxu0 0
        %809 = vmatpush1.bf16.msra.mxu0 0
        %810 = vmatprep.subr.bf16.mxu0 0
        %811 = vmatpush1.bf16.msra.mxu0 0
        %812 = vmatprep.mubr.bf16.mxu0 0
        %813 = vmatmul.mubr.bf16.gmra.mrb[0].mxu0 %v466
        %v814 = vpop.f32.mrb[0].mxu0
        %v815 = vadd.f32 %v419, %v814
        %v816 = vpop.f32.mrb[0].mxu0
        %v817 = vpop.f32.mrb[0].mxu0
        %v818 = vpop.f32.mrb[0].mxu0
        %819 = vdwg.mxu0
        %v824 = vunpack.c.l.b16 %v348
        %v825 = vunpack.c.l.b16 %v349
        %v826 = vunpack.c.l.b16 %v350
        %v827 = vunpack.c.l.b16 %v351
        %v828 = vpack.c.b16 %v825, %v824
        %v829 = vpack.c.b16 %v827, %v826
        %832 = vmatprep.subr.bf16.mxu0 0
        %833 = vmatpush1.bf16.msra.mxu0 %v828
        %834 = vmatprep.subr.bf16.mxu0 0
        %835 = vmatpush1.bf16.msra.mxu0 %v829
        %836 = vmatprep.subr.bf16.mxu0 0
        %837 = vmatpush1.bf16.msra.mxu0 0
        %838 = vmatprep.subr.bf16.mxu0 0
        %839 = vmatpush1.bf16.msra.mxu0 0
        %840 = vmatprep.subr.bf16.mxu0 0
        %841 = vmatpush1.bf16.msra.mxu0 0
        %842 = vmatprep.subr.bf16.mxu0 0
        %843 = vmatpush1.bf16.msra.mxu0 0
        %844 = vmatprep.subr.bf16.mxu0 0
        %845 = vmatpush1.bf16.msra.mxu0 0
        %846 = vmatprep.subr.bf16.mxu0 0
        %847 = vmatpush1.bf16.msra.mxu0 0
        %848 = vmatprep.subr.bf16.mxu0 0
        %849 = vmatpush1.bf16.msra.mxu0 0
        %850 = vmatprep.subr.bf16.mxu0 0
        %851 = vmatpush1.bf16.msra.mxu0 0
        %852 = vmatprep.subr.bf16.mxu0 0
        %853 = vmatpush1.bf16.msra.mxu0 0
        %854 = vmatprep.subr.bf16.mxu0 0
        %855 = vmatpush1.bf16.msra.mxu0 0
        %856 = vmatprep.subr.bf16.mxu0 0
        %857 = vmatpush1.bf16.msra.mxu0 0
        %858 = vmatprep.subr.bf16.mxu0 0
        %859 = vmatpush1.bf16.msra.mxu0 0
        %860 = vmatprep.subr.bf16.mxu0 0
        %861 = vmatpush1.bf16.msra.mxu0 0
        %862 = vmatprep.subr.bf16.mxu0 0
        %863 = vmatpush1.bf16.msra.mxu0 0
        %864 = vmatprep.mubr.bf16.mxu0 0
        %865 = vmatmul.mubr.bf16.gmra.mrb[0].mxu0 %v466
        %v866 = vpop.f32.mrb[0].mxu0
        %v867 = vadd.f32 %v423, %v866
        %v868 = vpop.f32.mrb[0].mxu0
        %v869 = vpop.f32.mrb[0].mxu0
        %v870 = vpop.f32.mrb[0].mxu0
        %871 = vdwg.mxu0
        %v876 = vunpack.c.l.b16 %v352
        %v877 = vunpack.c.l.b16 %v353
        %v878 = vunpack.c.l.b16 %v354
        %v879 = vunpack.c.l.b16 %v355
        %v880 = vpack.c.b16 %v877, %v876
        %v881 = vpack.c.b16 %v879, %v878
        %884 = vmatprep.subr.bf16.mxu0 0
        %885 = vmatpush1.bf16.msra.mxu0 %v880
        %886 = vmatprep.subr.bf16.mxu0 0
        %887 = vmatpush1.bf16.msra.mxu0 %v881
        %888 = vmatprep.subr.bf16.mxu0 0
        %889 = vmatpush1.bf16.msra.mxu0 0
        %890 = vmatprep.subr.bf16.mxu0 0
        %891 = vmatpush1.bf16.msra.mxu0 0
        %892 = vmatprep.subr.bf16.mxu0 0
        %893 = vmatpush1.bf16.msra.mxu0 0
        %894 = vmatprep.subr.bf16.mxu0 0
        %895 = vmatpush1.bf16.msra.mxu0 0
        %896 = vmatprep.subr.bf16.mxu0 0
        %897 = vmatpush1.bf16.msra.mxu0 0
        %898 = vmatprep.subr.bf16.mxu0 0
        %899 = vmatpush1.bf16.msra.mxu0 0
        %900 = vmatprep.subr.bf16.mxu0 0
        %901 = vmatpush1.bf16.msra.mxu0 0
        %902 = vmatprep.subr.bf16.mxu0 0
        %903 = vmatpush1.bf16.msra.mxu0 0
        %904 = vmatprep.subr.bf16.mxu0 0
        %905 = vmatpush1.bf16.msra.mxu0 0
        %906 = vmatprep.subr.bf16.mxu0 0
        %907 = vmatpush1.bf16.msra.mxu0 0
        %908 = vmatprep.subr.bf16.mxu0 0
        %909 = vmatpush1.bf16.msra.mxu0 0
        %910 = vmatprep.subr.bf16.mxu0 0
        %911 = vmatpush1.bf16.msra.mxu0 0
        %912 = vmatprep.subr.bf16.mxu0 0
        %913 = vmatpush1.bf16.msra.mxu0 0
        %914 = vmatprep.subr.bf16.mxu0 0
        %915 = vmatpush1.bf16.msra.mxu0 0
        %916 = vmatprep.mubr.bf16.mxu0 0
        %917 = vmatmul.mubr.bf16.gmra.mrb[0].mxu0 %v466
        %v918 = vpop.f32.mrb[0].mxu0
        %v919 = vadd.f32 %v427, %v918
        %v920 = vpop.f32.mrb[0].mxu0
        %v921 = vpop.f32.mrb[0].mxu0
        %v922 = vpop.f32.mrb[0].mxu0
        %923 = vdwg.mxu0
        %v928 = vunpack.c.l.b16 %v356
        %v929 = vunpack.c.l.b16 %v357
        %v930 = vunpack.c.l.b16 %v358
        %v931 = vunpack.c.l.b16 %v359
        %v932 = vpack.c.b16 %v929, %v928
        %v933 = vpack.c.b16 %v931, %v930
        %936 = vmatprep.subr.bf16.mxu0 0
        %937 = vmatpush1.bf16.msra.mxu0 %v932
        %938 = vmatprep.subr.bf16.mxu0 0
        %939 = vmatpush1.bf16.msra.mxu0 %v933
        %940 = vmatprep.subr.bf16.mxu0 0
        %941 = vmatpush1.bf16.msra.mxu0 0
        %942 = vmatprep.subr.bf16.mxu0 0
        %943 = vmatpush1.bf16.msra.mxu0 0
        %944 = vmatprep.subr.bf16.mxu0 0
        %945 = vmatpush1.bf16.msra.mxu0 0
        %946 = vmatprep.subr.bf16.mxu0 0
        %947 = vmatpush1.bf16.msra.mxu0 0
        %948 = vmatprep.subr.bf16.mxu0 0
        %949 = vmatpush1.bf16.msra.mxu0 0
        %950 = vmatprep.subr.bf16.mxu0 0
        %951 = vmatpush1.bf16.msra.mxu0 0
        %952 = vmatprep.subr.bf16.mxu0 0
        %953 = vmatpush1.bf16.msra.mxu0 0
        %954 = vmatprep.subr.bf16.mxu0 0
        %955 = vmatpush1.bf16.msra.mxu0 0
        %956 = vmatprep.subr.bf16.mxu0 0
        %957 = vmatpush1.bf16.msra.mxu0 0
        %958 = vmatprep.subr.bf16.mxu0 0
        %959 = vmatpush1.bf16.msra.mxu0 0
        %960 = vmatprep.subr.bf16.mxu0 0
        %961 = vmatpush1.bf16.msra.mxu0 0
        %962 = vmatprep.subr.bf16.mxu0 0
        %963 = vmatpush1.bf16.msra.mxu0 0
        %964 = vmatprep.subr.bf16.mxu0 0
        %965 = vmatpush1.bf16.msra.mxu0 0
        %966 = vmatprep.subr.bf16.mxu0 0
        %967 = vmatpush1.bf16.msra.mxu0 0
        %968 = vmatprep.mubr.bf16.mxu0 0
        %969 = vmatmul.mubr.bf16.gmra.mrb[0].mxu0 %v466
        %v970 = vpop.f32.mrb[0].mxu0
        %v971 = vadd.f32 %v431, %v970
        %v972 = vpop.f32.mrb[0].mxu0
        %v973 = vpop.f32.mrb[0].mxu0
        %v974 = vpop.f32.mrb[0].mxu0
        %975 = vdwg.mxu0
        %v980 = vunpack.c.l.b16 %v360
        %v981 = vunpack.c.l.b16 %v361
        %v982 = vunpack.c.l.b16 %v362
        %v983 = vunpack.c.l.b16 %v363
        %v984 = vpack.c.b16 %v981, %v980
        %v985 = vpack.c.b16 %v983, %v982
        %988 = vmatprep.subr.bf16.mxu0 0
        %989 = vmatpush1.bf16.msra.mxu0 %v984
        %990 = vmatprep.subr.bf16.mxu0 0
        %991 = vmatpush1.bf16.msra.mxu0 %v985
        %992 = vmatprep.subr.bf16.mxu0 0
        %993 = vmatpush1.bf16.msra.mxu0 0
        %994 = vmatprep.subr.bf16.mxu0 0
        %995 = vmatpush1.bf16.msra.mxu0 0
        %996 = vmatprep.subr.bf16.mxu0 0
        %997 = vmatpush1.bf16.msra.mxu0 0
        %998 = vmatprep.subr.bf16.mxu0 0
        %999 = vmatpush1.bf16.msra.mxu0 0
        %1000 = vmatprep.subr.bf16.mxu0 0
        %1001 = vmatpush1.bf16.msra.mxu0 0
        %1002 = vmatprep.subr.bf16.mxu0 0
        %1003 = vmatpush1.bf16.msra.mxu0 0
        %1004 = vmatprep.subr.bf16.mxu0 0
        %1005 = vmatpush1.bf16.msra.mxu0 0
        %1006 = vmatprep.subr.bf16.mxu0 0
        %1007 = vmatpush1.bf16.msra.mxu0 0
        %1008 = vmatprep.subr.bf16.mxu0 0
        %1009 = vmatpush1.bf16.msra.mxu0 0
        %1010 = vmatprep.subr.bf16.mxu0 0
        %1011 = vmatpush1.bf16.msra.mxu0 0
        %1012 = vmatprep.subr.bf16.mxu0 0
        %1013 = vmatpush1.bf16.msra.mxu0 0
        %1014 = vmatprep.subr.bf16.mxu0 0
        %1015 = vmatpush1.bf16.msra.mxu0 0
        %1016 = vmatprep.subr.bf16.mxu0 0
        %1017 = vmatpush1.bf16.msra.mxu0 0
        %1018 = vmatprep.subr.bf16.mxu0 0
        %1019 = vmatpush1.bf16.msra.mxu0 0
        %1020 = vmatprep.mubr.bf16.mxu0 0
        %1021 = vmatmul.mubr.bf16.gmra.mrb[0].mxu0 %v466
        %v1022 = vpop.f32.mrb[0].mxu0
        %v1023 = vadd.f32 %v435, %v1022
        %v1024 = vpop.f32.mrb[0].mxu0
        %v1025 = vpop.f32.mrb[0].mxu0
        %v1026 = vpop.f32.mrb[0].mxu0
        %1027 = vdwg.mxu0
        %v1032 = vunpack.c.l.b16 %v364
        %v1033 = vunpack.c.l.b16 %v365
        %v1034 = vunpack.c.l.b16 %v366
        %v1035 = vunpack.c.l.b16 %v367
        %v1036 = vpack.c.b16 %v1033, %v1032
        %v1037 = vpack.c.b16 %v1035, %v1034
        %1040 = vmatprep.subr.bf16.mxu0 0
        %1041 = vmatpush1.bf16.msra.mxu0 %v1036
        %1042 = vmatprep.subr.bf16.mxu0 0
        %1043 = vmatpush1.bf16.msra.mxu0 %v1037
        %1044 = vmatprep.subr.bf16.mxu0 0
        %1045 = vmatpush1.bf16.msra.mxu0 0
        %1046 = vmatprep.subr.bf16.mxu0 0
        %1047 = vmatpush1.bf16.msra.mxu0 0
        %1048 = vmatprep.subr.bf16.mxu0 0
        %1049 = vmatpush1.bf16.msra.mxu0 0
        %1050 = vmatprep.subr.bf16.mxu0 0
        %1051 = vmatpush1.bf16.msra.mxu0 0
        %1052 = vmatprep.subr.bf16.mxu0 0
        %1053 = vmatpush1.bf16.msra.mxu0 0
        %1054 = vmatprep.subr.bf16.mxu0 0
        %1055 = vmatpush1.bf16.msra.mxu0 0
        %1056 = vmatprep.subr.bf16.mxu0 0
        %1057 = vmatpush1.bf16.msra.mxu0 0
        %1058 = vmatprep.subr.bf16.mxu0 0
        %1059 = vmatpush1.bf16.msra.mxu0 0
        %1060 = vmatprep.subr.bf16.mxu0 0
        %1061 = vmatpush1.bf16.msra.mxu0 0
        %1062 = vmatprep.subr.bf16.mxu0 0
        %1063 = vmatpush1.bf16.msra.mxu0 0
        %1064 = vmatprep.subr.bf16.mxu0 0
        %1065 = vmatpush1.bf16.msra.mxu0 0
        %1066 = vmatprep.subr.bf16.mxu0 0
        %1067 = vmatpush1.bf16.msra.mxu0 0
        %1068 = vmatprep.subr.bf16.mxu0 0
        %1069 = vmatpush1.bf16.msra.mxu0 0
        %1070 = vmatprep.subr.bf16.mxu0 0
        %1071 = vmatpush1.bf16.msra.mxu0 0
        %1072 = vmatprep.mubr.bf16.mxu0 0
        %1073 = vmatmul.mubr.bf16.gmra.mrb[0].mxu0 %v466
        %v1074 = vpop.f32.mrb[0].mxu0
        %v1075 = vadd.f32 %v439, %v1074
        %v1076 = vpop.f32.mrb[0].mxu0
        %v1077 = vpop.f32.mrb[0].mxu0
        %v1078 = vpop.f32.mrb[0].mxu0
        %1079 = vdwg.mxu0
        %v1080 = vpack.c.bf16 %v503, %v503
        %v1081 = vpack.c.bf16 %v555, %v555
        %v1082 = vpack.c.bf16 %v607, %v607
        %v1083 = vpack.c.bf16 %v659, %v659
        %v1084 = vpack.c.bf16 %v711, %v711
        %v1085 = vpack.c.bf16 %v763, %v763
        %v1086 = vpack.c.bf16 %v815, %v815
        %v1087 = vpack.c.bf16 %v867, %v867
        %v1089 = vlaneseq
        %v1090 = vshrl.u32 %v1089, 7
        %v1091 = vsub.s32 0, %v1090
        %v1092 = vrot.slane %v317, %v1091
        %vm1094 = vcmask 64512
        %v1096 = vsel %vm1094, %v1080, 0
        %v1099 = vsel %vm1094, %v1084, 0
        %1101 = vmatprep.subr.bf16.mxu0 0
        %1102 = vmatpush1.bf16.xpose.msra.mxu0 %v1099
        %1103 = vmatprep.subr.bf16.mxu0 0
        %1104 = vmatpush1.bf16.xpose.msra.mxu0 0
        %1105 = vmatprep.subr.bf16.mxu0 0
        %1106 = vmatpush1.bf16.xpose.msra.mxu0 0
        %1107 = vmatprep.subr.bf16.mxu0 0
        %1108 = vmatpush1.bf16.xpose.msra.mxu0 0
        %1109 = vmatprep.subr.bf16.mxu0 0
        %1110 = vmatpush1.bf16.xpose.msra.mxu0 0
        %1111 = vmatprep.subr.bf16.mxu0 0
        %1112 = vmatpush1.bf16.xpose.msra.mxu0 0
        %1113 = vmatprep.subr.bf16.mxu0 0
        %1114 = vmatpush1.bf16.xpose.msra.mxu0 0
        %1115 = vmatprep.subr.bf16.mxu0 0
        %1116 = vmatpush1.bf16.xpose.msra.mxu0 0
        %1117 = vmatprep.subr.bf16.mxu0 0
        %1118 = vmatpush1.bf16.xpose.msra.mxu0 0
        %1119 = vmatprep.subr.bf16.mxu0 0
        %1120 = vmatpush1.bf16.xpose.msra.mxu0 0
        %1121 = vmatprep.subr.bf16.mxu0 0
        %1122 = vmatpush1.bf16.xpose.msra.mxu0 0
        %1123 = vmatprep.subr.bf16.mxu0 0
        %1124 = vmatpush1.bf16.xpose.msra.mxu0 0
        %1125 = vmatprep.subr.bf16.mxu0 0
        %1126 = vmatpush1.bf16.xpose.msra.mxu0 0
        %1127 = vmatprep.subr.bf16.mxu0 0
        %1128 = vmatpush1.bf16.xpose.msra.mxu0 0
        %1129 = vmatprep.subr.bf16.mxu0 0
        %1130 = vmatpush1.bf16.xpose.msra.mxu0 0
        %1131 = vmatprep.subr.bf16.mxu0 0
        %1132 = vmatpush1.bf16.xpose.msra.mxu0 0
        %1133 = vmatprep.mubr.bf16.mxu0 0
        %1134 = vmatmul.mubr.bf16.gmra.mrb[0].mxu0 %v1096
        %v1135 = vpop.f32.mrb[0].mxu0
        %v1136 = vadd.f32 %v1092, %v1135
        %v1137 = vpop.f32.mrb[0].mxu0
        %v1138 = vpop.f32.mrb[0].mxu0
        %v1139 = vpop.f32.mrb[0].mxu0
        %1140 = vdwg.mxu0
        %v1142 = vsel %vm1094, %v1081, 0
        %v1145 = vsel %vm1094, %v1085, 0
        %1147 = vmatprep.subr.bf16.mxu0 0
        %1148 = vmatpush1.bf16.xpose.msra.mxu0 %v1145
        %1149 = vmatprep.subr.bf16.mxu0 0
        %1150 = vmatpush1.bf16.xpose.msra.mxu0 0
        %1151 = vmatprep.subr.bf16.mxu0 0
        %1152 = vmatpush1.bf16.xpose.msra.mxu0 0
        %1153 = vmatprep.subr.bf16.mxu0 0
        %1154 = vmatpush1.bf16.xpose.msra.mxu0 0
        %1155 = vmatprep.subr.bf16.mxu0 0
        %1156 = vmatpush1.bf16.xpose.msra.mxu0 0
        %1157 = vmatprep.subr.bf16.mxu0 0
        %1158 = vmatpush1.bf16.xpose.msra.mxu0 0
        %1159 = vmatprep.subr.bf16.mxu0 0
        %1160 = vmatpush1.bf16.xpose.msra.mxu0 0
        %1161 = vmatprep.subr.bf16.mxu0 0
        %1162 = vmatpush1.bf16.xpose.msra.mxu0 0
        %1163 = vmatprep.subr.bf16.mxu0 0
        %1164 = vmatpush1.bf16.xpose.msra.mxu0 0
        %1165 = vmatprep.subr.bf16.mxu0 0
        %1166 = vmatpush1.bf16.xpose.msra.mxu0 0
        %1167 = vmatprep.subr.bf16.mxu0 0
        %1168 = vmatpush1.bf16.xpose.msra.mxu0 0
        %1169 = vmatprep.subr.bf16.mxu0 0
        %1170 = vmatpush1.bf16.xpose.msra.mxu0 0
        %1171 = vmatprep.subr.bf16.mxu0 0
        %1172 = vmatpush1.bf16.xpose.msra.mxu0 0
        %1173 = vmatprep.subr.bf16.mxu0 0
        %1174 = vmatpush1.bf16.xpose.msra.mxu0 0
        %1175 = vmatprep.subr.bf16.mxu0 0
        %1176 = vmatpush1.bf16.xpose.msra.mxu0 0
        %1177 = vmatprep.subr.bf16.mxu0 0
        %1178 = vmatpush1.bf16.xpose.msra.mxu0 0
        %1179 = vmatprep.mubr.bf16.mxu0 0
        %1180 = vmatmul.mubr.bf16.gmra.mrb[0].mxu0 %v1142
        %v1181 = vpop.f32.mrb[0].mxu0
        %v1182 = vadd.f32 %v1092, %v1181
        %v1183 = vpop.f32.mrb[0].mxu0
        %v1184 = vpop.f32.mrb[0].mxu0
        %v1185 = vpop.f32.mrb[0].mxu0
        %1186 = vdwg.mxu0
        %v1188 = vsel %vm1094, %v1082, 0
        %v1191 = vsel %vm1094, %v1086, 0
        %1193 = vmatprep.subr.bf16.mxu0 0
        %1194 = vmatpush1.bf16.xpose.msra.mxu0 %v1191
        %1195 = vmatprep.subr.bf16.mxu0 0
        %1196 = vmatpush1.bf16.xpose.msra.mxu0 0
        %1197 = vmatprep.subr.bf16.mxu0 0
        %1198 = vmatpush1.bf16.xpose.msra.mxu0 0
        %1199 = vmatprep.subr.bf16.mxu0 0
        %1200 = vmatpush1.bf16.xpose.msra.mxu0 0
        %1201 = vmatprep.subr.bf16.mxu0 0
        %1202 = vmatpush1.bf16.xpose.msra.mxu0 0
        %1203 = vmatprep.subr.bf16.mxu0 0
        %1204 = vmatpush1.bf16.xpose.msra.mxu0 0
        %1205 = vmatprep.subr.bf16.mxu0 0
        %1206 = vmatpush1.bf16.xpose.msra.mxu0 0
        %1207 = vmatprep.subr.bf16.mxu0 0
        %1208 = vmatpush1.bf16.xpose.msra.mxu0 0
        %1209 = vmatprep.subr.bf16.mxu0 0
        %1210 = vmatpush1.bf16.xpose.msra.mxu0 0
        %1211 = vmatprep.subr.bf16.mxu0 0
        %1212 = vmatpush1.bf16.xpose.msra.mxu0 0
        %1213 = vmatprep.subr.bf16.mxu0 0
        %1214 = vmatpush1.bf16.xpose.msra.mxu0 0
        %1215 = vmatprep.subr.bf16.mxu0 0
        %1216 = vmatpush1.bf16.xpose.msra.mxu0 0
        %1217 = vmatprep.subr.bf16.mxu0 0
        %1218 = vmatpush1.bf16.xpose.msra.mxu0 0
        %1219 = vmatprep.subr.bf16.mxu0 0
        %1220 = vmatpush1.bf16.xpose.msra.mxu0 0
        %1221 = vmatprep.subr.bf16.mxu0 0
        %1222 = vmatpush1.bf16.xpose.msra.mxu0 0
        %1223 = vmatprep.subr.bf16.mxu0 0
        %1224 = vmatpush1.bf16.xpose.msra.mxu0 0
        %1225 = vmatprep.mubr.bf16.mxu0 0
        %1226 = vmatmul.mubr.bf16.gmra.mrb[0].mxu0 %v1188
        %v1227 = vpop.f32.mrb[0].mxu0
        %v1228 = vadd.f32 %v1092, %v1227
        %v1229 = vpop.f32.mrb[0].mxu0
        %v1230 = vpop.f32.mrb[0].mxu0
        %v1231 = vpop.f32.mrb[0].mxu0
        %1232 = vdwg.mxu0
        %v1234 = vsel %vm1094, %v1083, 0
        %v1237 = vsel %vm1094, %v1087, 0
        %1239 = vmatprep.subr.bf16.mxu0 0
        %1240 = vmatpush1.bf16.xpose.msra.mxu0 %v1237
        %1241 = vmatprep.subr.bf16.mxu0 0
        %1242 = vmatpush1.bf16.xpose.msra.mxu0 0
        %1243 = vmatprep.subr.bf16.mxu0 0
        %1244 = vmatpush1.bf16.xpose.msra.mxu0 0
        %1245 = vmatprep.subr.bf16.mxu0 0
        %1246 = vmatpush1.bf16.xpose.msra.mxu0 0
        %1247 = vmatprep.subr.bf16.mxu0 0
        %1248 = vmatpush1.bf16.xpose.msra.mxu0 0
        %1249 = vmatprep.subr.bf16.mxu0 0
        %1250 = vmatpush1.bf16.xpose.msra.mxu0 0
        %1251 = vmatprep.subr.bf16.mxu0 0
        %1252 = vmatpush1.bf16.xpose.msra.mxu0 0
        %1253 = vmatprep.subr.bf16.mxu0 0
        %1254 = vmatpush1.bf16.xpose.msra.mxu0 0
        %1255 = vmatprep.subr.bf16.mxu0 0
        %1256 = vmatpush1.bf16.xpose.msra.mxu0 0
        %1257 = vmatprep.subr.bf16.mxu0 0
        %1258 = vmatpush1.bf16.xpose.msra.mxu0 0
        %1259 = vmatprep.subr.bf16.mxu0 0
        %1260 = vmatpush1.bf16.xpose.msra.mxu0 0
        %1261 = vmatprep.subr.bf16.mxu0 0
        %1262 = vmatpush1.bf16.xpose.msra.mxu0 0
        %1263 = vmatprep.subr.bf16.mxu0 0
        %1264 = vmatpush1.bf16.xpose.msra.mxu0 0
        %1265 = vmatprep.subr.bf16.mxu0 0
        %1266 = vmatpush1.bf16.xpose.msra.mxu0 0
        %1267 = vmatprep.subr.bf16.mxu0 0
        %1268 = vmatpush1.bf16.xpose.msra.mxu0 0
        %1269 = vmatprep.subr.bf16.mxu0 0
        %1270 = vmatpush1.bf16.xpose.msra.mxu0 0
        %1271 = vmatprep.mubr.bf16.mxu0 0
        %1272 = vmatmul.mubr.bf16.gmra.mrb[0].mxu0 %v1234
        %v1273 = vpop.f32.mrb[0].mxu0
        %v1274 = vadd.f32 %v1092, %v1273
        %v1275 = vpop.f32.mrb[0].mxu0
        %v1276 = vpop.f32.mrb[0].mxu0
        %v1277 = vpop.f32.mrb[0].mxu0
        %1278 = vdwg.mxu0
        %v1279 = vsel %vm1094, %v1136, -inf
        %1280 = vmax.xlane.f32.xlu0 %v1279
        %v1281 = vpop.xlane.xlu0 %1280
        %v1282 = vsel %vm1094, %v1182, -inf
        %1283 = vmax.xlane.f32.xlu0 %v1282
        %v1284 = vpop.xlane.xlu0 %1283
        %v1285 = vsel %vm1094, %v1228, -inf
        %1286 = vmax.xlane.f32.xlu0 %v1285
        %v1287 = vpop.xlane.xlu0 %1286
        %v1288 = vsel %vm1094, %v1274, -inf
        %1289 = vmax.xlane.f32.xlu0 %v1288
        %v1290 = vpop.xlane.xlu0 %1289
        %v1291 = vsub.f32 %v1136, %v1281
        %v1292 = vsub.f32 %v1182, %v1284
        %v1293 = vsub.f32 %v1228, %v1287
        %v1294 = vsub.f32 %v1274, %v1290
        %v1295 = vmul.f32 %v1291, 1.442695
        %v1296 = vpow.pop %v1295
        %v1297 = vmul.f32 %v1292, 1.442695
        %v1298 = vpow.pop %v1297
        %v1299 = vmul.f32 %v1293, 1.442695
        %v1300 = vpow.pop %v1299
        %v1301 = vmul.f32 %v1294, 1.442695
        %v1302 = vpow.pop %v1301
        %v1303 = vsel %vm1094, %v1296, 0.0
        %1304 = vadd.xlane.f32.xlu0 %v1303
        %v1305 = vpop.xlane.xlu0 %1304
        %v1306 = vsel %vm1094, %v1298, 0.0
        %1307 = vadd.xlane.f32.xlu0 %v1306
        %v1308 = vpop.xlane.xlu0 %1307
        %v1309 = vsel %vm1094, %v1300, 0.0
        %1310 = vadd.xlane.f32.xlu0 %v1309
        %v1311 = vpop.xlane.xlu0 %1310
        %v1312 = vsel %vm1094, %v1302, 0.0
        %1313 = vadd.xlane.f32.xlu0 %v1312
        %v1314 = vpop.xlane.xlu0 %1313
        %v1315 = vrcp.pop %v1305
        %v1316 = vmul.f32 %v1296, %v1315
        %v1317 = vrcp.pop %v1308
        %v1318 = vmul.f32 %v1298, %v1317
        %v1319 = vrcp.pop %v1311
        %v1320 = vmul.f32 %v1300, %v1319
        %v1321 = vrcp.pop %v1314
        %v1322 = vmul.f32 %v1302, %v1321
        %v1323 = vpack.c.bf16 %v1316, %v1316
        %v1324 = vpack.c.bf16 %v1318, %v1318
        %v1325 = vpack.c.bf16 %v1320, %v1320
        %v1326 = vpack.c.bf16 %v1322, %v1322
        %v1327 = vpack.c.bf16 %v919, %v919
        %v1328 = vpack.c.bf16 %v971, %v971
        %v1329 = vpack.c.bf16 %v1023, %v1023
        %v1330 = vpack.c.bf16 %v1075, %v1075
        %v1332 = vsel %vm1094, %v1323, 0
        %vm1334 = vcmask 1043456
        %v1336 = vsel %vm1334, %v1327, 0
        %1338 = vmatprep.subr.bf16.mxu0 0
        %1339 = vmatpush1.bf16.msra.mxu0 %v1336
        %1340 = vmatprep.subr.bf16.mxu0 0
        %1341 = vmatpush1.bf16.msra.mxu0 0
        %1342 = vmatprep.subr.bf16.mxu0 0
        %1343 = vmatpush1.bf16.msra.mxu0 0
        %1344 = vmatprep.subr.bf16.mxu0 0
        %1345 = vmatpush1.bf16.msra.mxu0 0
        %1346 = vmatprep.subr.bf16.mxu0 0
        %1347 = vmatpush1.bf16.msra.mxu0 0
        %1348 = vmatprep.subr.bf16.mxu0 0
        %1349 = vmatpush1.bf16.msra.mxu0 0
        %1350 = vmatprep.subr.bf16.mxu0 0
        %1351 = vmatpush1.bf16.msra.mxu0 0
        %1352 = vmatprep.subr.bf16.mxu0 0
        %1353 = vmatpush1.bf16.msra.mxu0 0
        %1354 = vmatprep.subr.bf16.mxu0 0
        %1355 = vmatpush1.bf16.msra.mxu0 0
        %1356 = vmatprep.subr.bf16.mxu0 0
        %1357 = vmatpush1.bf16.msra.mxu0 0
        %1358 = vmatprep.subr.bf16.mxu0 0
        %1359 = vmatpush1.bf16.msra.mxu0 0
        %1360 = vmatprep.subr.bf16.mxu0 0
        %1361 = vmatpush1.bf16.msra.mxu0 0
        %1362 = vmatprep.subr.bf16.mxu0 0
        %1363 = vmatpush1.bf16.msra.mxu0 0
        %1364 = vmatprep.subr.bf16.mxu0 0
        %1365 = vmatpush1.bf16.msra.mxu0 0
        %1366 = vmatprep.subr.bf16.mxu0 0
        %1367 = vmatpush1.bf16.msra.mxu0 0
        %1368 = vmatprep.subr.bf16.mxu0 0
        %1369 = vmatpush1.bf16.msra.mxu0 0
        %1370 = vmatprep.mubr.bf16.mxu0 0
        %1371 = vmatmul.mubr.bf16.gmra.mrb[0].mxu0 %v1332
        %v1372 = vpop.f32.mrb[0].mxu0
        %v1373 = vadd.f32 0.0, %v1372
        %v1374 = vpop.f32.mrb[0].mxu0
        %v1375 = vpop.f32.mrb[0].mxu0
        %v1376 = vpop.f32.mrb[0].mxu0
        %1377 = vdwg.mxu0
        %v1379 = vsel %vm1094, %v1324, 0
        %v1382 = vsel %vm1334, %v1328, 0
        %1384 = vmatprep.subr.bf16.mxu0 0
        %1385 = vmatpush1.bf16.msra.mxu0 %v1382
        %1386 = vmatprep.subr.bf16.mxu0 0
        %1387 = vmatpush1.bf16.msra.mxu0 0
        %1388 = vmatprep.subr.bf16.mxu0 0
        %1389 = vmatpush1.bf16.msra.mxu0 0
        %1390 = vmatprep.subr.bf16.mxu0 0
        %1391 = vmatpush1.bf16.msra.mxu0 0
        %1392 = vmatprep.subr.bf16.mxu0 0
        %1393 = vmatpush1.bf16.msra.mxu0 0
        %1394 = vmatprep.subr.bf16.mxu0 0
        %1395 = vmatpush1.bf16.msra.mxu0 0
        %1396 = vmatprep.subr.bf16.mxu0 0
        %1397 = vmatpush1.bf16.msra.mxu0 0
        %1398 = vmatprep.subr.bf16.mxu0 0
        %1399 = vmatpush1.bf16.msra.mxu0 0
        %1400 = vmatprep.subr.bf16.mxu0 0
        %1401 = vmatpush1.bf16.msra.mxu0 0
        %1402 = vmatprep.subr.bf16.mxu0 0
        %1403 = vmatpush1.bf16.msra.mxu0 0
        %1404 = vmatprep.subr.bf16.mxu0 0
        %1405 = vmatpush1.bf16.msra.mxu0 0
        %1406 = vmatprep.subr.bf16.mxu0 0
        %1407 = vmatpush1.bf16.msra.mxu0 0
        %1408 = vmatprep.subr.bf16.mxu0 0
        %1409 = vmatpush1.bf16.msra.mxu0 0
        %1410 = vmatprep.subr.bf16.mxu0 0
        %1411 = vmatpush1.bf16.msra.mxu0 0
        %1412 = vmatprep.subr.bf16.mxu0 0
        %1413 = vmatpush1.bf16.msra.mxu0 0
        %1414 = vmatprep.subr.bf16.mxu0 0
        %1415 = vmatpush1.bf16.msra.mxu0 0
        %1416 = vmatprep.mubr.bf16.mxu0 0
        %1417 = vmatmul.mubr.bf16.gmra.mrb[0].mxu0 %v1379
        %v1418 = vpop.f32.mrb[0].mxu0
        %v1419 = vadd.f32 0.0, %v1418
        %v1420 = vpop.f32.mrb[0].mxu0
        %v1421 = vpop.f32.mrb[0].mxu0
        %v1422 = vpop.f32.mrb[0].mxu0
        %1423 = vdwg.mxu0
        %v1425 = vsel %vm1094, %v1325, 0
        %v1428 = vsel %vm1334, %v1329, 0
        %1430 = vmatprep.subr.bf16.mxu0 0
        %1431 = vmatpush1.bf16.msra.mxu0 %v1428
        %1432 = vmatprep.subr.bf16.mxu0 0
        %1433 = vmatpush1.bf16.msra.mxu0 0
        %1434 = vmatprep.subr.bf16.mxu0 0
        %1435 = vmatpush1.bf16.msra.mxu0 0
        %1436 = vmatprep.subr.bf16.mxu0 0
        %1437 = vmatpush1.bf16.msra.mxu0 0
        %1438 = vmatprep.subr.bf16.mxu0 0
        %1439 = vmatpush1.bf16.msra.mxu0 0
        %1440 = vmatprep.subr.bf16.mxu0 0
        %1441 = vmatpush1.bf16.msra.mxu0 0
        %1442 = vmatprep.subr.bf16.mxu0 0
        %1443 = vmatpush1.bf16.msra.mxu0 0
        %1444 = vmatprep.subr.bf16.mxu0 0
        %1445 = vmatpush1.bf16.msra.mxu0 0
        %1446 = vmatprep.subr.bf16.mxu0 0
        %1447 = vmatpush1.bf16.msra.mxu0 0
        %1448 = vmatprep.subr.bf16.mxu0 0
        %1449 = vmatpush1.bf16.msra.mxu0 0
        %1450 = vmatprep.subr.bf16.mxu0 0
        %1451 = vmatpush1.bf16.msra.mxu0 0
        %1452 = vmatprep.subr.bf16.mxu0 0
        %1453 = vmatpush1.bf16.msra.mxu0 0
        %1454 = vmatprep.subr.bf16.mxu0 0
        %1455 = vmatpush1.bf16.msra.mxu0 0
        %1456 = vmatprep.subr.bf16.mxu0 0
        %1457 = vmatpush1.bf16.msra.mxu0 0
        %1458 = vmatprep.subr.bf16.mxu0 0
        %1459 = vmatpush1.bf16.msra.mxu0 0
        %1460 = vmatprep.subr.bf16.mxu0 0
        %1461 = vmatpush1.bf16.msra.mxu0 0
        %1462 = vmatprep.mubr.bf16.mxu0 0
        %1463 = vmatmul.mubr.bf16.gmra.mrb[0].mxu0 %v1425
        %v1464 = vpop.f32.mrb[0].mxu0
        %v1465 = vadd.f32 0.0, %v1464
        %v1466 = vpop.f32.mrb[0].mxu0
        %v1467 = vpop.f32.mrb[0].mxu0
        %v1468 = vpop.f32.mrb[0].mxu0
        %1469 = vdwg.mxu0
        %v1471 = vsel %vm1094, %v1326, 0
        %v1474 = vsel %vm1334, %v1330, 0
        %1476 = vmatprep.subr.bf16.mxu0 0
        %1477 = vmatpush1.bf16.msra.mxu0 %v1474
        %1478 = vmatprep.subr.bf16.mxu0 0
        %1479 = vmatpush1.bf16.msra.mxu0 0
        %1480 = vmatprep.subr.bf16.mxu0 0
        %1481 = vmatpush1.bf16.msra.mxu0 0
        %1482 = vmatprep.subr.bf16.mxu0 0
        %1483 = vmatpush1.bf16.msra.mxu0 0
        %1484 = vmatprep.subr.bf16.mxu0 0
        %1485 = vmatpush1.bf16.msra.mxu0 0
        %1486 = vmatprep.subr.bf16.mxu0 0
        %1487 = vmatpush1.bf16.msra.mxu0 0
        %1488 = vmatprep.subr.bf16.mxu0 0
        %1489 = vmatpush1.bf16.msra.mxu0 0
        %1490 = vmatprep.subr.bf16.mxu0 0
        %1491 = vmatpush1.bf16.msra.mxu0 0
        %1492 = vmatprep.subr.bf16.mxu0 0
        %1493 = vmatpush1.bf16.msra.mxu0 0
        %1494 = vmatprep.subr.bf16.mxu0 0
        %1495 = vmatpush1.bf16.msra.mxu0 0
        %1496 = vmatprep.subr.bf16.mxu0 0
        %1497 = vmatpush1.bf16.msra.mxu0 0
        %1498 = vmatprep.subr.bf16.mxu0 0
        %1499 = vmatpush1.bf16.msra.mxu0 0
        %1500 = vmatprep.subr.bf16.mxu0 0
        %1501 = vmatpush1.bf16.msra.mxu0 0
        %1502 = vmatprep.subr.bf16.mxu0 0
        %1503 = vmatpush1.bf16.msra.mxu0 0
        %1504 = vmatprep.subr.bf16.mxu0 0
        %1505 = vmatpush1.bf16.msra.mxu0 0
        %1506 = vmatprep.subr.bf16.mxu0 0
        %1507 = vmatpush1.bf16.msra.mxu0 0
        %1508 = vmatprep.mubr.bf16.mxu0 0
        %1509 = vmatmul.mubr.bf16.gmra.mrb[0].mxu0 %v1471
        %v1510 = vpop.f32.mrb[0].mxu0
        %v1511 = vadd.f32 0.0, %v1510
        %v1512 = vpop.f32.mrb[0].mxu0
        %v1513 = vpop.f32.mrb[0].mxu0
        %v1514 = vpop.f32.mrb[0].mxu0
        %1515 = vdwg.mxu0
        %v1516 = vpack.c.bf16 %v1373, %v1373
        %v1517 = vpack.c.bf16 %v1419, %v1419
        %v1518 = vpack.c.bf16 %v1465, %v1465
        %v1519 = vpack.c.bf16 %v1511, %v1511
        %v1520 = vld [vmem:[%s4] sm:$0xf]
        %v1521 = vld [vmem:[%s4 + $0x4] sm:$0xf]
        %v1522 = vld [vmem:[%s4 + $0x8] sm:$0xf]
        %v1523 = vld [vmem:[%s4 + $0xc] sm:$0xf]
        %v1525 = vsel %vm1094, %v1516, 0
        %v1528 = vsel %vm1334, %v1520, 0
        %1530 = vmatprep.subr.bf16.mxu0 0
        %1531 = vmatpush1.bf16.msra.mxu0 %v1528
        %1532 = vmatprep.subr.bf16.mxu0 0
        %1533 = vmatpush1.bf16.msra.mxu0 0
        %1534 = vmatprep.subr.bf16.mxu0 0
        %1535 = vmatpush1.bf16.msra.mxu0 0
        %1536 = vmatprep.subr.bf16.mxu0 0
        %1537 = vmatpush1.bf16.msra.mxu0 0
        %1538 = vmatprep.subr.bf16.mxu0 0
        %1539 = vmatpush1.bf16.msra.mxu0 0
        %1540 = vmatprep.subr.bf16.mxu0 0
        %1541 = vmatpush1.bf16.msra.mxu0 0
        %1542 = vmatprep.subr.bf16.mxu0 0
        %1543 = vmatpush1.bf16.msra.mxu0 0
        %1544 = vmatprep.subr.bf16.mxu0 0
        %1545 = vmatpush1.bf16.msra.mxu0 0
        %1546 = vmatprep.subr.bf16.mxu0 0
        %1547 = vmatpush1.bf16.msra.mxu0 0
        %1548 = vmatprep.subr.bf16.mxu0 0
        %1549 = vmatpush1.bf16.msra.mxu0 0
        %1550 = vmatprep.subr.bf16.mxu0 0
        %1551 = vmatpush1.bf16.msra.mxu0 0
        %1552 = vmatprep.subr.bf16.mxu0 0
        %1553 = vmatpush1.bf16.msra.mxu0 0
        %1554 = vmatprep.subr.bf16.mxu0 0
        %1555 = vmatpush1.bf16.msra.mxu0 0
        %1556 = vmatprep.subr.bf16.mxu0 0
        %1557 = vmatpush1.bf16.msra.mxu0 0
        %1558 = vmatprep.subr.bf16.mxu0 0
        %1559 = vmatpush1.bf16.msra.mxu0 0
        %1560 = vmatprep.subr.bf16.mxu0 0
        %1561 = vmatpush1.bf16.msra.mxu0 0
        %1562 = vmatprep.mubr.bf16.mxu0 0
        %1563 = vmatmul.mubr.bf16.gmra.mrb[0].mxu0 %v1525
        %v1564 = vpop.f32.mrb[0].mxu0
        %v1565 = vadd.f32 0.0, %v1564
        %v1566 = vpop.f32.mrb[0].mxu0
        %v1567 = vpop.f32.mrb[0].mxu0
        %v1568 = vpop.f32.mrb[0].mxu0
        %1569 = vdwg.mxu0
        %v1571 = vsel %vm1094, %v1517, 0
        %v1574 = vsel %vm1334, %v1521, 0
        %1576 = vmatprep.subr.bf16.mxu0 0
        %1577 = vmatpush1.bf16.msra.mxu0 %v1574
        %1578 = vmatprep.subr.bf16.mxu0 0
        %1579 = vmatpush1.bf16.msra.mxu0 0
        %1580 = vmatprep.subr.bf16.mxu0 0
        %1581 = vmatpush1.bf16.msra.mxu0 0
        %1582 = vmatprep.subr.bf16.mxu0 0
        %1583 = vmatpush1.bf16.msra.mxu0 0
        %1584 = vmatprep.subr.bf16.mxu0 0
        %1585 = vmatpush1.bf16.msra.mxu0 0
        %1586 = vmatprep.subr.bf16.mxu0 0
        %1587 = vmatpush1.bf16.msra.mxu0 0
        %1588 = vmatprep.subr.bf16.mxu0 0
        %1589 = vmatpush1.bf16.msra.mxu0 0
        %1590 = vmatprep.subr.bf16.mxu0 0
        %1591 = vmatpush1.bf16.msra.mxu0 0
        %1592 = vmatprep.subr.bf16.mxu0 0
        %1593 = vmatpush1.bf16.msra.mxu0 0
        %1594 = vmatprep.subr.bf16.mxu0 0
        %1595 = vmatpush1.bf16.msra.mxu0 0
        %1596 = vmatprep.subr.bf16.mxu0 0
        %1597 = vmatpush1.bf16.msra.mxu0 0
        %1598 = vmatprep.subr.bf16.mxu0 0
        %1599 = vmatpush1.bf16.msra.mxu0 0
        %1600 = vmatprep.subr.bf16.mxu0 0
        %1601 = vmatpush1.bf16.msra.mxu0 0
        %1602 = vmatprep.subr.bf16.mxu0 0
        %1603 = vmatpush1.bf16.msra.mxu0 0
        %1604 = vmatprep.subr.bf16.mxu0 0
        %1605 = vmatpush1.bf16.msra.mxu0 0
        %1606 = vmatprep.subr.bf16.mxu0 0
        %1607 = vmatpush1.bf16.msra.mxu0 0
        %1608 = vmatprep.mubr.bf16.mxu0 0
        %1609 = vmatmul.mubr.bf16.gmra.mrb[0].mxu0 %v1571
        %v1610 = vpop.f32.mrb[0].mxu0
        %v1611 = vadd.f32 0.0, %v1610
        %v1612 = vpop.f32.mrb[0].mxu0
        %v1613 = vpop.f32.mrb[0].mxu0
        %v1614 = vpop.f32.mrb[0].mxu0
        %1615 = vdwg.mxu0
        %v1617 = vsel %vm1094, %v1518, 0
        %v1620 = vsel %vm1334, %v1522, 0
        %1622 = vmatprep.subr.bf16.mxu0 0
        %1623 = vmatpush1.bf16.msra.mxu0 %v1620
        %1624 = vmatprep.subr.bf16.mxu0 0
        %1625 = vmatpush1.bf16.msra.mxu0 0
        %1626 = vmatprep.subr.bf16.mxu0 0
        %1627 = vmatpush1.bf16.msra.mxu0 0
        %1628 = vmatprep.subr.bf16.mxu0 0
        %1629 = vmatpush1.bf16.msra.mxu0 0
        %1630 = vmatprep.subr.bf16.mxu0 0
        %1631 = vmatpush1.bf16.msra.mxu0 0
        %1632 = vmatprep.subr.bf16.mxu0 0
        %1633 = vmatpush1.bf16.msra.mxu0 0
        %1634 = vmatprep.subr.bf16.mxu0 0
        %1635 = vmatpush1.bf16.msra.mxu0 0
        %1636 = vmatprep.subr.bf16.mxu0 0
        %1637 = vmatpush1.bf16.msra.mxu0 0
        %1638 = vmatprep.subr.bf16.mxu0 0
        %1639 = vmatpush1.bf16.msra.mxu0 0
        %1640 = vmatprep.subr.bf16.mxu0 0
        %1641 = vmatpush1.bf16.msra.mxu0 0
        %1642 = vmatprep.subr.bf16.mxu0 0
        %1643 = vmatpush1.bf16.msra.mxu0 0
        %1644 = vmatprep.subr.bf16.mxu0 0
        %1645 = vmatpush1.bf16.msra.mxu0 0
        %1646 = vmatprep.subr.bf16.mxu0 0
        %1647 = vmatpush1.bf16.msra.mxu0 0
        %1648 = vmatprep.subr.bf16.mxu0 0
        %1649 = vmatpush1.bf16.msra.mxu0 0
        %1650 = vmatprep.subr.bf16.mxu0 0
        %1651 = vmatpush1.bf16.msra.mxu0 0
        %1652 = vmatprep.subr.bf16.mxu0 0
        %1653 = vmatpush1.bf16.msra.mxu0 0
        %1654 = vmatprep.mubr.bf16.mxu0 0
        %1655 = vmatmul.mubr.bf16.gmra.mrb[0].mxu0 %v1617
        %v1656 = vpop.f32.mrb[0].mxu0
        %v1657 = vadd.f32 0.0, %v1656
        %v1658 = vpop.f32.mrb[0].mxu0
        %v1659 = vpop.f32.mrb[0].mxu0
        %v1660 = vpop.f32.mrb[0].mxu0
        %1661 = vdwg.mxu0
        %v1663 = vsel %vm1094, %v1519, 0
        %v1666 = vsel %vm1334, %v1523, 0
        %1668 = vmatprep.subr.bf16.mxu0 0
        %1669 = vmatpush1.bf16.msra.mxu0 %v1666
        %1670 = vmatprep.subr.bf16.mxu0 0
        %1671 = vmatpush1.bf16.msra.mxu0 0
        %1672 = vmatprep.subr.bf16.mxu0 0
        %1673 = vmatpush1.bf16.msra.mxu0 0
        %1674 = vmatprep.subr.bf16.mxu0 0
        %1675 = vmatpush1.bf16.msra.mxu0 0
        %1676 = vmatprep.subr.bf16.mxu0 0
        %1677 = vmatpush1.bf16.msra.mxu0 0
        %1678 = vmatprep.subr.bf16.mxu0 0
        %1679 = vmatpush1.bf16.msra.mxu0 0
        %1680 = vmatprep.subr.bf16.mxu0 0
        %1681 = vmatpush1.bf16.msra.mxu0 0
        %1682 = vmatprep.subr.bf16.mxu0 0
        %1683 = vmatpush1.bf16.msra.mxu0 0
        %1684 = vmatprep.subr.bf16.mxu0 0
        %1685 = vmatpush1.bf16.msra.mxu0 0
        %1686 = vmatprep.subr.bf16.mxu0 0
        %1687 = vmatpush1.bf16.msra.mxu0 0
        %1688 = vmatprep.subr.bf16.mxu0 0
        %1689 = vmatpush1.bf16.msra.mxu0 0
        %1690 = vmatprep.subr.bf16.mxu0 0
        %1691 = vmatpush1.bf16.msra.mxu0 0
        %1692 = vmatprep.subr.bf16.mxu0 0
        %1693 = vmatpush1.bf16.msra.mxu0 0
        %1694 = vmatprep.subr.bf16.mxu0 0
        %1695 = vmatpush1.bf16.msra.mxu0 0
        %1696 = vmatprep.subr.bf16.mxu0 0
        %1697 = vmatpush1.bf16.msra.mxu0 0
        %1698 = vmatprep.subr.bf16.mxu0 0
        %1699 = vmatpush1.bf16.msra.mxu0 0
        %1700 = vmatprep.mubr.bf16.mxu0 0
        %1701 = vmatmul.mubr.bf16.gmra.mrb[0].mxu0 %v1663
        %v1702 = vpop.f32.mrb[0].mxu0
        %v1703 = vadd.f32 0.0, %v1702
        %v1704 = vpop.f32.mrb[0].mxu0
        %v1705 = vpop.f32.mrb[0].mxu0
        %v1706 = vpop.f32.mrb[0].mxu0
        %1707 = vdwg.mxu0
        %v1708 = vsel %vm464, %v1565, 0.0
        %v1709 = vsel %vm464, %v1611, 0.0
        %v1710 = vadd.f32 %v1708, %v1709
        %v1711 = vsel %vm464, %v1657, 0.0
        %v1712 = vadd.f32 %v1710, %v1711
        %v1713 = vsel %vm464, %v1703, 0.0
        %v1714 = vadd.f32 %v1712, %v1713
        %v1715 = vlaneseq
        %v1716 = vshrl.u32 %v1715, 7
        %v1717 = vsub.s32 1, %v1716
        %v1718 = vrot.slane %v318, %v1717
        %v1719 = vadd.f32 %v1714, %v1718
        %v1720 = vadd.f32 %v1719, %v316
        %v1721 = vsel %vm464, %v1720, 0.0
        %1722 = vadd.xlane.f32.xlu0 %v1721
        %v1723 = vpop.xlane.xlu0 %1722
        %v1724 = vrcp.pop 32.0
        %v1725 = vmul.f32 %v1723, %v1724
        %v1726 = vmul.f32 %v1720, %v1720
        %v1727 = vsel %vm464, %v1726, 0.0
        %1728 = vadd.xlane.f32.xlu0 %v1727
        %v1729 = vpop.xlane.xlu0 %1728
        %v1730 = vmul.f32 %v1729, %v1724
        %v1731 = vmul.f32 %v1725, %v1725
        %v1732 = vsub.f32 %v1730, %v1731
        %v1733 = vsub.f32 %v1720, %v1725
        %v1734 = vadd.f32 %v1732, 1e-12
        %v1735 = vrsqrt.pop %v1734
        %v1736 = vmul.f32 %v1733, %v1735
        %v1737 = vlaneseq
        %v1738 = vshrl.u32 %v1737, 7
        %v1739 = vsub.s32 3, %v1738
        %v1740 = vrot.slane %v318, %v1739
        %v1741 = vmul.f32 %v1736, %v1740
        %v1742 = vlaneseq
        %v1743 = vshrl.u32 %v1742, 7
        %v1744 = vsub.s32 4, %v1743
        %v1745 = vrot.slane %v318, %v1744
        %v1746 = vadd.f32 %v1741, %v1745
        %v1747 = vpack.c.bf16 %v1746, %v1746
        %v1748 = vld [vmem:[%s5] sm:$0xf]
        %v1749 = vld [vmem:[%s5 + $0x4] sm:$0xf]
        %v1750 = vld [vmem:[%s5 + $0x8] sm:$0xf]
        %v1751 = vld [vmem:[%s5 + $0xc] sm:$0xf]
        %v1752 = vlaneseq
        %v1753 = vshrl.u32 %v1752, 7
        %v1754 = vsub.s32 0, %v1753
        %v1755 = vrot.slane %v318, %v1754
        %v1760 = vunpack.c.l.b16 %v1748
        %v1761 = vunpack.c.l.b16 %v1749
        %v1762 = vunpack.c.l.b16 %v1750
        %v1763 = vunpack.c.l.b16 %v1751
        %v1764 = vpack.c.b16 %v1761, %v1760
        %v1765 = vpack.c.b16 %v1763, %v1762
        %v1769 = vsel %vm464, %v1747, 0
        %1771 = vmatprep.subr.bf16.mxu0 0
        %1772 = vmatpush1.bf16.msra.mxu0 %v1764
        %1773 = vmatprep.subr.bf16.mxu0 0
        %1774 = vmatpush1.bf16.msra.mxu0 %v1765
        %1775 = vmatprep.subr.bf16.mxu0 0
        %1776 = vmatpush1.bf16.msra.mxu0 0
        %1777 = vmatprep.subr.bf16.mxu0 0
        %1778 = vmatpush1.bf16.msra.mxu0 0
        %1779 = vmatprep.subr.bf16.mxu0 0
        %1780 = vmatpush1.bf16.msra.mxu0 0
        %1781 = vmatprep.subr.bf16.mxu0 0
        %1782 = vmatpush1.bf16.msra.mxu0 0
        %1783 = vmatprep.subr.bf16.mxu0 0
        %1784 = vmatpush1.bf16.msra.mxu0 0
        %1785 = vmatprep.subr.bf16.mxu0 0
        %1786 = vmatpush1.bf16.msra.mxu0 0
        %1787 = vmatprep.subr.bf16.mxu0 0
        %1788 = vmatpush1.bf16.msra.mxu0 0
        %1789 = vmatprep.subr.bf16.mxu0 0
        %1790 = vmatpush1.bf16.msra.mxu0 0
        %1791 = vmatprep.subr.bf16.mxu0 0
        %1792 = vmatpush1.bf16.msra.mxu0 0
        %1793 = vmatprep.subr.bf16.mxu0 0
        %1794 = vmatpush1.bf16.msra.mxu0 0
        %1795 = vmatprep.subr.bf16.mxu0 0
        %1796 = vmatpush1.bf16.msra.mxu0 0
        %1797 = vmatprep.subr.bf16.mxu0 0
        %1798 = vmatpush1.bf16.msra.mxu0 0
        %1799 = vmatprep.subr.bf16.mxu0 0
        %1800 = vmatpush1.bf16.msra.mxu0 0
        %1801 = vmatprep.subr.bf16.mxu0 0
        %1802 = vmatpush1.bf16.msra.mxu0 0
        %1803 = vmatprep.mubr.bf16.mxu0 0
        %1804 = vmatmul.mubr.bf16.gmra.mrb[0].mxu0 %v1769
        %v1805 = vpop.f32.mrb[0].mxu0
        %v1806 = vadd.f32 %v1755, %v1805
        %v1807 = vpop.f32.mrb[0].mxu0
        %v1808 = vpop.f32.mrb[0].mxu0
        %v1809 = vpop.f32.mrb[0].mxu0
        %1810 = vdwg.mxu0
        %v1811 = vmul.f32 %v1806, 0.5
        %v1812 = vmul.f32 %v1806, 0.70710677
        %v1813 = verf.f32.pop %v1812
        %v1814 = vadd.f32 %v1813, 1.0
        %v1815 = vmul.f32 %v1811, %v1814
        %v1816 = vpack.c.bf16 %v1815, %v1815
        %v1817 = vld [vmem:[%s6] sm:$0xf]
        %v1818 = vld [vmem:[%s6 + $0x4] sm:$0xf]
        %v1819 = vld [vmem:[%s6 + $0x8] sm:$0xf]
        %v1820 = vld [vmem:[%s6 + $0xc] sm:$0xf]
        %v1821 = vld [vmem:[%s6 + $0x10] sm:$0xf]
        %v1822 = vld [vmem:[%s6 + $0x14] sm:$0xf]
        %v1823 = vld [vmem:[%s6 + $0x18] sm:$0xf]
        %v1824 = vld [vmem:[%s6 + $0x1c] sm:$0xf]
        %v1825 = vlaneseq
        %v1826 = vshrl.u32 %v1825, 7
        %v1827 = vsub.s32 2, %v1826
        %v1828 = vrot.slane %v318, %v1827
        %v1837 = vunpack.c.l.b16 %v1817
        %v1838 = vunpack.c.l.b16 %v1818
        %v1839 = vunpack.c.l.b16 %v1819
        %v1840 = vunpack.c.l.b16 %v1820
        %v1841 = vunpack.c.l.b16 %v1821
        %v1842 = vunpack.c.l.b16 %v1822
        %v1843 = vunpack.c.l.b16 %v1823
        %v1844 = vunpack.c.l.b16 %v1824
        %v1845 = vpack.c.b16 %v1838, %v1837
        %v1846 = vpack.c.b16 %v1840, %v1839
        %v1847 = vpack.c.b16 %v1842, %v1841
        %v1848 = vpack.c.b16 %v1844, %v1843
        %vm1853 = vcmask 523264
        %v1855 = vsel %vm1853, %v1816, 0
        %1857 = vmatprep.subr.bf16.mxu0 0
        %1858 = vmatpush1.bf16.msra.mxu0 %v1845
        %1859 = vmatprep.subr.bf16.mxu0 0
        %1860 = vmatpush1.bf16.msra.mxu0 %v1846
        %1861 = vmatprep.subr.bf16.mxu0 0
        %1862 = vmatpush1.bf16.msra.mxu0 %v1847
        %1863 = vmatprep.subr.bf16.mxu0 0
        %1864 = vmatpush1.bf16.msra.mxu0 %v1848
        %1865 = vmatprep.subr.bf16.mxu0 0
        %1866 = vmatpush1.bf16.msra.mxu0 0
        %1867 = vmatprep.subr.bf16.mxu0 0
        %1868 = vmatpush1.bf16.msra.mxu0 0
        %1869 = vmatprep.subr.bf16.mxu0 0
        %1870 = vmatpush1.bf16.msra.mxu0 0
        %1871 = vmatprep.subr.bf16.mxu0 0
        %1872 = vmatpush1.bf16.msra.mxu0 0
        %1873 = vmatprep.subr.bf16.mxu0 0
        %1874 = vmatpush1.bf16.msra.mxu0 0
        %1875 = vmatprep.subr.bf16.mxu0 0
        %1876 = vmatpush1.bf16.msra.mxu0 0
        %1877 = vmatprep.subr.bf16.mxu0 0
        %1878 = vmatpush1.bf16.msra.mxu0 0
        %1879 = vmatprep.subr.bf16.mxu0 0
        %1880 = vmatpush1.bf16.msra.mxu0 0
        %1881 = vmatprep.subr.bf16.mxu0 0
        %1882 = vmatpush1.bf16.msra.mxu0 0
        %1883 = vmatprep.subr.bf16.mxu0 0
        %1884 = vmatpush1.bf16.msra.mxu0 0
        %1885 = vmatprep.subr.bf16.mxu0 0
        %1886 = vmatpush1.bf16.msra.mxu0 0
        %1887 = vmatprep.subr.bf16.mxu0 0
        %1888 = vmatpush1.bf16.msra.mxu0 0
        %1889 = vmatprep.mubr.bf16.mxu0 0
        %1890 = vmatmul.mubr.bf16.gmra.mrb[0].mxu0 %v1855
        %v1891 = vpop.f32.mrb[0].mxu0
        %v1892 = vadd.f32 %v1828, %v1891
        %v1893 = vpop.f32.mrb[0].mxu0
        %v1894 = vpop.f32.mrb[0].mxu0
        %v1895 = vpop.f32.mrb[0].mxu0
        %1896 = vdwg.mxu0
        %v1897 = vadd.f32 %v1892, %v1746
        %v1898 = vsel %vm464, %v1897, 0.0
        %1899 = vadd.xlane.f32.xlu0 %v1898
        %v1900 = vpop.xlane.xlu0 %1899
        %v1901 = vmul.f32 %v1900, %v1724
        %v1902 = vmul.f32 %v1897, %v1897
        %v1903 = vsel %vm464, %v1902, 0.0
        %1904 = vadd.xlane.f32.xlu0 %v1903
        %v1905 = vpop.xlane.xlu0 %1904
        %v1906 = vmul.f32 %v1905, %v1724
        %v1907 = vmul.f32 %v1901, %v1901
        %v1908 = vsub.f32 %v1906, %v1907
        %v1909 = vsub.f32 %v1897, %v1901
        %v1910 = vadd.f32 %v1908, 1e-12
        %v1911 = vrsqrt.pop %v1910
        %v1912 = vmul.f32 %v1909, %v1911
        %v1913 = vlaneseq
        %v1914 = vshrl.u32 %v1913, 7
        %v1915 = vsub.s32 5, %v1914
        %v1916 = vrot.slane %v318, %v1915
        %v1917 = vmul.f32 %v1912, %v1916
        %v1918 = vlaneseq
        %v1919 = vshrl.u32 %v1918, 7
        %v1920 = vsub.s32 6, %v1919
        %v1921 = vrot.slane %v318, %v1920
        %v1922 = vadd.f32 %v1917, %v1921
        %s1923 = scalar_lea.vmem %s7, 8
        %v1924 = vld [vmem:[%s1923] sm:$0xff]
        %v1925 = vpack.c.bf16 %v1922, %v1922
        %s1926 = scalar_lea.vmem %s2, 192
        %v1927 = vld [vmem:[%s1926] sm:$0xf]
        %v1928 = vld [vmem:[%s1926 + $0x4] sm:$0xf]
        %v1929 = vld [vmem:[%s1926 + $0x8] sm:$0xf]
        %v1930 = vld [vmem:[%s1926 + $0xc] sm:$0xf]
        %v1931 = vld [vmem:[%s1926 + $0x10] sm:$0xf]
        %v1932 = vld [vmem:[%s1926 + $0x14] sm:$0xf]
        %v1933 = vld [vmem:[%s1926 + $0x18] sm:$0xf]
        %v1934 = vld [vmem:[%s1926 + $0x1c] sm:$0xf]
        %v1935 = vld [vmem:[%s1926 + $0x20] sm:$0xf]
        %v1936 = vld [vmem:[%s1926 + $0x24] sm:$0xf]
        %v1937 = vld [vmem:[%s1926 + $0x28] sm:$0xf]
        %v1938 = vld [vmem:[%s1926 + $0x2c] sm:$0xf]
        %v1939 = vld [vmem:[%s1926 + $0x30] sm:$0xf]
        %v1940 = vld [vmem:[%s1926 + $0x34] sm:$0xf]
        %v1941 = vld [vmem:[%s1926 + $0x38] sm:$0xf]
        %v1942 = vld [vmem:[%s1926 + $0x3c] sm:$0xf]
        %v1943 = vld [vmem:[%s1926 + $0x40] sm:$0xf]
        %v1944 = vld [vmem:[%s1926 + $0x44] sm:$0xf]
        %v1945 = vld [vmem:[%s1926 + $0x48] sm:$0xf]
        %v1946 = vld [vmem:[%s1926 + $0x4c] sm:$0xf]
        %v1947 = vld [vmem:[%s1926 + $0x50] sm:$0xf]
        %v1948 = vld [vmem:[%s1926 + $0x54] sm:$0xf]
        %v1949 = vld [vmem:[%s1926 + $0x58] sm:$0xf]
        %v1950 = vld [vmem:[%s1926 + $0x5c] sm:$0xf]
        %v1951 = vld [vmem:[%s1926 + $0x60] sm:$0xf]
        %v1952 = vld [vmem:[%s1926 + $0x64] sm:$0xf]
        %v1953 = vld [vmem:[%s1926 + $0x68] sm:$0xf]
        %v1954 = vld [vmem:[%s1926 + $0x6c] sm:$0xf]
        %v1955 = vld [vmem:[%s1926 + $0x70] sm:$0xf]
        %v1956 = vld [vmem:[%s1926 + $0x74] sm:$0xf]
        %v1957 = vld [vmem:[%s1926 + $0x78] sm:$0xf]
        %v1958 = vld [vmem:[%s1926 + $0x7c] sm:$0xf]
        %v1959 = vld [vmem:[%s1926 + $0x80] sm:$0xf]
        %v1960 = vld [vmem:[%s1926 + $0x84] sm:$0xf]
        %v1961 = vld [vmem:[%s1926 + $0x88] sm:$0xf]
        %v1962 = vld [vmem:[%s1926 + $0x8c] sm:$0xf]
        %v1963 = vld [vmem:[%s1926 + $0x90] sm:$0xf]
        %v1964 = vld [vmem:[%s1926 + $0x94] sm:$0xf]
        %v1965 = vld [vmem:[%s1926 + $0x98] sm:$0xf]
        %v1966 = vld [vmem:[%s1926 + $0x9c] sm:$0xf]
        %v1967 = vld [vmem:[%s1926 + $0xa0] sm:$0xf]
        %v1968 = vld [vmem:[%s1926 + $0xa4] sm:$0xf]
        %v1969 = vld [vmem:[%s1926 + $0xa8] sm:$0xf]
        %v1970 = vld [vmem:[%s1926 + $0xac] sm:$0xf]
        %v1971 = vld [vmem:[%s1926 + $0xb0] sm:$0xf]
        %v1972 = vld [vmem:[%s1926 + $0xb4] sm:$0xf]
        %v1973 = vld [vmem:[%s1926 + $0xb8] sm:$0xf]
        %v1974 = vld [vmem:[%s1926 + $0xbc] sm:$0xf]
        %s1975 = scalar_lea.vmem %s3, 12
        %v1976 = vld [vmem:[%s1975] sm:$0x1]
        %v1977 = vld [vmem:[%s1975 + $0x1] sm:$0x1]
        %v1978 = vld [vmem:[%s1975 + $0x2] sm:$0x1]
        %v1979 = vld [vmem:[%s1975 + $0x3] sm:$0x1]
        %v1980 = vld [vmem:[%s1975 + $0x4] sm:$0x1]
        %v1981 = vld [vmem:[%s1975 + $0x5] sm:$0x1]
        %v1982 = vld [vmem:[%s1975 + $0x6] sm:$0x1]
        %v1983 = vld [vmem:[%s1975 + $0x7] sm:$0x1]
        %v1984 = vld [vmem:[%s1975 + $0x8] sm:$0x1]
        %v1985 = vld [vmem:[%s1975 + $0x9] sm:$0x1]
        %v1986 = vld [vmem:[%s1975 + $0xa] sm:$0x1]
        %v1987 = vld [vmem:[%s1975 + $0xb] sm:$0x1]
        %v2000 = vlaneseq
        %v2001 = vshrl.u32 %v2000, 7
        %v2002 = vsub.s32 0, %v2001
        %v2003 = vrot.slane %v1976, %v2002
        %v2004 = vlaneseq
        %v2005 = vshrl.u32 %v2004, 7
        %v2006 = vsub.s32 0, %v2005
        %v2007 = vrot.slane %v1977, %v2006
        %v2008 = vlaneseq
        %v2009 = vshrl.u32 %v2008, 7
        %v2010 = vsub.s32 0, %v2009
        %v2011 = vrot.slane %v1978, %v2010
        %v2012 = vlaneseq
        %v2013 = vshrl.u32 %v2012, 7
        %v2014 = vsub.s32 0, %v2013
        %v2015 = vrot.slane %v1979, %v2014
        %v2016 = vlaneseq
        %v2017 = vshrl.u32 %v2016, 7
        %v2018 = vsub.s32 0, %v2017
        %v2019 = vrot.slane %v1980, %v2018
        %v2020 = vlaneseq
        %v2021 = vshrl.u32 %v2020, 7
        %v2022 = vsub.s32 0, %v2021
        %v2023 = vrot.slane %v1981, %v2022
        %v2024 = vlaneseq
        %v2025 = vshrl.u32 %v2024, 7
        %v2026 = vsub.s32 0, %v2025
        %v2027 = vrot.slane %v1982, %v2026
        %v2028 = vlaneseq
        %v2029 = vshrl.u32 %v2028, 7
        %v2030 = vsub.s32 0, %v2029
        %v2031 = vrot.slane %v1983, %v2030
        %v2032 = vlaneseq
        %v2033 = vshrl.u32 %v2032, 7
        %v2034 = vsub.s32 0, %v2033
        %v2035 = vrot.slane %v1984, %v2034
        %v2036 = vlaneseq
        %v2037 = vshrl.u32 %v2036, 7
        %v2038 = vsub.s32 0, %v2037
        %v2039 = vrot.slane %v1985, %v2038
        %v2040 = vlaneseq
        %v2041 = vshrl.u32 %v2040, 7
        %v2042 = vsub.s32 0, %v2041
        %v2043 = vrot.slane %v1986, %v2042
        %v2044 = vlaneseq
        %v2045 = vshrl.u32 %v2044, 7
        %v2046 = vsub.s32 0, %v2045
        %v2047 = vrot.slane %v1987, %v2046
        %v2064 = vunpack.c.l.b16 %v1927
        %v2065 = vunpack.c.l.b16 %v1928
        %v2066 = vunpack.c.l.b16 %v1929
        %v2067 = vunpack.c.l.b16 %v1930
        %v2068 = vpack.c.b16 %v2065, %v2064
        %v2069 = vpack.c.b16 %v2067, %v2066
        %v2073 = vsel %vm464, %v1925, 0
        %2075 = vmatprep.subr.bf16.mxu0 0
        %2076 = vmatpush1.bf16.msra.mxu0 %v2068
        %2077 = vmatprep.subr.bf16.mxu0 0
        %2078 = vmatpush1.bf16.msra.mxu0 %v2069
        %2079 = vmatprep.subr.bf16.mxu0 0
        %2080 = vmatpush1.bf16.msra.mxu0 0
        %2081 = vmatprep.subr.bf16.mxu0 0
        %2082 = vmatpush1.bf16.msra.mxu0 0
        %2083 = vmatprep.subr.bf16.mxu0 0
        %2084 = vmatpush1.bf16.msra.mxu0 0
        %2085 = vmatprep.subr.bf16.mxu0 0
        %2086 = vmatpush1.bf16.msra.mxu0 0
        %2087 = vmatprep.subr.bf16.mxu0 0
        %2088 = vmatpush1.bf16.msra.mxu0 0
        %2089 = vmatprep.subr.bf16.mxu0 0
        %2090 = vmatpush1.bf16.msra.mxu0 0
        %2091 = vmatprep.subr.bf16.mxu0 0
        %2092 = vmatpush1.bf16.msra.mxu0 0
        %2093 = vmatprep.subr.bf16.mxu0 0
        %2094 = vmatpush1.bf16.msra.mxu0 0
        %2095 = vmatprep.subr.bf16.mxu0 0
        %2096 = vmatpush1.bf16.msra.mxu0 0
        %2097 = vmatprep.subr.bf16.mxu0 0
        %2098 = vmatpush1.bf16.msra.mxu0 0
        %2099 = vmatprep.subr.bf16.mxu0 0
        %2100 = vmatpush1.bf16.msra.mxu0 0
        %2101 = vmatprep.subr.bf16.mxu0 0
        %2102 = vmatpush1.bf16.msra.mxu0 0
        %2103 = vmatprep.subr.bf16.mxu0 0
        %2104 = vmatpush1.bf16.msra.mxu0 0
        %2105 = vmatprep.subr.bf16.mxu0 0
        %2106 = vmatpush1.bf16.msra.mxu0 0
        %2107 = vmatprep.mubr.bf16.mxu0 0
        %2108 = vmatmul.mubr.bf16.gmra.mrb[0].mxu0 %v2073
        %v2109 = vpop.f32.mrb[0].mxu0
        %v2110 = vadd.f32 %v2003, %v2109
        %v2111 = vpop.f32.mrb[0].mxu0
        %v2112 = vpop.f32.mrb[0].mxu0
        %v2113 = vpop.f32.mrb[0].mxu0
        %2114 = vdwg.mxu0
        %v2119 = vunpack.c.l.b16 %v1931
        %v2120 = vunpack.c.l.b16 %v1932
        %v2121 = vunpack.c.l.b16 %v1933
        %v2122 = vunpack.c.l.b16 %v1934
        %v2123 = vpack.c.b16 %v2120, %v2119
        %v2124 = vpack.c.b16 %v2122, %v2121
        %2127 = vmatprep.subr.bf16.mxu0 0
        %2128 = vmatpush1.bf16.msra.mxu0 %v2123
        %2129 = vmatprep.subr.bf16.mxu0 0
        %2130 = vmatpush1.bf16.msra.mxu0 %v2124
        %2131 = vmatprep.subr.bf16.mxu0 0
        %2132 = vmatpush1.bf16.msra.mxu0 0
        %2133 = vmatprep.subr.bf16.mxu0 0
        %2134 = vmatpush1.bf16.msra.mxu0 0
        %2135 = vmatprep.subr.bf16.mxu0 0
        %2136 = vmatpush1.bf16.msra.mxu0 0
        %2137 = vmatprep.subr.bf16.mxu0 0
        %2138 = vmatpush1.bf16.msra.mxu0 0
        %2139 = vmatprep.subr.bf16.mxu0 0
        %2140 = vmatpush1.bf16.msra.mxu0 0
        %2141 = vmatprep.subr.bf16.mxu0 0
        %2142 = vmatpush1.bf16.msra.mxu0 0
        %2143 = vmatprep.subr.bf16.mxu0 0
        %2144 = vmatpush1.bf16.msra.mxu0 0
        %2145 = vmatprep.subr.bf16.mxu0 0
        %2146 = vmatpush1.bf16.msra.mxu0 0
        %2147 = vmatprep.subr.bf16.mxu0 0
        %2148 = vmatpush1.bf16.msra.mxu0 0
        %2149 = vmatprep.subr.bf16.mxu0 0
        %2150 = vmatpush1.bf16.msra.mxu0 0
        %2151 = vmatprep.subr.bf16.mxu0 0
        %2152 = vmatpush1.bf16.msra.mxu0 0
        %2153 = vmatprep.subr.bf16.mxu0 0
        %2154 = vmatpush1.bf16.msra.mxu0 0
        %2155 = vmatprep.subr.bf16.mxu0 0
        %2156 = vmatpush1.bf16.msra.mxu0 0
        %2157 = vmatprep.subr.bf16.mxu0 0
        %2158 = vmatpush1.bf16.msra.mxu0 0
        %2159 = vmatprep.mubr.bf16.mxu0 0
        %2160 = vmatmul.mubr.bf16.gmra.mrb[0].mxu0 %v2073
        %v2161 = vpop.f32.mrb[0].mxu0
        %v2162 = vadd.f32 %v2007, %v2161
        %v2163 = vpop.f32.mrb[0].mxu0
        %v2164 = vpop.f32.mrb[0].mxu0
        %v2165 = vpop.f32.mrb[0].mxu0
        %2166 = vdwg.mxu0
        %v2171 = vunpack.c.l.b16 %v1935
        %v2172 = vunpack.c.l.b16 %v1936
        %v2173 = vunpack.c.l.b16 %v1937
        %v2174 = vunpack.c.l.b16 %v1938
        %v2175 = vpack.c.b16 %v2172, %v2171
        %v2176 = vpack.c.b16 %v2174, %v2173
        %2179 = vmatprep.subr.bf16.mxu0 0
        %2180 = vmatpush1.bf16.msra.mxu0 %v2175
        %2181 = vmatprep.subr.bf16.mxu0 0
        %2182 = vmatpush1.bf16.msra.mxu0 %v2176
        %2183 = vmatprep.subr.bf16.mxu0 0
        %2184 = vmatpush1.bf16.msra.mxu0 0
        %2185 = vmatprep.subr.bf16.mxu0 0
        %2186 = vmatpush1.bf16.msra.mxu0 0
        %2187 = vmatprep.subr.bf16.mxu0 0
        %2188 = vmatpush1.bf16.msra.mxu0 0
        %2189 = vmatprep.subr.bf16.mxu0 0
        %2190 = vmatpush1.bf16.msra.mxu0 0
        %2191 = vmatprep.subr.bf16.mxu0 0
        %2192 = vmatpush1.bf16.msra.mxu0 0
        %2193 = vmatprep.subr.bf16.mxu0 0
        %2194 = vmatpush1.bf16.msra.mxu0 0
        %2195 = vmatprep.subr.bf16.mxu0 0
        %2196 = vmatpush1.bf16.msra.mxu0 0
        %2197 = vmatprep.subr.bf16.mxu0 0
        %2198 = vmatpush1.bf16.msra.mxu0 0
        %2199 = vmatprep.subr.bf16.mxu0 0
        %2200 = vmatpush1.bf16.msra.mxu0 0
        %2201 = vmatprep.subr.bf16.mxu0 0
        %2202 = vmatpush1.bf16.msra.mxu0 0
        %2203 = vmatprep.subr.bf16.mxu0 0
        %2204 = vmatpush1.bf16.msra.mxu0 0
        %2205 = vmatprep.subr.bf16.mxu0 0
        %2206 = vmatpush1.bf16.msra.mxu0 0
        %2207 = vmatprep.subr.bf16.mxu0 0
        %2208 = vmatpush1.bf16.msra.mxu0 0
        %2209 = vmatprep.subr.bf16.mxu0 0
        %2210 = vmatpush1.bf16.msra.mxu0 0
        %2211 = vmatprep.mubr.bf16.mxu0 0
        %2212 = vmatmul.mubr.bf16.gmra.mrb[0].mxu0 %v2073
        %v2213 = vpop.f32.mrb[0].mxu0
        %v2214 = vadd.f32 %v2011, %v2213
        %v2215 = vpop.f32.mrb[0].mxu0
        %v2216 = vpop.f32.mrb[0].mxu0
        %v2217 = vpop.f32.mrb[0].mxu0
        %2218 = vdwg.mxu0
        %v2223 = vunpack.c.l.b16 %v1939
        %v2224 = vunpack.c.l.b16 %v1940
        %v2225 = vunpack.c.l.b16 %v1941
        %v2226 = vunpack.c.l.b16 %v1942
        %v2227 = vpack.c.b16 %v2224, %v2223
        %v2228 = vpack.c.b16 %v2226, %v2225
        %2231 = vmatprep.subr.bf16.mxu0 0
        %2232 = vmatpush1.bf16.msra.mxu0 %v2227
        %2233 = vmatprep.subr.bf16.mxu0 0
        %2234 = vmatpush1.bf16.msra.mxu0 %v2228
        %2235 = vmatprep.subr.bf16.mxu0 0
        %2236 = vmatpush1.bf16.msra.mxu0 0
        %2237 = vmatprep.subr.bf16.mxu0 0
        %2238 = vmatpush1.bf16.msra.mxu0 0
        %2239 = vmatprep.subr.bf16.mxu0 0
        %2240 = vmatpush1.bf16.msra.mxu0 0
        %2241 = vmatprep.subr.bf16.mxu0 0
        %2242 = vmatpush1.bf16.msra.mxu0 0
        %2243 = vmatprep.subr.bf16.mxu0 0
        %2244 = vmatpush1.bf16.msra.mxu0 0
        %2245 = vmatprep.subr.bf16.mxu0 0
        %2246 = vmatpush1.bf16.msra.mxu0 0
        %2247 = vmatprep.subr.bf16.mxu0 0
        %2248 = vmatpush1.bf16.msra.mxu0 0
        %2249 = vmatprep.subr.bf16.mxu0 0
        %2250 = vmatpush1.bf16.msra.mxu0 0
        %2251 = vmatprep.subr.bf16.mxu0 0
        %2252 = vmatpush1.bf16.msra.mxu0 0
        %2253 = vmatprep.subr.bf16.mxu0 0
        %2254 = vmatpush1.bf16.msra.mxu0 0
        %2255 = vmatprep.subr.bf16.mxu0 0
        %2256 = vmatpush1.bf16.msra.mxu0 0
        %2257 = vmatprep.subr.bf16.mxu0 0
        %2258 = vmatpush1.bf16.msra.mxu0 0
        %2259 = vmatprep.subr.bf16.mxu0 0
        %2260 = vmatpush1.bf16.msra.mxu0 0
        %2261 = vmatprep.subr.bf16.mxu0 0
        %2262 = vmatpush1.bf16.msra.mxu0 0
        %2263 = vmatprep.mubr.bf16.mxu0 0
        %2264 = vmatmul.mubr.bf16.gmra.mrb[0].mxu0 %v2073
        %v2265 = vpop.f32.mrb[0].mxu0
        %v2266 = vadd.f32 %v2015, %v2265
        %v2267 = vpop.f32.mrb[0].mxu0
        %v2268 = vpop.f32.mrb[0].mxu0
        %v2269 = vpop.f32.mrb[0].mxu0
        %2270 = vdwg.mxu0
        %v2275 = vunpack.c.l.b16 %v1943
        %v2276 = vunpack.c.l.b16 %v1944
        %v2277 = vunpack.c.l.b16 %v1945
        %v2278 = vunpack.c.l.b16 %v1946
        %v2279 = vpack.c.b16 %v2276, %v2275
        %v2280 = vpack.c.b16 %v2278, %v2277
        %2283 = vmatprep.subr.bf16.mxu0 0
        %2284 = vmatpush1.bf16.msra.mxu0 %v2279
        %2285 = vmatprep.subr.bf16.mxu0 0
        %2286 = vmatpush1.bf16.msra.mxu0 %v2280
        %2287 = vmatprep.subr.bf16.mxu0 0
        %2288 = vmatpush1.bf16.msra.mxu0 0
        %2289 = vmatprep.subr.bf16.mxu0 0
        %2290 = vmatpush1.bf16.msra.mxu0 0
        %2291 = vmatprep.subr.bf16.mxu0 0
        %2292 = vmatpush1.bf16.msra.mxu0 0
        %2293 = vmatprep.subr.bf16.mxu0 0
        %2294 = vmatpush1.bf16.msra.mxu0 0
        %2295 = vmatprep.subr.bf16.mxu0 0
        %2296 = vmatpush1.bf16.msra.mxu0 0
        %2297 = vmatprep.subr.bf16.mxu0 0
        %2298 = vmatpush1.bf16.msra.mxu0 0
        %2299 = vmatprep.subr.bf16.mxu0 0
        %2300 = vmatpush1.bf16.msra.mxu0 0
        %2301 = vmatprep.subr.bf16.mxu0 0
        %2302 = vmatpush1.bf16.msra.mxu0 0
        %2303 = vmatprep.subr.bf16.mxu0 0
        %2304 = vmatpush1.bf16.msra.mxu0 0
        %2305 = vmatprep.subr.bf16.mxu0 0
        %2306 = vmatpush1.bf16.msra.mxu0 0
        %2307 = vmatprep.subr.bf16.mxu0 0
        %2308 = vmatpush1.bf16.msra.mxu0 0
        %2309 = vmatprep.subr.bf16.mxu0 0
        %2310 = vmatpush1.bf16.msra.mxu0 0
        %2311 = vmatprep.subr.bf16.mxu0 0
        %2312 = vmatpush1.bf16.msra.mxu0 0
        %2313 = vmatprep.subr.bf16.mxu0 0
        %2314 = vmatpush1.bf16.msra.mxu0 0
        %2315 = vmatprep.mubr.bf16.mxu0 0
        %2316 = vmatmul.mubr.bf16.gmra.mrb[0].mxu0 %v2073
        %v2317 = vpop.f32.mrb[0].mxu0
        %v2318 = vadd.f32 %v2019, %v2317
        %v2319 = vpop.f32.mrb[0].mxu0
        %v2320 = vpop.f32.mrb[0].mxu0
        %v2321 = vpop.f32.mrb[0].mxu0
        %2322 = vdwg.mxu0
        %v2327 = vunpack.c.l.b16 %v1947
        %v2328 = vunpack.c.l.b16 %v1948
        %v2329 = vunpack.c.l.b16 %v1949
        %v2330 = vunpack.c.l.b16 %v1950
        %v2331 = vpack.c.b16 %v2328, %v2327
        %v2332 = vpack.c.b16 %v2330, %v2329
        %2335 = vmatprep.subr.bf16.mxu0 0
        %2336 = vmatpush1.bf16.msra.mxu0 %v2331
        %2337 = vmatprep.subr.bf16.mxu0 0
        %2338 = vmatpush1.bf16.msra.mxu0 %v2332
        %2339 = vmatprep.subr.bf16.mxu0 0
        %2340 = vmatpush1.bf16.msra.mxu0 0
        %2341 = vmatprep.subr.bf16.mxu0 0
        %2342 = vmatpush1.bf16.msra.mxu0 0
        %2343 = vmatprep.subr.bf16.mxu0 0
        %2344 = vmatpush1.bf16.msra.mxu0 0
        %2345 = vmatprep.subr.bf16.mxu0 0
        %2346 = vmatpush1.bf16.msra.mxu0 0
        %2347 = vmatprep.subr.bf16.mxu0 0
        %2348 = vmatpush1.bf16.msra.mxu0 0
        %2349 = vmatprep.subr.bf16.mxu0 0
        %2350 = vmatpush1.bf16.msra.mxu0 0
        %2351 = vmatprep.subr.bf16.mxu0 0
        %2352 = vmatpush1.bf16.msra.mxu0 0
        %2353 = vmatprep.subr.bf16.mxu0 0
        %2354 = vmatpush1.bf16.msra.mxu0 0
        %2355 = vmatprep.subr.bf16.mxu0 0
        %2356 = vmatpush1.bf16.msra.mxu0 0
        %2357 = vmatprep.subr.bf16.mxu0 0
        %2358 = vmatpush1.bf16.msra.mxu0 0
        %2359 = vmatprep.subr.bf16.mxu0 0
        %2360 = vmatpush1.bf16.msra.mxu0 0
        %2361 = vmatprep.subr.bf16.mxu0 0
        %2362 = vmatpush1.bf16.msra.mxu0 0
        %2363 = vmatprep.subr.bf16.mxu0 0
        %2364 = vmatpush1.bf16.msra.mxu0 0
        %2365 = vmatprep.subr.bf16.mxu0 0
        %2366 = vmatpush1.bf16.msra.mxu0 0
        %2367 = vmatprep.mubr.bf16.mxu0 0
        %2368 = vmatmul.mubr.bf16.gmra.mrb[0].mxu0 %v2073
        %v2369 = vpop.f32.mrb[0].mxu0
        %v2370 = vadd.f32 %v2023, %v2369
        %v2371 = vpop.f32.mrb[0].mxu0
        %v2372 = vpop.f32.mrb[0].mxu0
        %v2373 = vpop.f32.mrb[0].mxu0
        %2374 = vdwg.mxu0
        %v2379 = vunpack.c.l.b16 %v1951
        %v2380 = vunpack.c.l.b16 %v1952
        %v2381 = vunpack.c.l.b16 %v1953
        %v2382 = vunpack.c.l.b16 %v1954
        %v2383 = vpack.c.b16 %v2380, %v2379
        %v2384 = vpack.c.b16 %v2382, %v2381
        %2387 = vmatprep.subr.bf16.mxu0 0
        %2388 = vmatpush1.bf16.msra.mxu0 %v2383
        %2389 = vmatprep.subr.bf16.mxu0 0
        %2390 = vmatpush1.bf16.msra.mxu0 %v2384
        %2391 = vmatprep.subr.bf16.mxu0 0
        %2392 = vmatpush1.bf16.msra.mxu0 0
        %2393 = vmatprep.subr.bf16.mxu0 0
        %2394 = vmatpush1.bf16.msra.mxu0 0
        %2395 = vmatprep.subr.bf16.mxu0 0
        %2396 = vmatpush1.bf16.msra.mxu0 0
        %2397 = vmatprep.subr.bf16.mxu0 0
        %2398 = vmatpush1.bf16.msra.mxu0 0
        %2399 = vmatprep.subr.bf16.mxu0 0
        %2400 = vmatpush1.bf16.msra.mxu0 0
        %2401 = vmatprep.subr.bf16.mxu0 0
        %2402 = vmatpush1.bf16.msra.mxu0 0
        %2403 = vmatprep.subr.bf16.mxu0 0
        %2404 = vmatpush1.bf16.msra.mxu0 0
        %2405 = vmatprep.subr.bf16.mxu0 0
        %2406 = vmatpush1.bf16.msra.mxu0 0
        %2407 = vmatprep.subr.bf16.mxu0 0
        %2408 = vmatpush1.bf16.msra.mxu0 0
        %2409 = vmatprep.subr.bf16.mxu0 0
        %2410 = vmatpush1.bf16.msra.mxu0 0
        %2411 = vmatprep.subr.bf16.mxu0 0
        %2412 = vmatpush1.bf16.msra.mxu0 0
        %2413 = vmatprep.subr.bf16.mxu0 0
        %2414 = vmatpush1.bf16.msra.mxu0 0
        %2415 = vmatprep.subr.bf16.mxu0 0
        %2416 = vmatpush1.bf16.msra.mxu0 0
        %2417 = vmatprep.subr.bf16.mxu0 0
        %2418 = vmatpush1.bf16.msra.mxu0 0
        %2419 = vmatprep.mubr.bf16.mxu0 0
        %2420 = vmatmul.mubr.bf16.gmra.mrb[0].mxu0 %v2073
        %v2421 = vpop.f32.mrb[0].mxu0
        %v2422 = vadd.f32 %v2027, %v2421
        %v2423 = vpop.f32.mrb[0].mxu0
        %v2424 = vpop.f32.mrb[0].mxu0
        %v2425 = vpop.f32.mrb[0].mxu0
        %2426 = vdwg.mxu0
        %v2431 = vunpack.c.l.b16 %v1955
        %v2432 = vunpack.c.l.b16 %v1956
        %v2433 = vunpack.c.l.b16 %v1957
        %v2434 = vunpack.c.l.b16 %v1958
        %v2435 = vpack.c.b16 %v2432, %v2431
        %v2436 = vpack.c.b16 %v2434, %v2433
        %2439 = vmatprep.subr.bf16.mxu0 0
        %2440 = vmatpush1.bf16.msra.mxu0 %v2435
        %2441 = vmatprep.subr.bf16.mxu0 0
        %2442 = vmatpush1.bf16.msra.mxu0 %v2436
        %2443 = vmatprep.subr.bf16.mxu0 0
        %2444 = vmatpush1.bf16.msra.mxu0 0
        %2445 = vmatprep.subr.bf16.mxu0 0
        %2446 = vmatpush1.bf16.msra.mxu0 0
        %2447 = vmatprep.subr.bf16.mxu0 0
        %2448 = vmatpush1.bf16.msra.mxu0 0
        %2449 = vmatprep.subr.bf16.mxu0 0
        %2450 = vmatpush1.bf16.msra.mxu0 0
        %2451 = vmatprep.subr.bf16.mxu0 0
        %2452 = vmatpush1.bf16.msra.mxu0 0
        %2453 = vmatprep.subr.bf16.mxu0 0
        %2454 = vmatpush1.bf16.msra.mxu0 0
        %2455 = vmatprep.subr.bf16.mxu0 0
        %2456 = vmatpush1.bf16.msra.mxu0 0
        %2457 = vmatprep.subr.bf16.mxu0 0
        %2458 = vmatpush1.bf16.msra.mxu0 0
        %2459 = vmatprep.subr.bf16.mxu0 0
        %2460 = vmatpush1.bf16.msra.mxu0 0
        %2461 = vmatprep.subr.bf16.mxu0 0
        %2462 = vmatpush1.bf16.msra.mxu0 0
        %2463 = vmatprep.subr.bf16.mxu0 0
        %2464 = vmatpush1.bf16.msra.mxu0 0
        %2465 = vmatprep.subr.bf16.mxu0 0
        %2466 = vmatpush1.bf16.msra.mxu0 0
        %2467 = vmatprep.subr.bf16.mxu0 0
        %2468 = vmatpush1.bf16.msra.mxu0 0
        %2469 = vmatprep.subr.bf16.mxu0 0
        %2470 = vmatpush1.bf16.msra.mxu0 0
        %2471 = vmatprep.mubr.bf16.mxu0 0
        %2472 = vmatmul.mubr.bf16.gmra.mrb[0].mxu0 %v2073
        %v2473 = vpop.f32.mrb[0].mxu0
        %v2474 = vadd.f32 %v2031, %v2473
        %v2475 = vpop.f32.mrb[0].mxu0
        %v2476 = vpop.f32.mrb[0].mxu0
        %v2477 = vpop.f32.mrb[0].mxu0
        %2478 = vdwg.mxu0
        %v2483 = vunpack.c.l.b16 %v1959
        %v2484 = vunpack.c.l.b16 %v1960
        %v2485 = vunpack.c.l.b16 %v1961
        %v2486 = vunpack.c.l.b16 %v1962
        %v2487 = vpack.c.b16 %v2484, %v2483
        %v2488 = vpack.c.b16 %v2486, %v2485
        %2491 = vmatprep.subr.bf16.mxu0 0
        %2492 = vmatpush1.bf16.msra.mxu0 %v2487
        %2493 = vmatprep.subr.bf16.mxu0 0
        %2494 = vmatpush1.bf16.msra.mxu0 %v2488
        %2495 = vmatprep.subr.bf16.mxu0 0
        %2496 = vmatpush1.bf16.msra.mxu0 0
        %2497 = vmatprep.subr.bf16.mxu0 0
        %2498 = vmatpush1.bf16.msra.mxu0 0
        %2499 = vmatprep.subr.bf16.mxu0 0
        %2500 = vmatpush1.bf16.msra.mxu0 0
        %2501 = vmatprep.subr.bf16.mxu0 0
        %2502 = vmatpush1.bf16.msra.mxu0 0
        %2503 = vmatprep.subr.bf16.mxu0 0
        %2504 = vmatpush1.bf16.msra.mxu0 0
        %2505 = vmatprep.subr.bf16.mxu0 0
        %2506 = vmatpush1.bf16.msra.mxu0 0
        %2507 = vmatprep.subr.bf16.mxu0 0
        %2508 = vmatpush1.bf16.msra.mxu0 0
        %2509 = vmatprep.subr.bf16.mxu0 0
        %2510 = vmatpush1.bf16.msra.mxu0 0
        %2511 = vmatprep.subr.bf16.mxu0 0
        %2512 = vmatpush1.bf16.msra.mxu0 0
        %2513 = vmatprep.subr.bf16.mxu0 0
        %2514 = vmatpush1.bf16.msra.mxu0 0
        %2515 = vmatprep.subr.bf16.mxu0 0
        %2516 = vmatpush1.bf16.msra.mxu0 0
        %2517 = vmatprep.subr.bf16.mxu0 0
        %2518 = vmatpush1.bf16.msra.mxu0 0
        %2519 = vmatprep.subr.bf16.mxu0 0
        %2520 = vmatpush1.bf16.msra.mxu0 0
        %2521 = vmatprep.subr.bf16.mxu0 0
        %2522 = vmatpush1.bf16.msra.mxu0 0
        %2523 = vmatprep.mubr.bf16.mxu0 0
        %2524 = vmatmul.mubr.bf16.gmra.mrb[0].mxu0 %v2073
        %v2525 = vpop.f32.mrb[0].mxu0
        %v2526 = vadd.f32 %v2035, %v2525
        %v2527 = vpop.f32.mrb[0].mxu0
        %v2528 = vpop.f32.mrb[0].mxu0
        %v2529 = vpop.f32.mrb[0].mxu0
        %2530 = vdwg.mxu0
        %v2535 = vunpack.c.l.b16 %v1963
        %v2536 = vunpack.c.l.b16 %v1964
        %v2537 = vunpack.c.l.b16 %v1965
        %v2538 = vunpack.c.l.b16 %v1966
        %v2539 = vpack.c.b16 %v2536, %v2535
        %v2540 = vpack.c.b16 %v2538, %v2537
        %2543 = vmatprep.subr.bf16.mxu0 0
        %2544 = vmatpush1.bf16.msra.mxu0 %v2539
        %2545 = vmatprep.subr.bf16.mxu0 0
        %2546 = vmatpush1.bf16.msra.mxu0 %v2540
        %2547 = vmatprep.subr.bf16.mxu0 0
        %2548 = vmatpush1.bf16.msra.mxu0 0
        %2549 = vmatprep.subr.bf16.mxu0 0
        %2550 = vmatpush1.bf16.msra.mxu0 0
        %2551 = vmatprep.subr.bf16.mxu0 0
        %2552 = vmatpush1.bf16.msra.mxu0 0
        %2553 = vmatprep.subr.bf16.mxu0 0
        %2554 = vmatpush1.bf16.msra.mxu0 0
        %2555 = vmatprep.subr.bf16.mxu0 0
        %2556 = vmatpush1.bf16.msra.mxu0 0
        %2557 = vmatprep.subr.bf16.mxu0 0
        %2558 = vmatpush1.bf16.msra.mxu0 0
        %2559 = vmatprep.subr.bf16.mxu0 0
        %2560 = vmatpush1.bf16.msra.mxu0 0
        %2561 = vmatprep.subr.bf16.mxu0 0
        %2562 = vmatpush1.bf16.msra.mxu0 0
        %2563 = vmatprep.subr.bf16.mxu0 0
        %2564 = vmatpush1.bf16.msra.mxu0 0
        %2565 = vmatprep.subr.bf16.mxu0 0
        %2566 = vmatpush1.bf16.msra.mxu0 0
        %2567 = vmatprep.subr.bf16.mxu0 0
        %2568 = vmatpush1.bf16.msra.mxu0 0
        %2569 = vmatprep.subr.bf16.mxu0 0
        %2570 = vmatpush1.bf16.msra.mxu0 0
        %2571 = vmatprep.subr.bf16.mxu0 0
        %2572 = vmatpush1.bf16.msra.mxu0 0
        %2573 = vmatprep.subr.bf16.mxu0 0
        %2574 = vmatpush1.bf16.msra.mxu0 0
        %2575 = vmatprep.mubr.bf16.mxu0 0
        %2576 = vmatmul.mubr.bf16.gmra.mrb[0].mxu0 %v2073
        %v2577 = vpop.f32.mrb[0].mxu0
        %v2578 = vadd.f32 %v2039, %v2577
        %v2579 = vpop.f32.mrb[0].mxu0
        %v2580 = vpop.f32.mrb[0].mxu0
        %v2581 = vpop.f32.mrb[0].mxu0
        %2582 = vdwg.mxu0
        %v2587 = vunpack.c.l.b16 %v1967
        %v2588 = vunpack.c.l.b16 %v1968
        %v2589 = vunpack.c.l.b16 %v1969
        %v2590 = vunpack.c.l.b16 %v1970
        %v2591 = vpack.c.b16 %v2588, %v2587
        %v2592 = vpack.c.b16 %v2590, %v2589
        %2595 = vmatprep.subr.bf16.mxu0 0
        %2596 = vmatpush1.bf16.msra.mxu0 %v2591
        %2597 = vmatprep.subr.bf16.mxu0 0
        %2598 = vmatpush1.bf16.msra.mxu0 %v2592
        %2599 = vmatprep.subr.bf16.mxu0 0
        %2600 = vmatpush1.bf16.msra.mxu0 0
        %2601 = vmatprep.subr.bf16.mxu0 0
        %2602 = vmatpush1.bf16.msra.mxu0 0
        %2603 = vmatprep.subr.bf16.mxu0 0
        %2604 = vmatpush1.bf16.msra.mxu0 0
        %2605 = vmatprep.subr.bf16.mxu0 0
        %2606 = vmatpush1.bf16.msra.mxu0 0
        %2607 = vmatprep.subr.bf16.mxu0 0
        %2608 = vmatpush1.bf16.msra.mxu0 0
        %2609 = vmatprep.subr.bf16.mxu0 0
        %2610 = vmatpush1.bf16.msra.mxu0 0
        %2611 = vmatprep.subr.bf16.mxu0 0
        %2612 = vmatpush1.bf16.msra.mxu0 0
        %2613 = vmatprep.subr.bf16.mxu0 0
        %2614 = vmatpush1.bf16.msra.mxu0 0
        %2615 = vmatprep.subr.bf16.mxu0 0
        %2616 = vmatpush1.bf16.msra.mxu0 0
        %2617 = vmatprep.subr.bf16.mxu0 0
        %2618 = vmatpush1.bf16.msra.mxu0 0
        %2619 = vmatprep.subr.bf16.mxu0 0
        %2620 = vmatpush1.bf16.msra.mxu0 0
        %2621 = vmatprep.subr.bf16.mxu0 0
        %2622 = vmatpush1.bf16.msra.mxu0 0
        %2623 = vmatprep.subr.bf16.mxu0 0
        %2624 = vmatpush1.bf16.msra.mxu0 0
        %2625 = vmatprep.subr.bf16.mxu0 0
        %2626 = vmatpush1.bf16.msra.mxu0 0
        %2627 = vmatprep.mubr.bf16.mxu0 0
        %2628 = vmatmul.mubr.bf16.gmra.mrb[0].mxu0 %v2073
        %v2629 = vpop.f32.mrb[0].mxu0
        %v2630 = vadd.f32 %v2043, %v2629
        %v2631 = vpop.f32.mrb[0].mxu0
        %v2632 = vpop.f32.mrb[0].mxu0
        %v2633 = vpop.f32.mrb[0].mxu0
        %2634 = vdwg.mxu0
        %v2639 = vunpack.c.l.b16 %v1971
        %v2640 = vunpack.c.l.b16 %v1972
        %v2641 = vunpack.c.l.b16 %v1973
        %v2642 = vunpack.c.l.b16 %v1974
        %v2643 = vpack.c.b16 %v2640, %v2639
        %v2644 = vpack.c.b16 %v2642, %v2641
        %2647 = vmatprep.subr.bf16.mxu0 0
        %2648 = vmatpush1.bf16.msra.mxu0 %v2643
        %2649 = vmatprep.subr.bf16.mxu0 0
        %2650 = vmatpush1.bf16.msra.mxu0 %v2644
        %2651 = vmatprep.subr.bf16.mxu0 0
        %2652 = vmatpush1.bf16.msra.mxu0 0
        %2653 = vmatprep.subr.bf16.mxu0 0
        %2654 = vmatpush1.bf16.msra.mxu0 0
        %2655 = vmatprep.subr.bf16.mxu0 0
        %2656 = vmatpush1.bf16.msra.mxu0 0
        %2657 = vmatprep.subr.bf16.mxu0 0
        %2658 = vmatpush1.bf16.msra.mxu0 0
        %2659 = vmatprep.subr.bf16.mxu0 0
        %2660 = vmatpush1.bf16.msra.mxu0 0
        %2661 = vmatprep.subr.bf16.mxu0 0
        %2662 = vmatpush1.bf16.msra.mxu0 0
        %2663 = vmatprep.subr.bf16.mxu0 0
        %2664 = vmatpush1.bf16.msra.mxu0 0
        %2665 = vmatprep.subr.bf16.mxu0 0
        %2666 = vmatpush1.bf16.msra.mxu0 0
        %2667 = vmatprep.subr.bf16.mxu0 0
        %2668 = vmatpush1.bf16.msra.mxu0 0
        %2669 = vmatprep.subr.bf16.mxu0 0
        %2670 = vmatpush1.bf16.msra.mxu0 0
        %2671 = vmatprep.subr.bf16.mxu0 0
        %2672 = vmatpush1.bf16.msra.mxu0 0
        %2673 = vmatprep.subr.bf16.mxu0 0
        %2674 = vmatpush1.bf16.msra.mxu0 0
        %2675 = vmatprep.subr.bf16.mxu0 0
        %2676 = vmatpush1.bf16.msra.mxu0 0
        %2677 = vmatprep.subr.bf16.mxu0 0
        %2678 = vmatpush1.bf16.msra.mxu0 0
        %2679 = vmatprep.mubr.bf16.mxu0 0
        %2680 = vmatmul.mubr.bf16.gmra.mrb[0].mxu0 %v2073
        %v2681 = vpop.f32.mrb[0].mxu0
        %v2682 = vadd.f32 %v2047, %v2681
        %v2683 = vpop.f32.mrb[0].mxu0
        %v2684 = vpop.f32.mrb[0].mxu0
        %v2685 = vpop.f32.mrb[0].mxu0
        %2686 = vdwg.mxu0
        %v2687 = vpack.c.bf16 %v2110, %v2110
        %v2688 = vpack.c.bf16 %v2162, %v2162
        %v2689 = vpack.c.bf16 %v2214, %v2214
        %v2690 = vpack.c.bf16 %v2266, %v2266
        %v2691 = vpack.c.bf16 %v2318, %v2318
        %v2692 = vpack.c.bf16 %v2370, %v2370
        %v2693 = vpack.c.bf16 %v2422, %v2422
        %v2694 = vpack.c.bf16 %v2474, %v2474
        %v2696 = vsel %vm1094, %v2687, 0
        %v2699 = vsel %vm1094, %v2691, 0
        %2701 = vmatprep.subr.bf16.mxu0 0
        %2702 = vmatpush1.bf16.xpose.msra.mxu0 %v2699
        %2703 = vmatprep.subr.bf16.mxu0 0
        %2704 = vmatpush1.bf16.xpose.msra.mxu0 0
        %2705 = vmatprep.subr.bf16.mxu0 0
        %2706 = vmatpush1.bf16.xpose.msra.mxu0 0
        %2707 = vmatprep.subr.bf16.mxu0 0
        %2708 = vmatpush1.bf16.xpose.msra.mxu0 0
        %2709 = vmatprep.subr.bf16.mxu0 0
        %2710 = vmatpush1.bf16.xpose.msra.mxu0 0
        %2711 = vmatprep.subr.bf16.mxu0 0
        %2712 = vmatpush1.bf16.xpose.msra.mxu0 0
        %2713 = vmatprep.subr.bf16.mxu0 0
        %2714 = vmatpush1.bf16.xpose.msra.mxu0 0
        %2715 = vmatprep.subr.bf16.mxu0 0
        %2716 = vmatpush1.bf16.xpose.msra.mxu0 0
        %2717 = vmatprep.subr.bf16.mxu0 0
        %2718 = vmatpush1.bf16.xpose.msra.mxu0 0
        %2719 = vmatprep.subr.bf16.mxu0 0
        %2720 = vmatpush1.bf16.xpose.msra.mxu0 0
        %2721 = vmatprep.subr.bf16.mxu0 0
        %2722 = vmatpush1.bf16.xpose.msra.mxu0 0
        %2723 = vmatprep.subr.bf16.mxu0 0
        %2724 = vmatpush1.bf16.xpose.msra.mxu0 0
        %2725 = vmatprep.subr.bf16.mxu0 0
        %2726 = vmatpush1.bf16.xpose.msra.mxu0 0
        %2727 = vmatprep.subr.bf16.mxu0 0
        %2728 = vmatpush1.bf16.xpose.msra.mxu0 0
        %2729 = vmatprep.subr.bf16.mxu0 0
        %2730 = vmatpush1.bf16.xpose.msra.mxu0 0
        %2731 = vmatprep.subr.bf16.mxu0 0
        %2732 = vmatpush1.bf16.xpose.msra.mxu0 0
        %2733 = vmatprep.mubr.bf16.mxu0 0
        %2734 = vmatmul.mubr.bf16.gmra.mrb[0].mxu0 %v2696
        %v2735 = vpop.f32.mrb[0].mxu0
        %v2736 = vadd.f32 %v1092, %v2735
        %v2737 = vpop.f32.mrb[0].mxu0
        %v2738 = vpop.f32.mrb[0].mxu0
        %v2739 = vpop.f32.mrb[0].mxu0
        %2740 = vdwg.mxu0
        %v2742 = vsel %vm1094, %v2688, 0
        %v2745 = vsel %vm1094, %v2692, 0
        %2747 = vmatprep.subr.bf16.mxu0 0
        %2748 = vmatpush1.bf16.xpose.msra.mxu0 %v2745
        %2749 = vmatprep.subr.bf16.mxu0 0
        %2750 = vmatpush1.bf16.xpose.msra.mxu0 0
        %2751 = vmatprep.subr.bf16.mxu0 0
        %2752 = vmatpush1.bf16.xpose.msra.mxu0 0
        %2753 = vmatprep.subr.bf16.mxu0 0
        %2754 = vmatpush1.bf16.xpose.msra.mxu0 0
        %2755 = vmatprep.subr.bf16.mxu0 0
        %2756 = vmatpush1.bf16.xpose.msra.mxu0 0
        %2757 = vmatprep.subr.bf16.mxu0 0
        %2758 = vmatpush1.bf16.xpose.msra.mxu0 0
        %2759 = vmatprep.subr.bf16.mxu0 0
        %2760 = vmatpush1.bf16.xpose.msra.mxu0 0
        %2761 = vmatprep.subr.bf16.mxu0 0
        %2762 = vmatpush1.bf16.xpose.msra.mxu0 0
        %2763 = vmatprep.subr.bf16.mxu0 0
        %2764 = vmatpush1.bf16.xpose.msra.mxu0 0
        %2765 = vmatprep.subr.bf16.mxu0 0
        %2766 = vmatpush1.bf16.xpose.msra.mxu0 0
        %2767 = vmatprep.subr.bf16.mxu0 0
        %2768 = vmatpush1.bf16.xpose.msra.mxu0 0
        %2769 = vmatprep.subr.bf16.mxu0 0
        %2770 = vmatpush1.bf16.xpose.msra.mxu0 0
        %2771 = vmatprep.subr.bf16.mxu0 0
        %2772 = vmatpush1.bf16.xpose.msra.mxu0 0
        %2773 = vmatprep.subr.bf16.mxu0 0
        %2774 = vmatpush1.bf16.xpose.msra.mxu0 0
        %2775 = vmatprep.subr.bf16.mxu0 0
        %2776 = vmatpush1.bf16.xpose.msra.mxu0 0
        %2777 = vmatprep.subr.bf16.mxu0 0
        %2778 = vmatpush1.bf16.xpose.msra.mxu0 0
        %2779 = vmatprep.mubr.bf16.mxu0 0
        %2780 = vmatmul.mubr.bf16.gmra.mrb[0].mxu0 %v2742
        %v2781 = vpop.f32.mrb[0].mxu0
        %v2782 = vadd.f32 %v1092, %v2781
        %v2783 = vpop.f32.mrb[0].mxu0
        %v2784 = vpop.f32.mrb[0].mxu0
        %v2785 = vpop.f32.mrb[0].mxu0
        %2786 = vdwg.mxu0
        %v2788 = vsel %vm1094, %v2689, 0
        %v2791 = vsel %vm1094, %v2693, 0
        %2793 = vmatprep.subr.bf16.mxu0 0
        %2794 = vmatpush1.bf16.xpose.msra.mxu0 %v2791
        %2795 = vmatprep.subr.bf16.mxu0 0
        %2796 = vmatpush1.bf16.xpose.msra.mxu0 0
        %2797 = vmatprep.subr.bf16.mxu0 0
        %2798 = vmatpush1.bf16.xpose.msra.mxu0 0
        %2799 = vmatprep.subr.bf16.mxu0 0
        %2800 = vmatpush1.bf16.xpose.msra.mxu0 0
        %2801 = vmatprep.subr.bf16.mxu0 0
        %2802 = vmatpush1.bf16.xpose.msra.mxu0 0
        %2803 = vmatprep.subr.bf16.mxu0 0
        %2804 = vmatpush1.bf16.xpose.msra.mxu0 0
        %2805 = vmatprep.subr.bf16.mxu0 0
        %2806 = vmatpush1.bf16.xpose.msra.mxu0 0
        %2807 = vmatprep.subr.bf16.mxu0 0
        %2808 = vmatpush1.bf16.xpose.msra.mxu0 0
        %2809 = vmatprep.subr.bf16.mxu0 0
        %2810 = vmatpush1.bf16.xpose.msra.mxu0 0
        %2811 = vmatprep.subr.bf16.mxu0 0
        %2812 = vmatpush1.bf16.xpose.msra.mxu0 0
        %2813 = vmatprep.subr.bf16.mxu0 0
        %2814 = vmatpush1.bf16.xpose.msra.mxu0 0
        %2815 = vmatprep.subr.bf16.mxu0 0
        %2816 = vmatpush1.bf16.xpose.msra.mxu0 0
        %2817 = vmatprep.subr.bf16.mxu0 0
        %2818 = vmatpush1.bf16.xpose.msra.mxu0 0
        %2819 = vmatprep.subr.bf16.mxu0 0
        %2820 = vmatpush1.bf16.xpose.msra.mxu0 0
        %2821 = vmatprep.subr.bf16.mxu0 0
        %2822 = vmatpush1.bf16.xpose.msra.mxu0 0
        %2823 = vmatprep.subr.bf16.mxu0 0
        %2824 = vmatpush1.bf16.xpose.msra.mxu0 0
        %2825 = vmatprep.mubr.bf16.mxu0 0
        %2826 = vmatmul.mubr.bf16.gmra.mrb[0].mxu0 %v2788
        %v2827 = vpop.f32.mrb[0].mxu0
        %v2828 = vadd.f32 %v1092, %v2827
        %v2829 = vpop.f32.mrb[0].mxu0
        %v2830 = vpop.f32.mrb[0].mxu0
        %v2831 = vpop.f32.mrb[0].mxu0
        %2832 = vdwg.mxu0
        %v2834 = vsel %vm1094, %v2690, 0
        %v2837 = vsel %vm1094, %v2694, 0
        %2839 = vmatprep.subr.bf16.mxu0 0
        %2840 = vmatpush1.bf16.xpose.msra.mxu0 %v2837
        %2841 = vmatprep.subr.bf16.mxu0 0
        %2842 = vmatpush1.bf16.xpose.msra.mxu0 0
        %2843 = vmatprep.subr.bf16.mxu0 0
        %2844 = vmatpush1.bf16.xpose.msra.mxu0 0
        %2845 = vmatprep.subr.bf16.mxu0 0
        %2846 = vmatpush1.bf16.xpose.msra.mxu0 0
        %2847 = vmatprep.subr.bf16.mxu0 0
        %2848 = vmatpush1.bf16.xpose.msra.mxu0 0
        %2849 = vmatprep.subr.bf16.mxu0 0
        %2850 = vmatpush1.bf16.xpose.msra.mxu0 0
        %2851 = vmatprep.subr.bf16.mxu0 0
        %2852 = vmatpush1.bf16.xpose.msra.mxu0 0
        %2853 = vmatprep.subr.bf16.mxu0 0
        %2854 = vmatpush1.bf16.xpose.msra.mxu0 0
        %2855 = vmatprep.subr.bf16.mxu0 0
        %2856 = vmatpush1.bf16.xpose.msra.mxu0 0
        %2857 = vmatprep.subr.bf16.mxu0 0
        %2858 = vmatpush1.bf16.xpose.msra.mxu0 0
        %2859 = vmatprep.subr.bf16.mxu0 0
        %2860 = vmatpush1.bf16.xpose.msra.mxu0 0
        %2861 = vmatprep.subr.bf16.mxu0 0
        %2862 = vmatpush1.bf16.xpose.msra.mxu0 0
        %2863 = vmatprep.subr.bf16.mxu0 0
        %2864 = vmatpush1.bf16.xpose.msra.mxu0 0
        %2865 = vmatprep.subr.bf16.mxu0 0
        %2866 = vmatpush1.bf16.xpose.msra.mxu0 0
        %2867 = vmatprep.subr.bf16.mxu0 0
        %2868 = vmatpush1.bf16.xpose.msra.mxu0 0
        %2869 = vmatprep.subr.bf16.mxu0 0
        %2870 = vmatpush1.bf16.xpose.msra.mxu0 0
        %2871 = vmatprep.mubr.bf16.mxu0 0
        %2872 = vmatmul.mubr.bf16.gmra.mrb[0].mxu0 %v2834
        %v2873 = vpop.f32.mrb[0].mxu0
        %v2874 = vadd.f32 %v1092, %v2873
        %v2875 = vpop.f32.mrb[0].mxu0
        %v2876 = vpop.f32.mrb[0].mxu0
        %v2877 = vpop.f32.mrb[0].mxu0
        %2878 = vdwg.mxu0
        %v2879 = vsel %vm1094, %v2736, -inf
        %2880 = vmax.xlane.f32.xlu0 %v2879
        %v2881 = vpop.xlane.xlu0 %2880
        %v2882 = vsel %vm1094, %v2782, -inf
        %2883 = vmax.xlane.f32.xlu0 %v2882
        %v2884 = vpop.xlane.xlu0 %2883
        %v2885 = vsel %vm1094, %v2828, -inf
        %2886 = vmax.xlane.f32.xlu0 %v2885
        %v2887 = vpop.xlane.xlu0 %2886
        %v2888 = vsel %vm1094, %v2874, -inf
        %2889 = vmax.xlane.f32.xlu0 %v2888
        %v2890 = vpop.xlane.xlu0 %2889
        %v2891 = vsub.f32 %v2736, %v2881
        %v2892 = vsub.f32 %v2782, %v2884
        %v2893 = vsub.f32 %v2828, %v2887
        %v2894 = vsub.f32 %v2874, %v2890
        %v2895 = vmul.f32 %v2891, 1.442695
        %v2896 = vpow.pop %v2895
        %v2897 = vmul.f32 %v2892, 1.442695
        %v2898 = vpow.pop %v2897
        %v2899 = vmul.f32 %v2893, 1.442695
        %v2900 = vpow.pop %v2899
        %v2901 = vmul.f32 %v2894, 1.442695
        %v2902 = vpow.pop %v2901
        %v2903 = vsel %vm1094, %v2896, 0.0
        %2904 = vadd.xlane.f32.xlu0 %v2903
        %v2905 = vpop.xlane.xlu0 %2904
        %v2906 = vsel %vm1094, %v2898, 0.0
        %2907 = vadd.xlane.f32.xlu0 %v2906
        %v2908 = vpop.xlane.xlu0 %2907
        %v2909 = vsel %vm1094, %v2900, 0.0
        %2910 = vadd.xlane.f32.xlu0 %v2909
        %v2911 = vpop.xlane.xlu0 %2910
        %v2912 = vsel %vm1094, %v2902, 0.0
        %2913 = vadd.xlane.f32.xlu0 %v2912
        %v2914 = vpop.xlane.xlu0 %2913
        %v2915 = vrcp.pop %v2905
        %v2916 = vmul.f32 %v2896, %v2915
        %v2917 = vrcp.pop %v2908
        %v2918 = vmul.f32 %v2898, %v2917
        %v2919 = vrcp.pop %v2911
        %v2920 = vmul.f32 %v2900, %v2919
        %v2921 = vrcp.pop %v2914
        %v2922 = vmul.f32 %v2902, %v2921
        %v2923 = vpack.c.bf16 %v2916, %v2916
        %v2924 = vpack.c.bf16 %v2918, %v2918
        %v2925 = vpack.c.bf16 %v2920, %v2920
        %v2926 = vpack.c.bf16 %v2922, %v2922
        %v2927 = vpack.c.bf16 %v2526, %v2526
        %v2928 = vpack.c.bf16 %v2578, %v2578
        %v2929 = vpack.c.bf16 %v2630, %v2630
        %v2930 = vpack.c.bf16 %v2682, %v2682
        %v2932 = vsel %vm1094, %v2923, 0
        %v2935 = vsel %vm1334, %v2927, 0
        %2937 = vmatprep.subr.bf16.mxu0 0
        %2938 = vmatpush1.bf16.msra.mxu0 %v2935
        %2939 = vmatprep.subr.bf16.mxu0 0
        %2940 = vmatpush1.bf16.msra.mxu0 0
        %2941 = vmatprep.subr.bf16.mxu0 0
        %2942 = vmatpush1.bf16.msra.mxu0 0
        %2943 = vmatprep.subr.bf16.mxu0 0
        %2944 = vmatpush1.bf16.msra.mxu0 0
        %2945 = vmatprep.subr.bf16.mxu0 0
        %2946 = vmatpush1.bf16.msra.mxu0 0
        %2947 = vmatprep.subr.bf16.mxu0 0
        %2948 = vmatpush1.bf16.msra.mxu0 0
        %2949 = vmatprep.subr.bf16.mxu0 0
        %2950 = vmatpush1.bf16.msra.mxu0 0
        %2951 = vmatprep.subr.bf16.mxu0 0
        %2952 = vmatpush1.bf16.msra.mxu0 0
        %2953 = vmatprep.subr.bf16.mxu0 0
        %2954 = vmatpush1.bf16.msra.mxu0 0
        %2955 = vmatprep.subr.bf16.mxu0 0
        %2956 = vmatpush1.bf16.msra.mxu0 0
        %2957 = vmatprep.subr.bf16.mxu0 0
        %2958 = vmatpush1.bf16.msra.mxu0 0
        %2959 = vmatprep.subr.bf16.mxu0 0
        %2960 = vmatpush1.bf16.msra.mxu0 0
        %2961 = vmatprep.subr.bf16.mxu0 0
        %2962 = vmatpush1.bf16.msra.mxu0 0
        %2963 = vmatprep.subr.bf16.mxu0 0
        %2964 = vmatpush1.bf16.msra.mxu0 0
        %2965 = vmatprep.subr.bf16.mxu0 0
        %2966 = vmatpush1.bf16.msra.mxu0 0
        %2967 = vmatprep.subr.bf16.mxu0 0
        %2968 = vmatpush1.bf16.msra.mxu0 0
        %2969 = vmatprep.mubr.bf16.mxu0 0
        %2970 = vmatmul.mubr.bf16.gmra.mrb[0].mxu0 %v2932
        %v2971 = vpop.f32.mrb[0].mxu0
        %v2972 = vadd.f32 0.0, %v2971
        %v2973 = vpop.f32.mrb[0].mxu0
        %v2974 = vpop.f32.mrb[0].mxu0
        %v2975 = vpop.f32.mrb[0].mxu0
        %2976 = vdwg.mxu0
        %v2978 = vsel %vm1094, %v2924, 0
        %v2981 = vsel %vm1334, %v2928, 0
        %2983 = vmatprep.subr.bf16.mxu0 0
        %2984 = vmatpush1.bf16.msra.mxu0 %v2981
        %2985 = vmatprep.subr.bf16.mxu0 0
        %2986 = vmatpush1.bf16.msra.mxu0 0
        %2987 = vmatprep.subr.bf16.mxu0 0
        %2988 = vmatpush1.bf16.msra.mxu0 0
        %2989 = vmatprep.subr.bf16.mxu0 0
        %2990 = vmatpush1.bf16.msra.mxu0 0
        %2991 = vmatprep.subr.bf16.mxu0 0
        %2992 = vmatpush1.bf16.msra.mxu0 0
        %2993 = vmatprep.subr.bf16.mxu0 0
        %2994 = vmatpush1.bf16.msra.mxu0 0
        %2995 = vmatprep.subr.bf16.mxu0 0
        %2996 = vmatpush1.bf16.msra.mxu0 0
        %2997 = vmatprep.subr.bf16.mxu0 0
        %2998 = vmatpush1.bf16.msra.mxu0 0
        %2999 = vmatprep.subr.bf16.mxu0 0
        %3000 = vmatpush1.bf16.msra.mxu0 0
        %3001 = vmatprep.subr.bf16.mxu0 0
        %3002 = vmatpush1.bf16.msra.mxu0 0
        %3003 = vmatprep.subr.bf16.mxu0 0
        %3004 = vmatpush1.bf16.msra.mxu0 0
        %3005 = vmatprep.subr.bf16.mxu0 0
        %3006 = vmatpush1.bf16.msra.mxu0 0
        %3007 = vmatprep.subr.bf16.mxu0 0
        %3008 = vmatpush1.bf16.msra.mxu0 0
        %3009 = vmatprep.subr.bf16.mxu0 0
        %3010 = vmatpush1.bf16.msra.mxu0 0
        %3011 = vmatprep.subr.bf16.mxu0 0
        %3012 = vmatpush1.bf16.msra.mxu0 0
        %3013 = vmatprep.subr.bf16.mxu0 0
        %3014 = vmatpush1.bf16.msra.mxu0 0
        %3015 = vmatprep.mubr.bf16.mxu0 0
        %3016 = vmatmul.mubr.bf16.gmra.mrb[0].mxu0 %v2978
        %v3017 = vpop.f32.mrb[0].mxu0
        %v3018 = vadd.f32 0.0, %v3017
        %v3019 = vpop.f32.mrb[0].mxu0
        %v3020 = vpop.f32.mrb[0].mxu0
        %v3021 = vpop.f32.mrb[0].mxu0
        %3022 = vdwg.mxu0
        %v3024 = vsel %vm1094, %v2925, 0
        %v3027 = vsel %vm1334, %v2929, 0
        %3029 = vmatprep.subr.bf16.mxu0 0
        %3030 = vmatpush1.bf16.msra.mxu0 %v3027
        %3031 = vmatprep.subr.bf16.mxu0 0
        %3032 = vmatpush1.bf16.msra.mxu0 0
        %3033 = vmatprep.subr.bf16.mxu0 0
        %3034 = vmatpush1.bf16.msra.mxu0 0
        %3035 = vmatprep.subr.bf16.mxu0 0
        %3036 = vmatpush1.bf16.msra.mxu0 0
        %3037 = vmatprep.subr.bf16.mxu0 0
        %3038 = vmatpush1.bf16.msra.mxu0 0
        %3039 = vmatprep.subr.bf16.mxu0 0
        %3040 = vmatpush1.bf16.msra.mxu0 0
        %3041 = vmatprep.subr.bf16.mxu0 0
        %3042 = vmatpush1.bf16.msra.mxu0 0
        %3043 = vmatprep.subr.bf16.mxu0 0
        %3044 = vmatpush1.bf16.msra.mxu0 0
        %3045 = vmatprep.subr.bf16.mxu0 0
        %3046 = vmatpush1.bf16.msra.mxu0 0
        %3047 = vmatprep.subr.bf16.mxu0 0
        %3048 = vmatpush1.bf16.msra.mxu0 0
        %3049 = vmatprep.subr.bf16.mxu0 0
        %3050 = vmatpush1.bf16.msra.mxu0 0
        %3051 = vmatprep.subr.bf16.mxu0 0
        %3052 = vmatpush1.bf16.msra.mxu0 0
        %3053 = vmatprep.subr.bf16.mxu0 0
        %3054 = vmatpush1.bf16.msra.mxu0 0
        %3055 = vmatprep.subr.bf16.mxu0 0
        %3056 = vmatpush1.bf16.msra.mxu0 0
        %3057 = vmatprep.subr.bf16.mxu0 0
        %3058 = vmatpush1.bf16.msra.mxu0 0
        %3059 = vmatprep.subr.bf16.mxu0 0
        %3060 = vmatpush1.bf16.msra.mxu0 0
        %3061 = vmatprep.mubr.bf16.mxu0 0
        %3062 = vmatmul.mubr.bf16.gmra.mrb[0].mxu0 %v3024
        %v3063 = vpop.f32.mrb[0].mxu0
        %v3064 = vadd.f32 0.0, %v3063
        %v3065 = vpop.f32.mrb[0].mxu0
        %v3066 = vpop.f32.mrb[0].mxu0
        %v3067 = vpop.f32.mrb[0].mxu0
        %3068 = vdwg.mxu0
        %v3070 = vsel %vm1094, %v2926, 0
        %v3073 = vsel %vm1334, %v2930, 0
        %3075 = vmatprep.subr.bf16.mxu0 0
        %3076 = vmatpush1.bf16.msra.mxu0 %v3073
        %3077 = vmatprep.subr.bf16.mxu0 0
        %3078 = vmatpush1.bf16.msra.mxu0 0
        %3079 = vmatprep.subr.bf16.mxu0 0
        %3080 = vmatpush1.bf16.msra.mxu0 0
        %3081 = vmatprep.subr.bf16.mxu0 0
        %3082 = vmatpush1.bf16.msra.mxu0 0
        %3083 = vmatprep.subr.bf16.mxu0 0
        %3084 = vmatpush1.bf16.msra.mxu0 0
        %3085 = vmatprep.subr.bf16.mxu0 0
        %3086 = vmatpush1.bf16.msra.mxu0 0
        %3087 = vmatprep.subr.bf16.mxu0 0
        %3088 = vmatpush1.bf16.msra.mxu0 0
        %3089 = vmatprep.subr.bf16.mxu0 0
        %3090 = vmatpush1.bf16.msra.mxu0 0
        %3091 = vmatprep.subr.bf16.mxu0 0
        %3092 = vmatpush1.bf16.msra.mxu0 0
        %3093 = vmatprep.subr.bf16.mxu0 0
        %3094 = vmatpush1.bf16.msra.mxu0 0
        %3095 = vmatprep.subr.bf16.mxu0 0
        %3096 = vmatpush1.bf16.msra.mxu0 0
        %3097 = vmatprep.subr.bf16.mxu0 0
        %3098 = vmatpush1.bf16.msra.mxu0 0
        %3099 = vmatprep.subr.bf16.mxu0 0
        %3100 = vmatpush1.bf16.msra.mxu0 0
        %3101 = vmatprep.subr.bf16.mxu0 0
        %3102 = vmatpush1.bf16.msra.mxu0 0
        %3103 = vmatprep.subr.bf16.mxu0 0
        %3104 = vmatpush1.bf16.msra.mxu0 0
        %3105 = vmatprep.subr.bf16.mxu0 0
        %3106 = vmatpush1.bf16.msra.mxu0 0
        %3107 = vmatprep.mubr.bf16.mxu0 0
        %3108 = vmatmul.mubr.bf16.gmra.mrb[0].mxu0 %v3070
        %v3109 = vpop.f32.mrb[0].mxu0
        %v3110 = vadd.f32 0.0, %v3109
        %v3111 = vpop.f32.mrb[0].mxu0
        %v3112 = vpop.f32.mrb[0].mxu0
        %v3113 = vpop.f32.mrb[0].mxu0
        %3114 = vdwg.mxu0
        %v3115 = vpack.c.bf16 %v2972, %v2972
        %v3116 = vpack.c.bf16 %v3018, %v3018
        %v3117 = vpack.c.bf16 %v3064, %v3064
        %v3118 = vpack.c.bf16 %v3110, %v3110
        %s3119 = scalar_lea.vmem %s4, 16
        %v3120 = vld [vmem:[%s3119] sm:$0xf]
        %v3121 = vld [vmem:[%s3119 + $0x4] sm:$0xf]
        %v3122 = vld [vmem:[%s3119 + $0x8] sm:$0xf]
        %v3123 = vld [vmem:[%s3119 + $0xc] sm:$0xf]
        %v3125 = vsel %vm1094, %v3115, 0
        %v3128 = vsel %vm1334, %v3120, 0
        %3130 = vmatprep.subr.bf16.mxu0 0
        %3131 = vmatpush1.bf16.msra.mxu0 %v3128
        %3132 = vmatprep.subr.bf16.mxu0 0
        %3133 = vmatpush1.bf16.msra.mxu0 0
        %3134 = vmatprep.subr.bf16.mxu0 0
        %3135 = vmatpush1.bf16.msra.mxu0 0
        %3136 = vmatprep.subr.bf16.mxu0 0
        %3137 = vmatpush1.bf16.msra.mxu0 0
        %3138 = vmatprep.subr.bf16.mxu0 0
        %3139 = vmatpush1.bf16.msra.mxu0 0
        %3140 = vmatprep.subr.bf16.mxu0 0
        %3141 = vmatpush1.bf16.msra.mxu0 0
        %3142 = vmatprep.subr.bf16.mxu0 0
        %3143 = vmatpush1.bf16.msra.mxu0 0
        %3144 = vmatprep.subr.bf16.mxu0 0
        %3145 = vmatpush1.bf16.msra.mxu0 0
        %3146 = vmatprep.subr.bf16.mxu0 0
        %3147 = vmatpush1.bf16.msra.mxu0 0
        %3148 = vmatprep.subr.bf16.mxu0 0
        %3149 = vmatpush1.bf16.msra.mxu0 0
        %3150 = vmatprep.subr.bf16.mxu0 0
        %3151 = vmatpush1.bf16.msra.mxu0 0
        %3152 = vmatprep.subr.bf16.mxu0 0
        %3153 = vmatpush1.bf16.msra.mxu0 0
        %3154 = vmatprep.subr.bf16.mxu0 0
        %3155 = vmatpush1.bf16.msra.mxu0 0
        %3156 = vmatprep.subr.bf16.mxu0 0
        %3157 = vmatpush1.bf16.msra.mxu0 0
        %3158 = vmatprep.subr.bf16.mxu0 0
        %3159 = vmatpush1.bf16.msra.mxu0 0
        %3160 = vmatprep.subr.bf16.mxu0 0
        %3161 = vmatpush1.bf16.msra.mxu0 0
        %3162 = vmatprep.mubr.bf16.mxu0 0
        %3163 = vmatmul.mubr.bf16.gmra.mrb[0].mxu0 %v3125
        %v3164 = vpop.f32.mrb[0].mxu0
        %v3165 = vadd.f32 0.0, %v3164
        %v3166 = vpop.f32.mrb[0].mxu0
        %v3167 = vpop.f32.mrb[0].mxu0
        %v3168 = vpop.f32.mrb[0].mxu0
        %3169 = vdwg.mxu0
        %v3171 = vsel %vm1094, %v3116, 0
        %v3174 = vsel %vm1334, %v3121, 0
        %3176 = vmatprep.subr.bf16.mxu0 0
        %3177 = vmatpush1.bf16.msra.mxu0 %v3174
        %3178 = vmatprep.subr.bf16.mxu0 0
        %3179 = vmatpush1.bf16.msra.mxu0 0
        %3180 = vmatprep.subr.bf16.mxu0 0
        %3181 = vmatpush1.bf16.msra.mxu0 0
        %3182 = vmatprep.subr.bf16.mxu0 0
        %3183 = vmatpush1.bf16.msra.mxu0 0
        %3184 = vmatprep.subr.bf16.mxu0 0
        %3185 = vmatpush1.bf16.msra.mxu0 0
        %3186 = vmatprep.subr.bf16.mxu0 0
        %3187 = vmatpush1.bf16.msra.mxu0 0
        %3188 = vmatprep.subr.bf16.mxu0 0
        %3189 = vmatpush1.bf16.msra.mxu0 0
        %3190 = vmatprep.subr.bf16.mxu0 0
        %3191 = vmatpush1.bf16.msra.mxu0 0
        %3192 = vmatprep.subr.bf16.mxu0 0
        %3193 = vmatpush1.bf16.msra.mxu0 0
        %3194 = vmatprep.subr.bf16.mxu0 0
        %3195 = vmatpush1.bf16.msra.mxu0 0
        %3196 = vmatprep.subr.bf16.mxu0 0
        %3197 = vmatpush1.bf16.msra.mxu0 0
        %3198 = vmatprep.subr.bf16.mxu0 0
        %3199 = vmatpush1.bf16.msra.mxu0 0
        %3200 = vmatprep.subr.bf16.mxu0 0
        %3201 = vmatpush1.bf16.msra.mxu0 0
        %3202 = vmatprep.subr.bf16.mxu0 0
        %3203 = vmatpush1.bf16.msra.mxu0 0
        %3204 = vmatprep.subr.bf16.mxu0 0
        %3205 = vmatpush1.bf16.msra.mxu0 0
        %3206 = vmatprep.subr.bf16.mxu0 0
        %3207 = vmatpush1.bf16.msra.mxu0 0
        %3208 = vmatprep.mubr.bf16.mxu0 0
        %3209 = vmatmul.mubr.bf16.gmra.mrb[0].mxu0 %v3171
        %v3210 = vpop.f32.mrb[0].mxu0
        %v3211 = vadd.f32 0.0, %v3210
        %v3212 = vpop.f32.mrb[0].mxu0
        %v3213 = vpop.f32.mrb[0].mxu0
        %v3214 = vpop.f32.mrb[0].mxu0
        %3215 = vdwg.mxu0
        %v3217 = vsel %vm1094, %v3117, 0
        %v3220 = vsel %vm1334, %v3122, 0
        %3222 = vmatprep.subr.bf16.mxu0 0
        %3223 = vmatpush1.bf16.msra.mxu0 %v3220
        %3224 = vmatprep.subr.bf16.mxu0 0
        %3225 = vmatpush1.bf16.msra.mxu0 0
        %3226 = vmatprep.subr.bf16.mxu0 0
        %3227 = vmatpush1.bf16.msra.mxu0 0
        %3228 = vmatprep.subr.bf16.mxu0 0
        %3229 = vmatpush1.bf16.msra.mxu0 0
        %3230 = vmatprep.subr.bf16.mxu0 0
        %3231 = vmatpush1.bf16.msra.mxu0 0
        %3232 = vmatprep.subr.bf16.mxu0 0
        %3233 = vmatpush1.bf16.msra.mxu0 0
        %3234 = vmatprep.subr.bf16.mxu0 0
        %3235 = vmatpush1.bf16.msra.mxu0 0
        %3236 = vmatprep.subr.bf16.mxu0 0
        %3237 = vmatpush1.bf16.msra.mxu0 0
        %3238 = vmatprep.subr.bf16.mxu0 0
        %3239 = vmatpush1.bf16.msra.mxu0 0
        %3240 = vmatprep.subr.bf16.mxu0 0
        %3241 = vmatpush1.bf16.msra.mxu0 0
        %3242 = vmatprep.subr.bf16.mxu0 0
        %3243 = vmatpush1.bf16.msra.mxu0 0
        %3244 = vmatprep.subr.bf16.mxu0 0
        %3245 = vmatpush1.bf16.msra.mxu0 0
        %3246 = vmatprep.subr.bf16.mxu0 0
        %3247 = vmatpush1.bf16.msra.mxu0 0
        %3248 = vmatprep.subr.bf16.mxu0 0
        %3249 = vmatpush1.bf16.msra.mxu0 0
        %3250 = vmatprep.subr.bf16.mxu0 0
        %3251 = vmatpush1.bf16.msra.mxu0 0
        %3252 = vmatprep.subr.bf16.mxu0 0
        %3253 = vmatpush1.bf16.msra.mxu0 0
        %3254 = vmatprep.mubr.bf16.mxu0 0
        %3255 = vmatmul.mubr.bf16.gmra.mrb[0].mxu0 %v3217
        %v3256 = vpop.f32.mrb[0].mxu0
        %v3257 = vadd.f32 0.0, %v3256
        %v3258 = vpop.f32.mrb[0].mxu0
        %v3259 = vpop.f32.mrb[0].mxu0
        %v3260 = vpop.f32.mrb[0].mxu0
        %3261 = vdwg.mxu0
        %v3263 = vsel %vm1094, %v3118, 0
        %v3266 = vsel %vm1334, %v3123, 0
        %3268 = vmatprep.subr.bf16.mxu0 0
        %3269 = vmatpush1.bf16.msra.mxu0 %v3266
        %3270 = vmatprep.subr.bf16.mxu0 0
        %3271 = vmatpush1.bf16.msra.mxu0 0
        %3272 = vmatprep.subr.bf16.mxu0 0
        %3273 = vmatpush1.bf16.msra.mxu0 0
        %3274 = vmatprep.subr.bf16.mxu0 0
        %3275 = vmatpush1.bf16.msra.mxu0 0
        %3276 = vmatprep.subr.bf16.mxu0 0
        %3277 = vmatpush1.bf16.msra.mxu0 0
        %3278 = vmatprep.subr.bf16.mxu0 0
        %3279 = vmatpush1.bf16.msra.mxu0 0
        %3280 = vmatprep.subr.bf16.mxu0 0
        %3281 = vmatpush1.bf16.msra.mxu0 0
        %3282 = vmatprep.subr.bf16.mxu0 0
        %3283 = vmatpush1.bf16.msra.mxu0 0
        %3284 = vmatprep.subr.bf16.mxu0 0
        %3285 = vmatpush1.bf16.msra.mxu0 0
        %3286 = vmatprep.subr.bf16.mxu0 0
        %3287 = vmatpush1.bf16.msra.mxu0 0
        %3288 = vmatprep.subr.bf16.mxu0 0
        %3289 = vmatpush1.bf16.msra.mxu0 0
        %3290 = vmatprep.subr.bf16.mxu0 0
        %3291 = vmatpush1.bf16.msra.mxu0 0
        %3292 = vmatprep.subr.bf16.mxu0 0
        %3293 = vmatpush1.bf16.msra.mxu0 0
        %3294 = vmatprep.subr.bf16.mxu0 0
        %3295 = vmatpush1.bf16.msra.mxu0 0
        %3296 = vmatprep.subr.bf16.mxu0 0
        %3297 = vmatpush1.bf16.msra.mxu0 0
        %3298 = vmatprep.subr.bf16.mxu0 0
        %3299 = vmatpush1.bf16.msra.mxu0 0
        %3300 = vmatprep.mubr.bf16.mxu0 0
        %3301 = vmatmul.mubr.bf16.gmra.mrb[0].mxu0 %v3263
        %v3302 = vpop.f32.mrb[0].mxu0
        %v3303 = vadd.f32 0.0, %v3302
        %v3304 = vpop.f32.mrb[0].mxu0
        %v3305 = vpop.f32.mrb[0].mxu0
        %v3306 = vpop.f32.mrb[0].mxu0
        %3307 = vdwg.mxu0
        %v3308 = vsel %vm464, %v3165, 0.0
        %v3309 = vsel %vm464, %v3211, 0.0
        %v3310 = vadd.f32 %v3308, %v3309
        %v3311 = vsel %vm464, %v3257, 0.0
        %v3312 = vadd.f32 %v3310, %v3311
        %v3313 = vsel %vm464, %v3303, 0.0
        %v3314 = vadd.f32 %v3312, %v3313
        %v3315 = vlaneseq
        %v3316 = vshrl.u32 %v3315, 7
        %v3317 = vsub.s32 1, %v3316
        %v3318 = vrot.slane %v1924, %v3317
        %v3319 = vadd.f32 %v3314, %v3318
        %v3320 = vadd.f32 %v3319, %v1922
        %v3321 = vsel %vm464, %v3320, 0.0
        %3322 = vadd.xlane.f32.xlu0 %v3321
        %v3323 = vpop.xlane.xlu0 %3322
        %v3324 = vmul.f32 %v3323, %v1724
        %v3325 = vmul.f32 %v3320, %v3320
        %v3326 = vsel %vm464, %v3325, 0.0
        %3327 = vadd.xlane.f32.xlu0 %v3326
        %v3328 = vpop.xlane.xlu0 %3327
        %v3329 = vmul.f32 %v3328, %v1724
        %v3330 = vmul.f32 %v3324, %v3324
        %v3331 = vsub.f32 %v3329, %v3330
        %v3332 = vsub.f32 %v3320, %v3324
        %v3333 = vadd.f32 %v3331, 1e-12
        %v3334 = vrsqrt.pop %v3333
        %v3335 = vmul.f32 %v3332, %v3334
        %v3336 = vlaneseq
        %v3337 = vshrl.u32 %v3336, 7
        %v3338 = vsub.s32 3, %v3337
        %v3339 = vrot.slane %v1924, %v3338
        %v3340 = vmul.f32 %v3335, %v3339
        %v3341 = vlaneseq
        %v3342 = vshrl.u32 %v3341, 7
        %v3343 = vsub.s32 4, %v3342
        %v3344 = vrot.slane %v1924, %v3343
        %v3345 = vadd.f32 %v3340, %v3344
        %v3346 = vpack.c.bf16 %v3345, %v3345
        %s3347 = scalar_lea.vmem %s5, 16
        %v3348 = vld [vmem:[%s3347] sm:$0xf]
        %v3349 = vld [vmem:[%s3347 + $0x4] sm:$0xf]
        %v3350 = vld [vmem:[%s3347 + $0x8] sm:$0xf]
        %v3351 = vld [vmem:[%s3347 + $0xc] sm:$0xf]
        %v3352 = vlaneseq
        %v3353 = vshrl.u32 %v3352, 7
        %v3354 = vsub.s32 0, %v3353
        %v3355 = vrot.slane %v1924, %v3354
        %v3360 = vunpack.c.l.b16 %v3348
        %v3361 = vunpack.c.l.b16 %v3349
        %v3362 = vunpack.c.l.b16 %v3350
        %v3363 = vunpack.c.l.b16 %v3351
        %v3364 = vpack.c.b16 %v3361, %v3360
        %v3365 = vpack.c.b16 %v3363, %v3362
        %v3369 = vsel %vm464, %v3346, 0
        %3371 = vmatprep.subr.bf16.mxu0 0
        %3372 = vmatpush1.bf16.msra.mxu0 %v3364
        %3373 = vmatprep.subr.bf16.mxu0 0
        %3374 = vmatpush1.bf16.msra.mxu0 %v3365
        %3375 = vmatprep.subr.bf16.mxu0 0
        %3376 = vmatpush1.bf16.msra.mxu0 0
        %3377 = vmatprep.subr.bf16.mxu0 0
        %3378 = vmatpush1.bf16.msra.mxu0 0
        %3379 = vmatprep.subr.bf16.mxu0 0
        %3380 = vmatpush1.bf16.msra.mxu0 0
        %3381 = vmatprep.subr.bf16.mxu0 0
        %3382 = vmatpush1.bf16.msra.mxu0 0
        %3383 = vmatprep.subr.bf16.mxu0 0
        %3384 = vmatpush1.bf16.msra.mxu0 0
        %3385 = vmatprep.subr.bf16.mxu0 0
        %3386 = vmatpush1.bf16.msra.mxu0 0
        %3387 = vmatprep.subr.bf16.mxu0 0
        %3388 = vmatpush1.bf16.msra.mxu0 0
        %3389 = vmatprep.subr.bf16.mxu0 0
        %3390 = vmatpush1.bf16.msra.mxu0 0
        %3391 = vmatprep.subr.bf16.mxu0 0
        %3392 = vmatpush1.bf16.msra.mxu0 0
        %3393 = vmatprep.subr.bf16.mxu0 0
        %3394 = vmatpush1.bf16.msra.mxu0 0
        %3395 = vmatprep.subr.bf16.mxu0 0
        %3396 = vmatpush1.bf16.msra.mxu0 0
        %3397 = vmatprep.subr.bf16.mxu0 0
        %3398 = vmatpush1.bf16.msra.mxu0 0
        %3399 = vmatprep.subr.bf16.mxu0 0
        %3400 = vmatpush1.bf16.msra.mxu0 0
        %3401 = vmatprep.subr.bf16.mxu0 0
        %3402 = vmatpush1.bf16.msra.mxu0 0
        %3403 = vmatprep.mubr.bf16.mxu0 0
        %3404 = vmatmul.mubr.bf16.gmra.mrb[0].mxu0 %v3369
        %v3405 = vpop.f32.mrb[0].mxu0
        %v3406 = vadd.f32 %v3355, %v3405
        %v3407 = vpop.f32.mrb[0].mxu0
        %v3408 = vpop.f32.mrb[0].mxu0
        %v3409 = vpop.f32.mrb[0].mxu0
        %3410 = vdwg.mxu0
        %v3411 = vmul.f32 %v3406, 0.5
        %v3412 = vmul.f32 %v3406, 0.70710677
        %v3413 = verf.f32.pop %v3412
        %v3414 = vadd.f32 %v3413, 1.0
        %v3415 = vmul.f32 %v3411, %v3414
        %v3416 = vpack.c.bf16 %v3415, %v3415
        %s3417 = scalar_lea.vmem %s6, 32
        %v3418 = vld [vmem:[%s3417] sm:$0xf]
        %v3419 = vld [vmem:[%s3417 + $0x4] sm:$0xf]
        %v3420 = vld [vmem:[%s3417 + $0x8] sm:$0xf]
        %v3421 = vld [vmem:[%s3417 + $0xc] sm:$0xf]
        %v3422 = vld [vmem:[%s3417 + $0x10] sm:$0xf]
        %v3423 = vld [vmem:[%s3417 + $0x14] sm:$0xf]
        %v3424 = vld [vmem:[%s3417 + $0x18] sm:$0xf]
        %v3425 = vld [vmem:[%s3417 + $0x1c] sm:$0xf]
        %v3426 = vlaneseq
        %v3427 = vshrl.u32 %v3426, 7
        %v3428 = vsub.s32 2, %v3427
        %v3429 = vrot.slane %v1924, %v3428
        %v3438 = vunpack.c.l.b16 %v3418
        %v3439 = vunpack.c.l.b16 %v3419
        %v3440 = vunpack.c.l.b16 %v3420
        %v3441 = vunpack.c.l.b16 %v3421
        %v3442 = vunpack.c.l.b16 %v3422
        %v3443 = vunpack.c.l.b16 %v3423
        %v3444 = vunpack.c.l.b16 %v3424
        %v3445 = vunpack.c.l.b16 %v3425
        %v3446 = vpack.c.b16 %v3439, %v3438
        %v3447 = vpack.c.b16 %v3441, %v3440
        %v3448 = vpack.c.b16 %v3443, %v3442
        %v3449 = vpack.c.b16 %v3445, %v3444
        %v3455 = vsel %vm1853, %v3416, 0
        %3457 = vmatprep.subr.bf16.mxu0 0
        %3458 = vmatpush1.bf16.msra.mxu0 %v3446
        %3459 = vmatprep.subr.bf16.mxu0 0
        %3460 = vmatpush1.bf16.msra.mxu0 %v3447
        %3461 = vmatprep.subr.bf16.mxu0 0
        %3462 = vmatpush1.bf16.msra.mxu0 %v3448
        %3463 = vmatprep.subr.bf16.mxu0 0
        %3464 = vmatpush1.bf16.msra.mxu0 %v3449
        %3465 = vmatprep.subr.bf16.mxu0 0
        %3466 = vmatpush1.bf16.msra.mxu0 0
        %3467 = vmatprep.subr.bf16.mxu0 0
        %3468 = vmatpush1.bf16.msra.mxu0 0
        %3469 = vmatprep.subr.bf16.mxu0 0
        %3470 = vmatpush1.bf16.msra.mxu0 0
        %3471 = vmatprep.subr.bf16.mxu0 0
        %3472 = vmatpush1.bf16.msra.mxu0 0
        %3473 = vmatprep.subr.bf16.mxu0 0
        %3474 = vmatpush1.bf16.msra.mxu0 0
        %3475 = vmatprep.subr.bf16.mxu0 0
        %3476 = vmatpush1.bf16.msra.mxu0 0
        %3477 = vmatprep.subr.bf16.mxu0 0
        %3478 = vmatpush1.bf16.msra.mxu0 0
        %3479 = vmatprep.subr.bf16.mxu0 0
        %3480 = vmatpush1.bf16.msra.mxu0 0
        %3481 = vmatprep.subr.bf16.mxu0 0
        %3482 = vmatpush1.bf16.msra.mxu0 0
        %3483 = vmatprep.subr.bf16.mxu0 0
        %3484 = vmatpush1.bf16.msra.mxu0 0
        %3485 = vmatprep.subr.bf16.mxu0 0
        %3486 = vmatpush1.bf16.msra.mxu0 0
        %3487 = vmatprep.subr.bf16.mxu0 0
        %3488 = vmatpush1.bf16.msra.mxu0 0
        %3489 = vmatprep.mubr.bf16.mxu0 0
        %3490 = vmatmul.mubr.bf16.gmra.mrb[0].mxu0 %v3455
        %v3491 = vpop.f32.mrb[0].mxu0
        %v3492 = vadd.f32 %v3429, %v3491
        %v3493 = vpop.f32.mrb[0].mxu0
        %v3494 = vpop.f32.mrb[0].mxu0
        %v3495 = vpop.f32.mrb[0].mxu0
        %3496 = vdwg.mxu0
        %v3497 = vadd.f32 %v3492, %v3345
        %v3498 = vsel %vm464, %v3497, 0.0
        %3499 = vadd.xlane.f32.xlu0 %v3498
        %v3500 = vpop.xlane.xlu0 %3499
        %v3501 = vmul.f32 %v3500, %v1724
        %v3502 = vmul.f32 %v3497, %v3497
        %v3503 = vsel %vm464, %v3502, 0.0
        %3504 = vadd.xlane.f32.xlu0 %v3503
        %v3505 = vpop.xlane.xlu0 %3504
        %v3506 = vmul.f32 %v3505, %v1724
        %v3507 = vmul.f32 %v3501, %v3501
        %v3508 = vsub.f32 %v3506, %v3507
        %v3509 = vsub.f32 %v3497, %v3501
        %v3510 = vadd.f32 %v3508, 1e-12
        %v3511 = vrsqrt.pop %v3510
        %v3512 = vmul.f32 %v3509, %v3511
        %v3513 = vlaneseq
        %v3514 = vshrl.u32 %v3513, 7
        %v3515 = vsub.s32 5, %v3514
        %v3516 = vrot.slane %v1924, %v3515
        %v3517 = vmul.f32 %v3512, %v3516
        %v3518 = vlaneseq
        %v3519 = vshrl.u32 %v3518, 7
        %v3520 = vsub.s32 6, %v3519
        %v3521 = vrot.slane %v1924, %v3520
        %v3522 = vadd.f32 %v3517, %v3521
        %3523 = vst.msk [vmem:[%s307] sm:$0xff] %vm464, %v3522
        %s3524 = sand.u32 %s208, 1
        %s3525 = scalar_lea.sflag [#allocation3], %s3524
        %s3526 = sand.u32 %s208, 1
        %s3527 = smul.addr %s3526, 8
        %s3528 = scalar_lea.vmem [#allocation2], %s3527
        // Predicated region
        $region53: #{bert_encoder_call.1} parent=51 // pred_check
          %p3529 = pneg %p218
        $region54: #{bert_encoder_call.1} parent=51 // pred_check_branch
          %3531 = sbr.rel (%p3529) target = $region56
        $region55: #{bert_encoder_call.1} parent=51 // pred_region
          %s3533 = ssub.s32 128, 128
          %3534 = vsyncadd %s3525, %s3533
          %s3535 = smul.addr %s22, 128
          %s3536 = scalar_lea.hbm %s8, %s3535
          %s3538 = sshll.u32 %s3528, 4
          %s3539 = int_to_ptr.vmem [resolvable:$true] %s3538
          %3541 = dma.vmem_to_hbm [thread:$0]  %s3539, 128, %s3536, %s3525
        $region56: #{bert_encoder_call.1} parent=51 // pred_fallthru
          _
      $region52: #{bert_encoder_call.1} parent=5 // pred_fallthru
        _
      %p3542 = scmp.le.s32.totalorder 2, %s17
      // Predicated region
      $region57: #{bert_encoder_call.1} parent=5 // pred_check
        %p3543 = pneg %p3542
      $region58: #{bert_encoder_call.1} parent=5 // pred_check_branch
        %3545 = sbr.rel (%p3543) target = $region60
      $region59: #{bert_encoder_call.1} parent=5 // pred_region
        %s3546 = ssub.s32 %s17, 2
        // Predicated region
        $region61: #{bert_encoder_call.1} parent=59 // pred_check
          %p3547 = pneg %p224
        $region62: #{bert_encoder_call.1} parent=59 // pred_check_branch
          %3549 = sbr.rel (%p3547) target = $region64
        $region63: #{bert_encoder_call.1} parent=59 // pred_region
          %s3550 = sand.u32 %s209, 1
          %s3551 = scalar_lea.sflag [#allocation3], %s3550
          %s3552 = sand.u32 %s209, 1
          %s3553 = smul.addr %s3552, 8
          %s3554 = scalar_lea.vmem [#allocation2], %s3553
          %3555 = dma.done %s3551, 128
        $region64: #{bert_encoder_call.1} parent=59 // pred_fallthru
          _
      $region60: #{bert_encoder_call.1} parent=5 // pred_fallthru
        _
    $region6: #{bert_encoder_call.1} parent=1 // loop_footer
      %s21 = sadd.s32 1, %s17
    $region7: #{bert_encoder_call.1} parent=1 // loop_footer_branch
      %16 = sbr.rel target = $region3
    $region8: #{bert_encoder_call.1} parent=1 // loop_exit
      _
    %3556 = vsyncpa [#allocation3], 1
    %s3557 = scalar_lea.sflag [#allocation3], 1
    %3558 = vsyncpa %s3557, 1

</llo_original>
